<compile_context>
chip_gen: v5e
topology: v5e:2x2
jax: 0.10.0
libtpu: 0.0.40
codegen_flags: <defaults>
</compile_context>

<pallas_src>
import math

import jax
import jax.numpy as jnp
from jax.experimental import pallas as pl
from jax.experimental.pallas import tpu as pltpu

NUM_INPUT_DIMS = 3          # 3D positions
NUM_FEATURE_DIMS = 3        # RGB-like features
HIDDEN = 32
NUM_FREQS = 4
ENC_DIM = NUM_INPUT_DIMS * (1 + 2 * NUM_FREQS)   # 27
BLOB_RADIUS = 0.5
BLOB_DENSITY = 10.0
INV_2R2 = 1.0 / (2.0 * BLOB_RADIUS ** 2)
EPS_FD = 0.01               # finite-difference epsilon
TILE = 1024                 # points per grid step (lane extent, multiple of 128)
OUT_ROWS = 8                # 1 sigma + 3 feat + 3 normal + 1 pad


def nerf_kernel(pos_ref, w1f_ref, b1f_ref, w2f_ref, b2f_ref, wblk_ref,
                sw2blk_ref, out_ref):
    pos = pos_ref[...]                                     # [3, T]
    w1f = w1f_ref[...]                                     # [64, 27]
    b1f = b1f_ref[...]                                     # [64, 1]
    w2f = w2f_ref[...]                                     # [4, 64] block-diag
    b2f = b2f_ref[...]                                     # [4, 1]
    wblk = wblk_ref[...]                                   # [96, 27] block-diag
    sw2blk = sw2blk_ref[...]                               # [3, 96]  block-diag

    # ---- shared frequency encoding: sin/cos once, octaves via double angle ----
    s = [jnp.sin(pos)]
    c = [jnp.cos(pos)]
    for _ in range(1, NUM_FREQS):
        sp, cp = s[-1], c[-1]
        s.append(2.0 * sp * cp)                            # sin(2x) = 2 sin cos
        c.append(cp * cp - sp * sp)                        # cos(2x) = c^2 - s^2
    enc_blocks = [pos]
    for l in range(NUM_FREQS):
        enc_blocks.append(s[l])
        enc_blocks.append(c[l])
    enc = jnp.concatenate(enc_blocks, axis=0)              # [27, T]

    # ---- fused sigma_net + features_net ----
    pre1 = jnp.dot(w1f, enc, preferred_element_type=jnp.float32) + b1f   # [64, T]
    h = jnp.maximum(pre1, 0.0)
    out2 = jnp.dot(w2f, h, preferred_element_type=jnp.float32) + b2f     # [4, T]

    d = jnp.sum(pos * pos, axis=0, keepdims=True)          # [1, T]
    blob = BLOB_DENSITY * jnp.exp(-d * INV_2R2)            # [1, T]
    # trunc_exp's forward pass is exp (only the gradient is clamped).
    sigma = jnp.exp(out2[0:1, :] + blob)                   # [1, T]
    feat = jax.nn.sigmoid(out2[1:4, :])                    # [3, T]

    # ---- normals: central finite differences, batched over coord & sign ----
    # The +eps perturbation of coordinate k only changes the 9 encoding rows
    # that belong to k; the change is (A + B) on those rows, and the -eps
    # change is (A - B), where A is the even-in-eps part and B the odd part
    # (angle-addition with compile-time constants cos(f*eps), sin(f*eps)).
    a_blocks = [jnp.zeros_like(pos)]                       # d(raw coord), even part
    b_blocks = [jnp.full_like(pos, EPS_FD)]                # d(raw coord), odd part
    for l in range(NUM_FREQS):
        f = float(2 ** l)
        ce = math.cos(f * EPS_FD) - 1.0
        se = math.sin(f * EPS_FD)
        a_blocks.append(s[l] * ce)                         # d sin(f x), even
        a_blocks.append(c[l] * ce)                         # d cos(f x), even
        b_blocks.append(c[l] * se)                         # d sin(f x), odd
        b_blocks.append(-s[l] * se)                        # d cos(f x), odd
    A = jnp.concatenate(a_blocks, axis=0)                  # [27, T]
    B = jnp.concatenate(b_blocks, axis=0)                  # [27, T]

    # Block-diagonal layer-1 delta: row block k of wblk holds W1_sigma^T masked
    # to coordinate k's encoding columns, so U[32k:32k+32] = W1_k @ A_k.
    U = jnp.dot(wblk, A, preferred_element_type=jnp.float32)   # [96, T]
    V = jnp.dot(wblk, B, preferred_element_type=jnp.float32)   # [96, T]

    pre1_s = pre1[0:HIDDEN, :]                             # [32, T] cached base
    base96 = jnp.concatenate([pre1_s, pre1_s, pre1_s], axis=0)  # [96, T]
    h_p = jnp.maximum(base96 + U + V, 0.0)                 # [96, T]
    h_m = jnp.maximum(base96 + U - V, 0.0)                 # [96, T]

    sb2 = b2f[0:1, :]                                      # [1, 1]
    # Block-diagonal layer-2 head on the MXU instead of cross-sublane sums.
    raw_p = jnp.dot(sw2blk, h_p, preferred_element_type=jnp.float32) + sb2  # [3, T]
    raw_m = jnp.dot(sw2blk, h_m, preferred_element_type=jnp.float32) + sb2  # [3, T]

    # ||p +/- eps e_k||^2 analytically, batched over k.
    d_p = d + (2.0 * EPS_FD) * pos + EPS_FD * EPS_FD       # [3, T]
    d_m = d - (2.0 * EPS_FD) * pos + EPS_FD * EPS_FD       # [3, T]
    sig_p = jnp.exp(raw_p + BLOB_DENSITY * jnp.exp(-d_p * INV_2R2))
    sig_m = jnp.exp(raw_m + BLOB_DENSITY * jnp.exp(-d_m * INV_2R2))
    grad = (-0.5 / EPS_FD) * (sig_p - sig_m)               # [3, T]

    sumsq = jnp.sum(grad * grad, axis=0, keepdims=True)
    # F.normalize(eps=1e-12): x / max(||x||, 1e-12) == x * rsqrt(max(||x||^2, 1e-24))
    normal = grad * jax.lax.rsqrt(jnp.maximum(sumsq, 1e-24))
    normal = jnp.nan_to_num(normal)

    # single lane-dense packed output slab (one unmasked writeback stream)
    out_ref[...] = jnp.concatenate(
        [sigma, feat, normal, jnp.zeros_like(sigma)], axis=0)            # [8, T]


def pack_params(params):
    """Transpose / fuse the raw (PyTorch-layout) params for the kernel.

    Call ONCE per parameter set and reuse the result across forward calls.
    """
    w1, b1, w2, b2, f1, fb1, f2, fb2 = params
    w1f = jnp.concatenate([w1, f1], axis=1).T              # [64, 27]
    b1f = jnp.concatenate([b1, fb1], axis=1).T             # [64, 1]
    w2f = jnp.zeros((1 + NUM_FEATURE_DIMS, 2 * HIDDEN), jnp.float32)
    w2f = w2f.at[0, :HIDDEN].set(w2[:, 0])
    w2f = w2f.at[1:, HIDDEN:].set(f2.T)                    # [4, 64] block-diagonal
    b2f = jnp.concatenate([b2, fb2], axis=1).T             # [4, 1]
    # FD block-diagonal layer-1: coordinate k owns encoding rows j with j%3==k
    # (feature order is [p, sin1, cos1, sin2, cos2, sin4, cos4, sin8, cos8]).
    w1t = w1.T                                             # [32, 27]
    col = jnp.arange(ENC_DIM)
    wblk = jnp.concatenate(
        [w1t * (col % NUM_INPUT_DIMS == k).astype(jnp.float32)[None, :]
         for k in range(NUM_INPUT_DIMS)], axis=0)          # [96, 27]
    # FD block-diagonal layer-2 head: row k has sigma W2 in cols 32k..32k+32.
    sw2blk = jnp.zeros((NUM_INPUT_DIMS, NUM_INPUT_DIMS * HIDDEN), jnp.float32)
    for k in range(NUM_INPUT_DIMS):
        sw2blk = sw2blk.at[k, k * HIDDEN:(k + 1) * HIDDEN].set(w2[:, 0])
    return w1f, b1f, w2f, b2f, wblk, sw2blk


def nerf_forward(positions, packed):
    """positions: [N, 3] float32 (any N). packed: output of pack_params().

    Returns (sigma[N], feat[N,3], normal[N,3]).
    """
    n = positions.shape[0]
    if n == 0:   # mirror the module's empty-input edge case
        return (jnp.zeros((0,), jnp.float32),
                jnp.zeros((0, NUM_FEATURE_DIMS), jnp.float32),
                jnp.zeros((0, NUM_INPUT_DIMS), jnp.float32))

    w1f, b1f, w2f, b2f, wblk, sw2blk = packed
    # TODO(synk): accept SoA [3, N] positions upstream to skip this relayout.
    pos_t = positions.T                                    # points-on-lanes layout

    def _bcast_spec(arr):
        nd = arr.ndim
        return pl.BlockSpec(arr.shape, lambda i, _n=nd: (0,) * _n)

    # Ragged last block: no wrapper padding; OOB lanes compute garbage that is
    # clipped on writeback and sliced off (never fed into a reduction).
    out = pl.pallas_call(
        nerf_kernel,
        grid=(pl.cdiv(n, TILE),),
        in_specs=[pl.BlockSpec((NUM_INPUT_DIMS, TILE), lambda i: (0, i)),
                  _bcast_spec(w1f), _bcast_spec(b1f),
                  _bcast_spec(w2f), _bcast_spec(b2f),
                  _bcast_spec(wblk), _bcast_spec(sw2blk)],
        out_specs=pl.BlockSpec((OUT_ROWS, TILE), lambda i: (0, i)),
        out_shape=jax.ShapeDtypeStruct((OUT_ROWS, n), jnp.float32),
        compiler_params=pltpu.CompilerParams(
            dimension_semantics=("parallel",),
            vmem_limit_bytes=32 * 1024 * 1024),
    )(pos_t, w1f, b1f, w2f, b2f, wblk, sw2blk)

    sigma = out[0, :]
    feat = out[1:1 + NUM_FEATURE_DIMS, :].T
    normal = out[4:4 + NUM_INPUT_DIMS, :].T
    return sigma, feat, normal


# ----------------------------- pure-JAX reference -----------------------------
def _encode_ref(p):
    feats = [p]
    for l in range(NUM_FREQS):
        f = float(2 ** l)
        feats.append(jnp.sin(p * f))
        feats.append(jnp.cos(p * f))
    return jnp.concatenate(feats, axis=-1)


def _density_ref(p, w1, b1, w2, b2):
    enc = _encode_ref(p)
    h = jnp.maximum(enc @ w1 + b1, 0.0)
    raw = (h @ w2)[:, 0] + b2[0, 0]
    d = jnp.sum(p * p, axis=-1)
    blob = BLOB_DENSITY * jnp.exp(-d / (2.0 * BLOB_RADIUS ** 2))
    return jnp.exp(raw + blob)


def nerf_forward_ref(positions, params):
    w1, b1, w2, b2, f1, fb1, f2, fb2 = params
    sigma = _density_ref(positions, w1, b1, w2, b2)
    enc = _encode_ref(positions)
    h = jnp.maximum(enc @ f1 + fb1, 0.0)
    feat = jax.nn.sigmoid(h @ f2 + fb2)
    eye = jnp.eye(NUM_INPUT_DIMS, dtype=positions.dtype) * EPS_FD
    sig_pos = jnp.stack([_density_ref(positions + eye[k][None, :], w1, b1, w2, b2)
                         for k in range(NUM_INPUT_DIMS)], axis=1)
    sig_neg = jnp.stack([_density_ref(positions - eye[k][None, :], w1, b1, w2, b2)
                         for k in range(NUM_INPUT_DIMS)], axis=1)
    grad = -(0.5 * (sig_pos - sig_neg) / EPS_FD)           # unnormalized
    nrm = jnp.sqrt(jnp.sum(grad * grad, axis=-1, keepdims=True))
    normal = jnp.nan_to_num(grad / jnp.maximum(nrm, 1e-12))
    return sigma, feat, normal, grad


if __name__ == "__main__":
    key = jax.random.PRNGKey(0)
    k_pos, k1, k2, k3, k4, k5, k6, k7, k8 = jax.random.split(key, 9)

    N = 2000   # deliberately NOT a multiple of TILE to exercise the ragged block
    positions = jax.random.uniform(k_pos, (N, NUM_INPUT_DIMS), jnp.float32,
                                   minval=-1.0, maxval=1.0)

    params = (
        0.1 * jax.random.normal(k1, (ENC_DIM, HIDDEN), jnp.float32),          # sigma W1
        0.1 * jax.random.normal(k2, (1, HIDDEN), jnp.float32),                # sigma b1
        0.1 * jax.random.normal(k3, (HIDDEN, 1), jnp.float32),                # sigma W2
        0.1 * jax.random.normal(k4, (1, 1), jnp.float32),                     # sigma b2
        0.1 * jax.random.normal(k5, (ENC_DIM, HIDDEN), jnp.float32),          # feat W1
        0.1 * jax.random.normal(k6, (1, HIDDEN), jnp.float32),                # feat b1
        0.1 * jax.random.normal(k7, (HIDDEN, NUM_FEATURE_DIMS), jnp.float32), # feat W2
        0.1 * jax.random.normal(k8, (1, NUM_FEATURE_DIMS), jnp.float32),      # feat b2
    )

    # Pack once, reuse across calls (hoisted out of the per-call path).
    packed = pack_params(params)
    packed = jax.block_until_ready(packed)

    fwd = jax.jit(nerf_forward)
    sigma, feat, normal = fwd(positions, packed)
    jax.block_until_ready((sigma, feat, normal))

    s_ref, f_ref, n_ref, g_ref = nerf_forward_ref(positions, params)
    assert sigma.shape == (N,) and feat.shape == (N, 3) and normal.shape == (N, 3)
    assert jnp.allclose(sigma, s_ref, rtol=2e-4, atol=1e-4), "sigma mismatch"
    assert jnp.allclose(feat, f_ref, rtol=1e-4, atol=1e-4), "features mismatch"
    # Normals: compare where the density gradient is well-conditioned; the
    # direction of a ~zero gradient is dominated by fp noise in both impls.
    strong = (jnp.linalg.norm(g_ref, axis=-1) > 0.5 * s_ref)[:, None]
    assert jnp.allclose(jnp.where(strong, normal, n_ref), n_ref,
                        rtol=2e-3, atol=2e-3), "normal mismatch"
    assert float(jnp.mean(strong)) > 0.9, "normal check mask too aggressive"

    # TODO(synk): AUTOGRAD normal_type, the SOFTPLUS density branch, trunc_exp's
    # clamped gradient, and the marching-cubes `mesh()` method (trimesh/mcubes,
    # host-side) have no in-kernel Pallas equivalent here.
    print("KERNEL_OK")
</pallas_src>

<mosaic_0001>
module attributes {stable_mosaic.version = 11 : i64} {
  func.func @nerf_kernel(%arg0: i32, %arg1: memref<3x1024xf32, #tpu.memory_space<vmem>>, %arg2: memref<64x27xf32, #tpu.memory_space<vmem>>, %arg3: memref<64x1xf32, #tpu.memory_space<vmem>>, %arg4: memref<4x64xf32, #tpu.memory_space<vmem>>, %arg5: memref<4x1xf32, #tpu.memory_space<vmem>>, %arg6: memref<96x27xf32, #tpu.memory_space<vmem>>, %arg7: memref<3x96xf32, #tpu.memory_space<vmem>>, %arg8: memref<8x1024xf32, #tpu.memory_space<vmem>>) attributes {dimension_semantics = [#tpu.dimension_semantics<parallel>], iteration_bounds = array<i64: 2>, scalar_prefetch = 0 : i64, scratch_operands = 0 : i64, tpu.core_type = #tpu.core_type<tc>, window_params = [{transform_indices = @transform_0, window_bounds = array<i64: 3, 1024>}, {pipeline_mode = #tpu.pipeline_mode<synchronous>, transform_indices = @transform_1, window_bounds = array<i64: 64, 27>}, {pipeline_mode = #tpu.pipeline_mode<synchronous>, transform_indices = @transform_2, window_bounds = array<i64: 64, 1>}, {pipeline_mode = #tpu.pipeline_mode<synchronous>, transform_indices = @transform_3, window_bounds = array<i64: 4, 64>}, {pipeline_mode = #tpu.pipeline_mode<synchronous>, transform_indices = @transform_4, window_bounds = array<i64: 4, 1>}, {pipeline_mode = #tpu.pipeline_mode<synchronous>, transform_indices = @transform_5, window_bounds = array<i64: 96, 27>}, {pipeline_mode = #tpu.pipeline_mode<synchronous>, transform_indices = @transform_6, window_bounds = array<i64: 3, 96>}, {transform_indices = @transform_7, window_bounds = array<i64: 8, 1024>}]} {
    %c0 = arith.constant 0 : index
    %c0_0 = arith.constant 0 : index
    %0 = vector.load %arg1[%c0, %c0_0] : memref<3x1024xf32, #tpu.memory_space<vmem>>, vector<3x1024xf32>
    %c0_1 = arith.constant 0 : index
    %c0_2 = arith.constant 0 : index
    %1 = vector.load %arg2[%c0_1, %c0_2] : memref<64x27xf32, #tpu.memory_space<vmem>>, vector<64x27xf32>
    %c0_3 = arith.constant 0 : index
    %c0_4 = arith.constant 0 : index
    %2 = vector.load %arg3[%c0_3, %c0_4] : memref<64x1xf32, #tpu.memory_space<vmem>>, vector<64x1xf32>
    %c0_5 = arith.constant 0 : index
    %c0_6 = arith.constant 0 : index
    %3 = vector.load %arg4[%c0_5, %c0_6] : memref<4x64xf32, #tpu.memory_space<vmem>>, vector<4x64xf32>
    %c0_7 = arith.constant 0 : index
    %c0_8 = arith.constant 0 : index
    %4 = vector.load %arg5[%c0_7, %c0_8] : memref<4x1xf32, #tpu.memory_space<vmem>>, vector<4x1xf32>
    %c0_9 = arith.constant 0 : index
    %c0_10 = arith.constant 0 : index
    %5 = vector.load %arg6[%c0_9, %c0_10] : memref<96x27xf32, #tpu.memory_space<vmem>>, vector<96x27xf32>
    %c0_11 = arith.constant 0 : index
    %c0_12 = arith.constant 0 : index
    %6 = vector.load %arg7[%c0_11, %c0_12] : memref<3x96xf32, #tpu.memory_space<vmem>>, vector<3x96xf32>
    %7 = math.sin %0 : vector<3x1024xf32>
    %8 = math.cos %0 : vector<3x1024xf32>
    %cst = arith.constant 2.000000e+00 : f32
    %9 = vector.broadcast %cst : f32 to vector<3x1024xf32>
    %10 = arith.mulf %9, %7 : vector<3x1024xf32>
    %11 = arith.mulf %10, %8 : vector<3x1024xf32>
    %12 = arith.mulf %8, %8 : vector<3x1024xf32>
    %13 = arith.mulf %7, %7 : vector<3x1024xf32>
    %14 = arith.subf %12, %13 : vector<3x1024xf32>
    %cst_13 = arith.constant 2.000000e+00 : f32
    %15 = vector.broadcast %cst_13 : f32 to vector<3x1024xf32>
    %16 = arith.mulf %15, %11 : vector<3x1024xf32>
    %17 = arith.mulf %16, %14 : vector<3x1024xf32>
    %18 = arith.mulf %14, %14 : vector<3x1024xf32>
    %19 = arith.mulf %11, %11 : vector<3x1024xf32>
    %20 = arith.subf %18, %19 : vector<3x1024xf32>
    %cst_14 = arith.constant 2.000000e+00 : f32
    %21 = vector.broadcast %cst_14 : f32 to vector<3x1024xf32>
    %22 = arith.mulf %21, %17 : vector<3x1024xf32>
    %23 = arith.mulf %22, %20 : vector<3x1024xf32>
    %24 = arith.mulf %20, %20 : vector<3x1024xf32>
    %25 = arith.mulf %17, %17 : vector<3x1024xf32>
    %26 = arith.subf %24, %25 : vector<3x1024xf32>
    %27 = tpu.concatenate %0, %7, %8, %11, %14, %17, %20, %23, %26 in 0 : vector<3x1024xf32>, vector<3x1024xf32>, vector<3x1024xf32>, vector<3x1024xf32>, vector<3x1024xf32>, vector<3x1024xf32>, vector<3x1024xf32>, vector<3x1024xf32>, vector<3x1024xf32> -> vector<27x1024xf32>
    %cst_15 = arith.constant dense<0.000000e+00> : vector<64x1024xf32>
    %28 = tpu.matmul %1, %27, %cst_15 {dimension_numbers = #tpu.dot_dimension_numbers<[1], [0], [0], [1], [0, 0, 1, 1], [], []>} : vector<64x27xf32>, vector<27x1024xf32>, vector<64x1024xf32> -> vector<64x1024xf32>
    %29 = vector.broadcast %2 : vector<64x1xf32> to vector<64x1024xf32>
    %30 = arith.addf %28, %29 : vector<64x1024xf32>
    %cst_16 = arith.constant 0.000000e+00 : f32
    %31 = vector.broadcast %cst_16 : f32 to vector<64x1024xf32>
    %32 = arith.maximumf %30, %31 : vector<64x1024xf32>
    %cst_17 = arith.constant dense<0.000000e+00> : vector<4x1024xf32>
    %33 = tpu.matmul %3, %32, %cst_17 {dimension_numbers = #tpu.dot_dimension_numbers<[1], [0], [0], [1], [0, 0, 1, 1], [], []>} : vector<4x64xf32>, vector<64x1024xf32>, vector<4x1024xf32> -> vector<4x1024xf32>
    %34 = vector.broadcast %4 : vector<4x1xf32> to vector<4x1024xf32>
    %35 = arith.addf %33, %34 : vector<4x1024xf32>
    %36 = arith.mulf %0, %0 : vector<3x1024xf32>
    %cst_18 = arith.constant dense<0.000000e+00> : vector<1024xf32>
    %37 = vector.multi_reduction <add>, %36, %cst_18 [0] : vector<3x1024xf32> to vector<1024xf32>
    %38 = vector.shape_cast %37 : vector<1024xf32> to vector<1x1024xf32>
    %cst_19 = arith.constant 0.000000e+00 : f32
    %39 = vector.broadcast %cst_19 : f32 to vector<1x1024xf32>
    %40 = arith.subf %39, %38 : vector<1x1024xf32>
    %cst_20 = arith.constant 2.000000e+00 : f32
    %41 = vector.broadcast %cst_20 : f32 to vector<1x1024xf32>
    %42 = arith.mulf %40, %41 : vector<1x1024xf32>
    %43 = math.exp %42 : vector<1x1024xf32>
    %cst_21 = arith.constant 1.000000e+01 : f32
    %44 = vector.broadcast %cst_21 : f32 to vector<1x1024xf32>
    %45 = arith.mulf %44, %43 : vector<1x1024xf32>
    %46 = vector.extract_strided_slice %35 {offsets = [0, 0], sizes = [1, 1024], strides = [1, 1]} : vector<4x1024xf32> to vector<1x1024xf32>
    %47 = arith.addf %46, %45 : vector<1x1024xf32>
    %48 = math.exp %47 : vector<1x1024xf32>
    %49 = vector.extract_strided_slice %35 {offsets = [1, 0], sizes = [3, 1024], strides = [1, 1]} : vector<4x1024xf32> to vector<3x1024xf32>
    %50 = arith.negf %49 : vector<3x1024xf32>
    %51 = math.exp %50 : vector<3x1024xf32>
    %cst_22 = arith.constant 1.000000e+00 : f32
    %52 = vector.broadcast %cst_22 : f32 to vector<3x1024xf32>
    %53 = arith.addf %52, %51 : vector<3x1024xf32>
    %54 = arith.divf %52, %53 : vector<3x1024xf32>
    %cst_23 = arith.constant 0.000000e+00 : f32
    %55 = vector.broadcast %cst_23 : f32 to vector<3x1024xf32>
    %cst_24 = arith.constant 0.00999999977 : f32
    %56 = vector.broadcast %cst_24 : f32 to vector<3x1024xf32>
    %cst_25 = arith.constant -4.9999584E-5 : f32
    %57 = vector.broadcast %cst_25 : f32 to vector<3x1024xf32>
    %58 = arith.mulf %7, %57 : vector<3x1024xf32>
    %cst_26 = arith.constant -4.9999584E-5 : f32
    %59 = vector.broadcast %cst_26 : f32 to vector<3x1024xf32>
    %60 = arith.mulf %8, %59 : vector<3x1024xf32>
    %cst_27 = arith.constant 0.00999983306 : f32
    %61 = vector.broadcast %cst_27 : f32 to vector<3x1024xf32>
    %62 = arith.mulf %8, %61 : vector<3x1024xf32>
    %cst_28 = arith.constant 0.000000e+00 : f32
    %63 = vector.broadcast %cst_28 : f32 to vector<3x1024xf32>
    %64 = arith.subf %63, %7 : vector<3x1024xf32>
    %cst_29 = arith.constant 0.00999983306 : f32
    %65 = vector.broadcast %cst_29 : f32 to vector<3x1024xf32>
    %66 = arith.mulf %64, %65 : vector<3x1024xf32>
    %cst_30 = arith.constant -1.9999333E-4 : f32
    %67 = vector.broadcast %cst_30 : f32 to vector<3x1024xf32>
    %68 = arith.mulf %11, %67 : vector<3x1024xf32>
    %cst_31 = arith.constant -1.9999333E-4 : f32
    %69 = vector.broadcast %cst_31 : f32 to vector<3x1024xf32>
    %70 = arith.mulf %14, %69 : vector<3x1024xf32>
    %cst_32 = arith.constant 0.0199986659 : f32
    %71 = vector.broadcast %cst_32 : f32 to vector<3x1024xf32>
    %72 = arith.mulf %14, %71 : vector<3x1024xf32>
    %cst_33 = arith.constant 0.000000e+00 : f32
    %73 = vector.broadcast %cst_33 : f32 to vector<3x1024xf32>
    %74 = arith.subf %73, %11 : vector<3x1024xf32>
    %cst_34 = arith.constant 0.0199986659 : f32
    %75 = vector.broadcast %cst_34 : f32 to vector<3x1024xf32>
    %76 = arith.mulf %74, %75 : vector<3x1024xf32>
    %cst_35 = arith.constant -7.99893343E-4 : f32
    %77 = vector.broadcast %cst_35 : f32 to vector<3x1024xf32>
    %78 = arith.mulf %17, %77 : vector<3x1024xf32>
    %cst_36 = arith.constant -7.99893343E-4 : f32
    %79 = vector.broadcast %cst_36 : f32 to vector<3x1024xf32>
    %80 = arith.mulf %20, %79 : vector<3x1024xf32>
    %cst_37 = arith.constant 0.0399893336 : f32
    %81 = vector.broadcast %cst_37 : f32 to vector<3x1024xf32>
    %82 = arith.mulf %20, %81 : vector<3x1024xf32>
    %cst_38 = arith.constant 0.000000e+00 : f32
    %83 = vector.broadcast %cst_38 : f32 to vector<3x1024xf32>
    %84 = arith.subf %83, %17 : vector<3x1024xf32>
    %cst_39 = arith.constant 0.0399893336 : f32
    %85 = vector.broadcast %cst_39 : f32 to vector<3x1024xf32>
    %86 = arith.mulf %84, %85 : vector<3x1024xf32>
    %cst_40 = arith.constant -0.00319829374 : f32
    %87 = vector.broadcast %cst_40 : f32 to vector<3x1024xf32>
    %88 = arith.mulf %23, %87 : vector<3x1024xf32>
    %cst_41 = arith.constant -0.00319829374 : f32
    %89 = vector.broadcast %cst_41 : f32 to vector<3x1024xf32>
    %90 = arith.mulf %26, %89 : vector<3x1024xf32>
    %cst_42 = arith.constant 0.0799146965 : f32
    %91 = vector.broadcast %cst_42 : f32 to vector<3x1024xf32>
    %92 = arith.mulf %26, %91 : vector<3x1024xf32>
    %cst_43 = arith.constant 0.000000e+00 : f32
    %93 = vector.broadcast %cst_43 : f32 to vector<3x1024xf32>
    %94 = arith.subf %93, %23 : vector<3x1024xf32>
    %cst_44 = arith.constant 0.0799146965 : f32
    %95 = vector.broadcast %cst_44 : f32 to vector<3x1024xf32>
    %96 = arith.mulf %94, %95 : vector<3x1024xf32>
    %97 = tpu.concatenate %55, %58, %60, %68, %70, %78, %80, %88, %90 in 0 : vector<3x1024xf32>, vector<3x1024xf32>, vector<3x1024xf32>, vector<3x1024xf32>, vector<3x1024xf32>, vector<3x1024xf32>, vector<3x1024xf32>, vector<3x1024xf32>, vector<3x1024xf32> -> vector<27x1024xf32>
    %98 = tpu.concatenate %56, %62, %66, %72, %76, %82, %86, %92, %96 in 0 : vector<3x1024xf32>, vector<3x1024xf32>, vector<3x1024xf32>, vector<3x1024xf32>, vector<3x1024xf32>, vector<3x1024xf32>, vector<3x1024xf32>, vector<3x1024xf32>, vector<3x1024xf32> -> vector<27x1024xf32>
    %cst_45 = arith.constant dense<0.000000e+00> : vector<96x1024xf32>
    %99 = tpu.matmul %5, %97, %cst_45 {dimension_numbers = #tpu.dot_dimension_numbers<[1], [0], [0], [1], [0, 0, 1, 1], [], []>} : vector<96x27xf32>, vector<27x1024xf32>, vector<96x1024xf32> -> vector<96x1024xf32>
    %cst_46 = arith.constant dense<0.000000e+00> : vector<96x1024xf32>
    %100 = tpu.matmul %5, %98, %cst_46 {dimension_numbers = #tpu.dot_dimension_numbers<[1], [0], [0], [1], [0, 0, 1, 1], [], []>} : vector<96x27xf32>, vector<27x1024xf32>, vector<96x1024xf32> -> vector<96x1024xf32>
    %101 = vector.extract_strided_slice %30 {offsets = [0, 0], sizes = [32, 1024], strides = [1, 1]} : vector<64x1024xf32> to vector<32x1024xf32>
    %102 = tpu.concatenate %101, %101, %101 in 0 : vector<32x1024xf32>, vector<32x1024xf32>, vector<32x1024xf32> -> vector<96x1024xf32>
    %103 = arith.addf %102, %99 : vector<96x1024xf32>
    %104 = arith.addf %103, %100 : vector<96x1024xf32>
    %cst_47 = arith.constant 0.000000e+00 : f32
    %105 = vector.broadcast %cst_47 : f32 to vector<96x1024xf32>
    %106 = arith.maximumf %104, %105 : vector<96x1024xf32>
    %107 = arith.addf %102, %99 : vector<96x1024xf32>
    %108 = arith.subf %107, %100 : vector<96x1024xf32>
    %cst_48 = arith.constant 0.000000e+00 : f32
    %109 = vector.broadcast %cst_48 : f32 to vector<96x1024xf32>
    %110 = arith.maximumf %108, %109 : vector<96x1024xf32>
    %111 = vector.extract_strided_slice %4 {offsets = [0, 0], sizes = [1, 1], strides = [1, 1]} : vector<4x1xf32> to vector<1x1xf32>
    %cst_49 = arith.constant dense<0.000000e+00> : vector<3x1024xf32>
    %112 = tpu.matmul %6, %106, %cst_49 {dimension_numbers = #tpu.dot_dimension_numbers<[1], [0], [0], [1], [0, 0, 1, 1], [], []>} : vector<3x96xf32>, vector<96x1024xf32>, vector<3x1024xf32> -> vector<3x1024xf32>
    %113 = vector.broadcast %111 : vector<1x1xf32> to vector<3x1024xf32>
    %114 = arith.addf %112, %113 : vector<3x1024xf32>
    %cst_50 = arith.constant dense<0.000000e+00> : vector<3x1024xf32>
    %115 = tpu.matmul %6, %110, %cst_50 {dimension_numbers = #tpu.dot_dimension_numbers<[1], [0], [0], [1], [0, 0, 1, 1], [], []>} : vector<3x96xf32>, vector<96x1024xf32>, vector<3x1024xf32> -> vector<3x1024xf32>
    %116 = vector.broadcast %111 : vector<1x1xf32> to vector<3x1024xf32>
    %117 = arith.addf %115, %116 : vector<3x1024xf32>
    %cst_51 = arith.constant 2.000000e-02 : f32
    %118 = vector.broadcast %cst_51 : f32 to vector<3x1024xf32>
    %119 = arith.mulf %118, %0 : vector<3x1024xf32>
    %120 = vector.broadcast %38 : vector<1x1024xf32> to vector<3x1024xf32>
    %121 = arith.addf %120, %119 : vector<3x1024xf32>
    %cst_52 = arith.constant 9.99999974E-5 : f32
    %122 = vector.broadcast %cst_52 : f32 to vector<3x1024xf32>
    %123 = arith.addf %121, %122 : vector<3x1024xf32>
    %cst_53 = arith.constant 2.000000e-02 : f32
    %124 = vector.broadcast %cst_53 : f32 to vector<3x1024xf32>
    %125 = arith.mulf %124, %0 : vector<3x1024xf32>
    %126 = vector.broadcast %38 : vector<1x1024xf32> to vector<3x1024xf32>
    %127 = arith.subf %126, %125 : vector<3x1024xf32>
    %cst_54 = arith.constant 9.99999974E-5 : f32
    %128 = vector.broadcast %cst_54 : f32 to vector<3x1024xf32>
    %129 = arith.addf %127, %128 : vector<3x1024xf32>
    %cst_55 = arith.constant 0.000000e+00 : f32
    %130 = vector.broadcast %cst_55 : f32 to vector<3x1024xf32>
    %131 = arith.subf %130, %123 : vector<3x1024xf32>
    %cst_56 = arith.constant 2.000000e+00 : f32
    %132 = vector.broadcast %cst_56 : f32 to vector<3x1024xf32>
    %133 = arith.mulf %131, %132 : vector<3x1024xf32>
    %134 = math.exp %133 : vector<3x1024xf32>
    %cst_57 = arith.constant 1.000000e+01 : f32
    %135 = vector.broadcast %cst_57 : f32 to vector<3x1024xf32>
    %136 = arith.mulf %135, %134 : vector<3x1024xf32>
    %137 = arith.addf %114, %136 : vector<3x1024xf32>
    %138 = math.exp %137 : vector<3x1024xf32>
    %cst_58 = arith.constant 0.000000e+00 : f32
    %139 = vector.broadcast %cst_58 : f32 to vector<3x1024xf32>
    %140 = arith.subf %139, %129 : vector<3x1024xf32>
    %cst_59 = arith.constant 2.000000e+00 : f32
    %141 = vector.broadcast %cst_59 : f32 to vector<3x1024xf32>
    %142 = arith.mulf %140, %141 : vector<3x1024xf32>
    %143 = math.exp %142 : vector<3x1024xf32>
    %cst_60 = arith.constant 1.000000e+01 : f32
    %144 = vector.broadcast %cst_60 : f32 to vector<3x1024xf32>
    %145 = arith.mulf %144, %143 : vector<3x1024xf32>
    %146 = arith.addf %117, %145 : vector<3x1024xf32>
    %147 = math.exp %146 : vector<3x1024xf32>
    %148 = arith.subf %138, %147 : vector<3x1024xf32>
    %cst_61 = arith.constant -5.000000e+01 : f32
    %149 = vector.broadcast %cst_61 : f32 to vector<3x1024xf32>
    %150 = arith.mulf %149, %148 : vector<3x1024xf32>
    %151 = arith.mulf %150, %150 : vector<3x1024xf32>
    %cst_62 = arith.constant dense<0.000000e+00> : vector<1024xf32>
    %152 = vector.multi_reduction <add>, %151, %cst_62 [0] : vector<3x1024xf32> to vector<1024xf32>
    %153 = vector.shape_cast %152 : vector<1024xf32> to vector<1x1024xf32>
    %cst_63 = arith.constant 1.000000e-24 : f32
    %154 = vector.broadcast %cst_63 : f32 to vector<1x1024xf32>
    %155 = arith.maximumf %153, %154 : vector<1x1024xf32>
    %156 = math.rsqrt %155 : vector<1x1024xf32>
    %157 = vector.broadcast %156 : vector<1x1024xf32> to vector<3x1024xf32>
    %158 = arith.mulf %150, %157 : vector<3x1024xf32>
    %159 = arith.cmpf one, %158, %158 : vector<3x1024xf32>
    %cst_64 = arith.constant 0.000000e+00 : f32
    %160 = vector.broadcast %cst_64 : f32 to vector<3x1024xf32>
    %161 = arith.select %159, %160, %158 : vector<3x1024xi1>, vector<3x1024xf32>
    %cst_65 = arith.constant 0x7F800000 : f32
    %162 = vector.broadcast %cst_65 : f32 to vector<3x1024xf32>
    %163 = arith.cmpf oeq, %161, %162 : vector<3x1024xf32>
    %cst_66 = arith.constant 3.40282347E+38 : f32
    %164 = vector.broadcast %cst_66 : f32 to vector<3x1024xf32>
    %165 = arith.select %163, %164, %161 : vector<3x1024xi1>, vector<3x1024xf32>
    %cst_67 = arith.constant 0xFF800000 : f32
    %166 = vector.broadcast %cst_67 : f32 to vector<3x1024xf32>
    %167 = arith.cmpf oeq, %165, %166 : vector<3x1024xf32>
    %cst_68 = arith.constant -3.40282347E+38 : f32
    %168 = vector.broadcast %cst_68 : f32 to vector<3x1024xf32>
    %169 = arith.select %167, %168, %165 : vector<3x1024xi1>, vector<3x1024xf32>
    %cst_69 = arith.constant 0.000000e+00 : f32
    %170 = vector.broadcast %cst_69 : f32 to vector<1x1024xf32>
    %171 = tpu.concatenate %48, %54, %169, %170 in 0 : vector<1x1024xf32>, vector<3x1024xf32>, vector<3x1024xf32>, vector<1x1024xf32> -> vector<8x1024xf32>
    %c0_70 = arith.constant 0 : index
    %c0_71 = arith.constant 0 : index
    %172 = vector.load %arg8[%c0_70, %c0_71] : memref<8x1024xf32, #tpu.memory_space<vmem>>, vector<8x1024xf32>
    tpu.vector_store %arg8[%c0_70, %c0_71], %171 {strides = array<i32>} : memref<8x1024xf32, #tpu.memory_space<vmem>>, vector<8x1024xf32>,
    return
  }
  func.func @transform_0(%arg0: i32) -> (i32, i32) {
    %c0_i32 = arith.constant 0 : i32
    %c0_i32_0 = arith.constant 0 : i32
    return %c0_i32, %arg0 : i32, i32
  }
  func.func @transform_1(%arg0: i32) -> (i32, i32) {
    %c0_i32 = arith.constant 0 : i32
    %c0_i32_0 = arith.constant 0 : i32
    %c0_i32_1 = arith.constant 0 : i32
    return %c0_i32, %c0_i32_0 : i32, i32
  }
  func.func @transform_2(%arg0: i32) -> (i32, i32) {
    %c0_i32 = arith.constant 0 : i32
    %c0_i32_0 = arith.constant 0 : i32
    %c0_i32_1 = arith.constant 0 : i32
    return %c0_i32, %c0_i32_0 : i32, i32
  }
  func.func @transform_3(%arg0: i32) -> (i32, i32) {
    %c0_i32 = arith.constant 0 : i32
    %c0_i32_0 = arith.constant 0 : i32
    %c0_i32_1 = arith.constant 0 : i32
    return %c0_i32, %c0_i32_0 : i32, i32
  }
  func.func @transform_4(%arg0: i32) -> (i32, i32) {
    %c0_i32 = arith.constant 0 : i32
    %c0_i32_0 = arith.constant 0 : i32
    %c0_i32_1 = arith.constant 0 : i32
    return %c0_i32, %c0_i32_0 : i32, i32
  }
  func.func @transform_5(%arg0: i32) -> (i32, i32) {
    %c0_i32 = arith.constant 0 : i32
    %c0_i32_0 = arith.constant 0 : i32
    %c0_i32_1 = arith.constant 0 : i32
    return %c0_i32, %c0_i32_0 : i32, i32
  }
  func.func @transform_6(%arg0: i32) -> (i32, i32) {
    %c0_i32 = arith.constant 0 : i32
    %c0_i32_0 = arith.constant 0 : i32
    %c0_i32_1 = arith.constant 0 : i32
    return %c0_i32, %c0_i32_0 : i32, i32
  }
  func.func @transform_7(%arg0: i32) -> (i32, i32) {
    %c0_i32 = arith.constant 0 : i32
    %c0_i32_0 = arith.constant 0 : i32
    return %c0_i32, %arg0 : i32, i32
  }
}

</mosaic_0001>

<llo_original>
// kernel: nerf_forward.1
$region0: #{nerf_forward.1}
  #allocation0 [shape = 'u32[]', space=smem, size = 0x4, offset = 0x4, fixed_abs, tag = 'smem constant byte address 0x4 - core index']
  #allocation1 [shape = 'u32[72,128]{1,0:T(1,128)}', space=vmem, size = 0x9000, scoped, tag = 'internal scratch']
  %s0 = inlined_call_operand.vmem [shape: f32[3,2000], index: 0, kind: input, shape index: {}]
  %s1 = inlined_call_operand.vmem [shape: f32[64,27], index: 1, kind: input, shape index: {}]
  %s2 = inlined_call_operand.vmem [shape: f32[64,1], index: 2, kind: input, shape index: {}]
  %s3 = inlined_call_operand.vmem [shape: f32[4,64], index: 3, kind: input, shape index: {}]
  %s4 = inlined_call_operand.vmem [shape: f32[4,1], index: 4, kind: input, shape index: {}]
  %s5 = inlined_call_operand.vmem [shape: f32[96,27], index: 5, kind: input, shape index: {}]
  %s6 = inlined_call_operand.vmem [shape: f32[3,96], index: 6, kind: input, shape index: {}]
  %s7 = inlined_call_operand.vmem [shape: f32[8,2000], index: 7, kind: output, shape index: {}]
  %s8 = sld [smem:[#allocation0]]
  $region61: #{nerf_forward.1} parent=0
    _
  %s10 = ssub.s32 1, %s8
  %s11 = scalar_select 0, %s10, %s8
  loop: start=0, step=1, limit=4
  $region2: #{nerf_forward.1} parent=0 // loop_pre_header
    _
  $region3: #{nerf_forward.1} parent=0 // loop_header
    %s13 = sphi 0, %s17
    %p14 = scmp.ge.s32.totalorder %s13, 4
    %s23 = sphi 0, %s25
    %s26 = sphi 0, %s23
    %s27 = sphi 0, %s26
    %s43 = sphi 0, %s27
    %s47 = sphi 0, %s47
    %s49 = sphi 0, %s47
    %s50 = sphi 0, %s49
    %s64 = sphi 0, %s50
    %s68 = sphi 0, %s68
    %s70 = sphi 0, %s68
    %s71 = sphi 0, %s70
    %s85 = sphi 0, %s71
    %s89 = sphi 0, %s89
    %s91 = sphi 0, %s89
    %s92 = sphi 0, %s91
    %s106 = sphi 0, %s92
    %s110 = sphi 0, %s110
    %s112 = sphi 0, %s110
    %s113 = sphi 0, %s112
    %s127 = sphi 0, %s113
    %s131 = sphi 0, %s131
    %s133 = sphi 0, %s131
    %s134 = sphi 0, %s133
    %s148 = sphi 0, %s134
    %s152 = sphi 0, %s152
    %s154 = sphi 0, %s152
    %s155 = sphi 0, %s154
    %s169 = sphi 0, %s155
    %s175 = sphi 0, %s177
    %s178 = sphi 0, %s175
    %s179 = sphi 0, %s178
    %s195 = sphi 0, %s179
  $region4: #{nerf_forward.1} parent=0 // loop_header_branch
    %16 = sbr.rel (%p14) target = $region8
  $region5: #{nerf_forward.1} parent=0 // loop_body
    %s18 = ssub.s32 %s13, 1
    %s19 = ssub.s32 %s13, 2
    %s20 = sadd.s32 %s13, 1
    %s21 = ssub.s32 %s13, %s20
    %p22 = scmp.eq.s32.totalorder %s21, 0
    %s24 = sadd.s32 %s23, 1
    %s25 = scalar_select %p22, %s23, %s24
    %p28 = pneg %p22
    %p29 = scmp.eq.s32.totalorder %s13, 1
    %p30 = por %p28, %p29
    %p31 = scmp.ne.s32.totalorder %s23, %s26
    %p32 = scmp.eq.s32.totalorder %s13, 0
    %p33 = por %p31, %p32
    %p34 = scmp.ne.s32.totalorder %s23, %s26
    %p35 = scmp.eq.s32.totalorder %s18, 1
    %p36 = por %p34, %p35
    %p37 = scmp.ne.s32.totalorder %s26, %s27
    %p38 = scmp.eq.s32.totalorder %s18, 0
    %p39 = por %p37, %p38
    %p40 = scmp.ne.s32.totalorder %s26, %s27
    %p41 = scmp.eq.s32.totalorder %s19, 1
    %p42 = por %p40, %p41
    %p44 = scmp.ne.s32.totalorder %s27, %s43
    %p45 = scmp.eq.s32.totalorder %s19, 0
    %p46 = por %p44, %p45
    %s48 = sadd.s32 %s47, 1
    %p51 = scmp.eq.s32.totalorder %s13, 1
    %p52 = scmp.ne.s32.totalorder %s47, %s49
    %p53 = scmp.eq.s32.totalorder %s13, 0
    %p54 = por %p52, %p53
    %p55 = scmp.ne.s32.totalorder %s47, %s49
    %p56 = scmp.eq.s32.totalorder %s18, 1
    %p57 = por %p55, %p56
    %p58 = scmp.ne.s32.totalorder %s49, %s50
    %p59 = scmp.eq.s32.totalorder %s18, 0
    %p60 = por %p58, %p59
    %p61 = scmp.ne.s32.totalorder %s49, %s50
    %p62 = scmp.eq.s32.totalorder %s19, 1
    %p63 = por %p61, %p62
    %p65 = scmp.ne.s32.totalorder %s50, %s64
    %p66 = scmp.eq.s32.totalorder %s19, 0
    %p67 = por %p65, %p66
    %s69 = sadd.s32 %s68, 1
    %p72 = scmp.eq.s32.totalorder %s13, 1
    %p73 = scmp.ne.s32.totalorder %s68, %s70
    %p74 = scmp.eq.s32.totalorder %s13, 0
    %p75 = por %p73, %p74
    %p76 = scmp.ne.s32.totalorder %s68, %s70
    %p77 = scmp.eq.s32.totalorder %s18, 1
    %p78 = por %p76, %p77
    %p79 = scmp.ne.s32.totalorder %s70, %s71
    %p80 = scmp.eq.s32.totalorder %s18, 0
    %p81 = por %p79, %p80
    %p82 = scmp.ne.s32.totalorder %s70, %s71
    %p83 = scmp.eq.s32.totalorder %s19, 1
    %p84 = por %p82, %p83
    %p86 = scmp.ne.s32.totalorder %s71, %s85
    %p87 = scmp.eq.s32.totalorder %s19, 0
    %p88 = por %p86, %p87
    %s90 = sadd.s32 %s89, 1
    %p93 = scmp.eq.s32.totalorder %s13, 1
    %p94 = scmp.ne.s32.totalorder %s89, %s91
    %p95 = scmp.eq.s32.totalorder %s13, 0
    %p96 = por %p94, %p95
    %p97 = scmp.ne.s32.totalorder %s89, %s91
    %p98 = scmp.eq.s32.totalorder %s18, 1
    %p99 = por %p97, %p98
    %p100 = scmp.ne.s32.totalorder %s91, %s92
    %p101 = scmp.eq.s32.totalorder %s18, 0
    %p102 = por %p100, %p101
    %p103 = scmp.ne.s32.totalorder %s91, %s92
    %p104 = scmp.eq.s32.totalorder %s19, 1
    %p105 = por %p103, %p104
    %p107 = scmp.ne.s32.totalorder %s92, %s106
    %p108 = scmp.eq.s32.totalorder %s19, 0
    %p109 = por %p107, %p108
    %s111 = sadd.s32 %s110, 1
    %p114 = scmp.eq.s32.totalorder %s13, 1
    %p115 = scmp.ne.s32.totalorder %s110, %s112
    %p116 = scmp.eq.s32.totalorder %s13, 0
    %p117 = por %p115, %p116
    %p118 = scmp.ne.s32.totalorder %s110, %s112
    %p119 = scmp.eq.s32.totalorder %s18, 1
    %p120 = por %p118, %p119
    %p121 = scmp.ne.s32.totalorder %s112, %s113
    %p122 = scmp.eq.s32.totalorder %s18, 0
    %p123 = por %p121, %p122
    %p124 = scmp.ne.s32.totalorder %s112, %s113
    %p125 = scmp.eq.s32.totalorder %s19, 1
    %p126 = por %p124, %p125
    %p128 = scmp.ne.s32.totalorder %s113, %s127
    %p129 = scmp.eq.s32.totalorder %s19, 0
    %p130 = por %p128, %p129
    %s132 = sadd.s32 %s131, 1
    %p135 = scmp.eq.s32.totalorder %s13, 1
    %p136 = scmp.ne.s32.totalorder %s131, %s133
    %p137 = scmp.eq.s32.totalorder %s13, 0
    %p138 = por %p136, %p137
    %p139 = scmp.ne.s32.totalorder %s131, %s133
    %p140 = scmp.eq.s32.totalorder %s18, 1
    %p141 = por %p139, %p140
    %p142 = scmp.ne.s32.totalorder %s133, %s134
    %p143 = scmp.eq.s32.totalorder %s18, 0
    %p144 = por %p142, %p143
    %p145 = scmp.ne.s32.totalorder %s133, %s134
    %p146 = scmp.eq.s32.totalorder %s19, 1
    %p147 = por %p145, %p146
    %p149 = scmp.ne.s32.totalorder %s134, %s148
    %p150 = scmp.eq.s32.totalorder %s19, 0
    %p151 = por %p149, %p150
    %s153 = sadd.s32 %s152, 1
    %p156 = scmp.eq.s32.totalorder %s13, 1
    %p157 = scmp.ne.s32.totalorder %s152, %s154
    %p158 = scmp.eq.s32.totalorder %s13, 0
    %p159 = por %p157, %p158
    %p160 = scmp.ne.s32.totalorder %s152, %s154
    %p161 = scmp.eq.s32.totalorder %s18, 1
    %p162 = por %p160, %p161
    %p163 = scmp.ne.s32.totalorder %s154, %s155
    %p164 = scmp.eq.s32.totalorder %s18, 0
    %p165 = por %p163, %p164
    %p166 = scmp.ne.s32.totalorder %s154, %s155
    %p167 = scmp.eq.s32.totalorder %s19, 1
    %p168 = por %p166, %p167
    %p170 = scmp.ne.s32.totalorder %s155, %s169
    %p171 = scmp.eq.s32.totalorder %s19, 0
    %p172 = por %p170, %p171
    %s173 = ssub.s32 %s13, %s20
    %p174 = scmp.eq.s32.totalorder %s173, 0
    %s176 = sadd.s32 %s175, 1
    %s177 = scalar_select %p174, %s175, %s176
    %p180 = pneg %p174
    %p181 = scmp.eq.s32.totalorder %s13, 1
    %p182 = por %p180, %p181
    %p183 = scmp.ne.s32.totalorder %s175, %s178
    %p184 = scmp.eq.s32.totalorder %s13, 0
    %p185 = por %p183, %p184
    %p186 = scmp.ne.s32.totalorder %s175, %s178
    %p187 = scmp.eq.s32.totalorder %s18, 1
    %p188 = por %p186, %p187
    %p189 = scmp.ne.s32.totalorder %s178, %s179
    %p190 = scmp.eq.s32.totalorder %s18, 0
    %p191 = por %p189, %p190
    %p192 = scmp.ne.s32.totalorder %s178, %s179
    %p193 = scmp.eq.s32.totalorder %s19, 1
    %p194 = por %p192, %p193
    %p196 = scmp.ne.s32.totalorder %s179, %s195
    %p197 = scmp.eq.s32.totalorder %s19, 0
    %p198 = por %p196, %p197
    %p199 = scmp.le.s32.totalorder 1, %s13
    %p200 = scmp.lt.s32.totalorder %s13, 3
    %p201 = pnand %p199, %p200
    %p202 = pneg %p201
    // Predicated region
    $region9: #{nerf_forward.1} parent=5 // pred_check
      _
    $region10: #{nerf_forward.1} parent=5 // pred_check_branch
      %204 = sbr.rel (%p201) target = $region12
    $region11: #{nerf_forward.1} parent=5 // pred_region
      %s205 = ssub.s32 %s13, 1
      // Predicated region
      $region13: #{nerf_forward.1} parent=11 // pred_check
        %p206 = pneg %p60
      $region14: #{nerf_forward.1} parent=11 // pred_check_branch
        %208 = sbr.rel (%p206) target = $region16
      $region15: #{nerf_forward.1} parent=11 // pred_region
        _
      $region16: #{nerf_forward.1} parent=11 // pred_fallthru
        _
      // Predicated region
      $region17: #{nerf_forward.1} parent=11 // pred_check
        %p209 = pneg %p81
      $region18: #{nerf_forward.1} parent=11 // pred_check_branch
        %211 = sbr.rel (%p209) target = $region20
      $region19: #{nerf_forward.1} parent=11 // pred_region
        _
      $region20: #{nerf_forward.1} parent=11 // pred_fallthru
        _
      // Predicated region
      $region21: #{nerf_forward.1} parent=11 // pred_check
        %p212 = pneg %p102
      $region22: #{nerf_forward.1} parent=11 // pred_check_branch
        %214 = sbr.rel (%p212) target = $region24
      $region23: #{nerf_forward.1} parent=11 // pred_region
        _
      $region24: #{nerf_forward.1} parent=11 // pred_fallthru
        _
      // Predicated region
      $region25: #{nerf_forward.1} parent=11 // pred_check
        %p215 = pneg %p123
      $region26: #{nerf_forward.1} parent=11 // pred_check_branch
        %217 = sbr.rel (%p215) target = $region28
      $region27: #{nerf_forward.1} parent=11 // pred_region
        _
      $region28: #{nerf_forward.1} parent=11 // pred_fallthru
        _
      // Predicated region
      $region29: #{nerf_forward.1} parent=11 // pred_check
        %p218 = pneg %p144
      $region30: #{nerf_forward.1} parent=11 // pred_check_branch
        %220 = sbr.rel (%p218) target = $region32
      $region31: #{nerf_forward.1} parent=11 // pred_region
        _
      $region32: #{nerf_forward.1} parent=11 // pred_fallthru
        _
      // Predicated region
      $region33: #{nerf_forward.1} parent=11 // pred_check
        %p221 = pneg %p165
      $region34: #{nerf_forward.1} parent=11 // pred_check_branch
        %223 = sbr.rel (%p221) target = $region36
      $region35: #{nerf_forward.1} parent=11 // pred_region
        _
      $region36: #{nerf_forward.1} parent=11 // pred_fallthru
        _
    $region12: #{nerf_forward.1} parent=5 // pred_fallthru
      _
    %p224 = scmp.lt.s32.totalorder %s13, 2
    // Predicated region
    $region37: #{nerf_forward.1} parent=5 // pred_check
      %p225 = pneg %p224
    $region38: #{nerf_forward.1} parent=5 // pred_check_branch
      %227 = sbr.rel (%p225) target = $region40
    $region39: #{nerf_forward.1} parent=5 // pred_region
      // Predicated region
      $region41: #{nerf_forward.1} parent=39 // pred_check
        %p228 = pneg %p33
      $region42: #{nerf_forward.1} parent=39 // pred_check_branch
        %230 = sbr.rel (%p228) target = $region44
      $region43: #{nerf_forward.1} parent=39 // pred_region
        %s231 = smul.u32 8, %s13
        %p232 = scmp.lt.s32.totalorder %s231, 15
        %s233 = scalar_select %p232, %s231, 15
        %s234 = smul.addr %s233, 4
        %s235 = scalar_lea.vmem %s0, %s234
        %s236 = smul.u32 8, %s13
      $region44: #{nerf_forward.1} parent=39 // pred_fallthru
        _
    $region40: #{nerf_forward.1} parent=5 // pred_fallthru
      _
    %p237 = scmp.le.s32.totalorder 1, %s13
    %p238 = scmp.lt.s32.totalorder %s13, 3
    %p239 = pnand %p237, %p238
    %p240 = pneg %p239
    // Predicated region
    $region45: #{nerf_forward.1} parent=5 // pred_check
      _
    $region46: #{nerf_forward.1} parent=5 // pred_check_branch
      %242 = sbr.rel (%p239) target = $region48
    $region47: #{nerf_forward.1} parent=5 // pred_region
      %s243 = ssub.s32 %s13, 1
      %s244 = smul.u32 8, %s18
      %p245 = scmp.lt.s32.totalorder %s244, 15
      %s246 = scalar_select %p245, %s244, 15
      %s247 = smul.addr %s246, 4
      %s248 = scalar_lea.vmem %s0, %s247
      %p249 = pneg %p39
      %p250 = pneg %p36
      %p251 = pneg %p60
      %p252 = pneg %p57
      %p253 = pneg %p81
      %p254 = pneg %p78
      %p255 = pneg %p102
      %p256 = pneg %p99
      %p257 = pneg %p123
      %p258 = pneg %p120
      %p259 = pneg %p144
      %p260 = pneg %p141
      %p261 = pneg %p165
      %p262 = pneg %p162
      %p263 = pneg %p191
      %p264 = pneg %p188
      %s265 = smul.u32 8, %s18
      %p266 = scmp.lt.s32.totalorder %s265, 15
      %s267 = scalar_select %p266, %s265, 15
      %s268 = smul.addr %s267, 8
      %s269 = scalar_lea.vmem %s7, %s268
      %s270 = smul.u32 8, %s18
      %p271 = scmp.lt.s32.totalorder %s270, 15
      %s272 = scalar_select %p271, %s270, 15
      %s273 = smul.addr %s272, 4
      %s274 = scalar_lea.vmem %s0, %s273
      %s275 = smul.u32 8, %s18
      %s276 = smul.u32 8, %s18
      %p277 = scmp.lt.s32.totalorder %s276, 15
      %s278 = scalar_select %p277, %s276, 15
      %s279 = smul.addr %s278, 8
      %s280 = scalar_lea.vmem %s7, %s279
      %s281 = smul.u32 8, %s18
      %v282 = vld [vmem:[%s274] sm:$0x77]
      %v283 = vld [vmem:[%s274 + $0x8] sm:$0x77]
      %v284 = vld [vmem:[%s274 + $0x10] sm:$0x77]
      %v285 = vld [vmem:[%s274 + $0x18] sm:$0x77]
      %v286 = vld [vmem:[%s1] sm:$0xff]
      %v287 = vld [vmem:[%s1 + $0x8] sm:$0xff]
      %v288 = vld [vmem:[%s1 + $0x10] sm:$0xff]
      %v289 = vld [vmem:[%s1 + $0x18] sm:$0xff]
      %v290 = vld [vmem:[%s1 + $0x20] sm:$0xff]
      %v291 = vld [vmem:[%s1 + $0x28] sm:$0xff]
      %v292 = vld [vmem:[%s1 + $0x30] sm:$0xff]
      %v293 = vld [vmem:[%s1 + $0x38] sm:$0xff]
      %v294 = vld [vmem:[%s2] sm:$0xff]
      %v295 = vld [vmem:[%s2 + $0x8] sm:$0xff]
      %v296 = vld [vmem:[%s2 + $0x10] sm:$0xff]
      %v297 = vld [vmem:[%s2 + $0x18] sm:$0xff]
      %v298 = vld [vmem:[%s2 + $0x20] sm:$0xff]
      %v299 = vld [vmem:[%s2 + $0x28] sm:$0xff]
      %v300 = vld [vmem:[%s2 + $0x30] sm:$0xff]
      %v301 = vld [vmem:[%s2 + $0x38] sm:$0xff]
      %v302 = vld [vmem:[%s3] sm:$0xf]
      %v303 = vld [vmem:[%s4] sm:$0xf]
      %v304 = vld [vmem:[%s5] sm:$0xff]
      %v305 = vld [vmem:[%s5 + $0x8] sm:$0xff]
      %v306 = vld [vmem:[%s5 + $0x10] sm:$0xff]
      %v307 = vld [vmem:[%s5 + $0x18] sm:$0xff]
      %v308 = vld [vmem:[%s5 + $0x20] sm:$0xff]
      %v309 = vld [vmem:[%s5 + $0x28] sm:$0xff]
      %v310 = vld [vmem:[%s5 + $0x30] sm:$0xff]
      %v311 = vld [vmem:[%s5 + $0x38] sm:$0xff]
      %v312 = vld [vmem:[%s5 + $0x40] sm:$0xff]
      %v313 = vld [vmem:[%s5 + $0x48] sm:$0xff]
      %v314 = vld [vmem:[%s5 + $0x50] sm:$0xff]
      %v315 = vld [vmem:[%s5 + $0x58] sm:$0xff]
      %v316 = vld [vmem:[%s6] sm:$0x7]
      %v317 = vand.u32 2147483647, %v282
      %vm318 = vcmp.le.f32.partialorder %v317, 0.7853982
      %vm319 = vcmp.lt.s32.totalorder %v282, 0
      %v320 = vand.u32 %v282, 2139095040
      %v321 = vshrl.u32 %v320, 23
      %v322 = vsub.s32 %v321, 127
      %v323 = vand.u32 2147483647, %v282
      %v324 = vand.u32 %v323, 8388607
      %v325 = vor.u32 %v324, 8388608
      %v326 = vsub.s32 0, %v325
      %v327 = vadd.s32 %v322, 1
      %vm328 = vcmp.gt.s32.totalorder %v327, 0
      %v329 = vsel %vm328, %v327, 0
      %v330 = vshrl.u32 %v329, 5
      %v331 = vand.u32 %v329, 31
      %v332 = vsub.s32 32, %v331
      %v333 = vshrl.u32 683565275, %v332
      %v334 = vshll.u32 683565275, %v331
      %v335 = vshrl.u32 2475754826, %v332
      %v336 = vor.u32 %v334, %v335
      %v337 = vshll.u32 2475754826, %v331
      %v338 = vshrl.u32 2131351028, %v332
      %v339 = vor.u32 %v337, %v338
      %v340 = vshll.u32 2131351028, %v331
      %v341 = vshrl.u32 2102212464, %v332
      %v342 = vor.u32 %v340, %v341
      %v343 = vshll.u32 2102212464, %v331
      %v344 = vshrl.u32 920167782, %v332
      %v345 = vor.u32 %v343, %v344
      %v346 = vshll.u32 920167782, %v331
      %v347 = vshrl.u32 1326507024, %v332
      %v348 = vor.u32 %v346, %v347
      %vm349 = vcmp.lt.s32.totalorder %v330, 1
      %vm350 = vcmp.lt.s32.totalorder %v330, 2
      %vm351 = vcmp.lt.s32.totalorder %v330, 3
      %vm352 = vcmp.lt.s32.totalorder %v330, 4
      %v353 = vsel %vm349, %v333, %v336
      %v354 = vsel %vm352, %v342, 2102212464
      %v355 = vsel %vm351, %v339, %v354
      %v356 = vsel %vm350, %v353, %v355
      %v357 = vsel %vm349, %v336, %v339
      %v358 = vsel %vm352, %v345, 920167782
      %v359 = vsel %vm351, %v342, %v358
      %v360 = vsel %vm350, %v357, %v359
      %v361 = vsel %vm349, %v339, %v342
      %v362 = vsel %vm352, %v348, 1326507024
      %v363 = vsel %vm351, %v345, %v362
      %v364 = vsel %vm350, %v361, %v363
      %v365 = vshll.u32 %v325, 8
      %v366 = vand.u32 %v365, 65535
      %v367 = vshrl.u32 %v365, 16
      %v368 = vand.u32 %v364, 65535
      %v369 = vshrl.u32 %v364, 16
      %v370 = vmul.u32 %v366, %v368
      %v371 = vmul.u32 %v366, %v369
      %v372 = vmul.u32 %v367, %v368
      %v373 = vmul.u32 %v367, %v369
      %v374 = vshll.u32 %v371, 16
      %v375 = vshrl.u32 %v371, 16
      %v376 = vshll.u32 %v372, 16
      %v377 = vshrl.u32 %v372, 16
      %vm378 = vc.u32 %v370, %v374
      %v379 = vsel %vm378, 1, 0
      %v380 = vadd.s32 %v370, %v374
      %v381 = vadd.s32 %v373, %v379
      %vm382 = vc.u32 %v380, %v376
      %v383 = vsel %vm382, 1, 0
      %v384 = vadd.s32 %v380, %v376
      %v385 = vadd.s32 %v381, %v383
      %v386 = vadd.s32 %v385, %v375
      %v387 = vadd.s32 %v386, %v377
      %v388 = vand.u32 %v365, 65535
      %v389 = vshrl.u32 %v365, 16
      %v390 = vand.u32 %v360, 65535
      %v391 = vshrl.u32 %v360, 16
      %v392 = vmul.u32 %v388, %v390
      %v393 = vmul.u32 %v388, %v391
      %v394 = vmul.u32 %v389, %v390
      %v395 = vmul.u32 %v389, %v391
      %v396 = vshll.u32 %v393, 16
      %v397 = vshrl.u32 %v393, 16
      %v398 = vshll.u32 %v394, 16
      %v399 = vshrl.u32 %v394, 16
      %vm400 = vc.u32 %v392, %v396
      %v401 = vsel %vm400, 1, 0
      %v402 = vadd.s32 %v392, %v396
      %v403 = vadd.s32 %v395, %v401
      %vm404 = vc.u32 %v402, %v398
      %v405 = vsel %vm404, 1, 0
      %v406 = vadd.s32 %v402, %v398
      %v407 = vadd.s32 %v403, %v405
      %v408 = vadd.s32 %v407, %v397
      %v409 = vadd.s32 %v408, %v399
      %v410 = vmul.u32 %v365, %v356
      %v411 = vadd.s32 %v387, %v406
      %vm412 = vc.u32 %v387, %v406
      %v413 = vadd.s32 %v409, 1
      %v414 = vsel %vm412, %v413, %v409
      %v415 = vadd.s32 %v410, %v414
      %v416 = vadd.s32 %v415, 536870912
      %v417 = vshrl.u32 %v416, 30
      %v418 = vshll.u32 %v417, 30
      %v419 = vsub.s32 %v415, %v418
      %vm420 = vcmp.lt.s32.totalorder %v419, 0
      %v421 = vsub.s32 0, %v419
      %v422 = vsel %vm420, %v421, %v419
      %v423 = vclz %v422
      %v424 = vsub.s32 %v423, 2
      %vm425 = vcmp.gt.s32.totalorder 0, %v424
      %v426 = vsel %vm425, 0, %v424
      %v427 = vsub.s32 32, %v426
      %v428 = vshll.u32 %v419, %v426
      %v429 = vshrl.u32 %v411, %v427
      %v430 = vor.u32 %v428, %v429
      %v431 = vsub.s32 4294967266, %v426
      %v432 = vadd.s32 %v431, 127
      %v433 = vshll.u32 %v432, 23
      %v434 = vor.u32 4788187, %v433
      %v435 = vand.u32 2147483647, %v434
      %v437 = vcvt.s32.f32 %v430
      %v438 = vmul.f32 %v437, %v435
      %v439 = vxor.u32 %v438, 2147483648
      %v440 = vsel %vm319, %v439, %v438
      %v441 = vsub.s32 4, %v417
      %v442 = vsel %vm319, %v441, %v417
      %v443 = vsel %vm318, %v282, %v440
      %v444 = vsel %vm318, 0, %v442
      %v445 = vmul.f32 %v443, %v443
      %v446 = vmul.f32 %v445, -0.001358992
      %v447 = vadd.f32 %v446, 0.041655596
      %v448 = vmul.f32 %v445, %v447
      %v449 = vadd.f32 %v448, -0.4999988
      %v450 = vmul.f32 %v445, %v449
      %v451 = vadd.f32 1.0, %v450
      %v452 = vmul.f32 %v443, %v443
      %v453 = vmul.f32 %v452, -0.00019511016
      %v454 = vadd.f32 %v453, 0.008332121
      %v455 = vmul.f32 %v452, %v454
      %v456 = vadd.f32 %v455, -0.16666654
      %v457 = vmul.f32 %v452, %v456
      %v458 = vadd.f32 %v457, 1.0
      %v459 = vmul.f32 %v458, %v443
      %vm460 = vweird.f32 %v282
      %v461 = vadd.s32 %v444, 3
      %v462 = vand.u32 %v461, 3
      %vm463 = vcmp.lt.s32.totalorder %v462, 2
      %vm464 = vcmp.eq.s32.totalorder %v462, 0
      %v465 = vxor.u32 %v459, 2147483648
      %v466 = vsel %vm464, %v451, %v465
      %vm467 = vcmp.eq.s32.totalorder %v462, 2
      %v468 = vxor.u32 %v451, 2147483648
      %v469 = vsel %vm467, %v468, %v459
      %v470 = vsel %vm463, %v466, %v469
      %v471 = vsel %vm460, nan, %v470
      %v472 = vand.u32 2147483647, %v283
      %vm473 = vcmp.le.f32.partialorder %v472, 0.7853982
      %vm474 = vcmp.lt.s32.totalorder %v283, 0
      %v475 = vand.u32 %v283, 2139095040
      %v476 = vshrl.u32 %v475, 23
      %v477 = vsub.s32 %v476, 127
      %v478 = vand.u32 2147483647, %v283
      %v479 = vand.u32 %v478, 8388607
      %v480 = vor.u32 %v479, 8388608
      %v481 = vsub.s32 0, %v480
      %v482 = vadd.s32 %v477, 1
      %vm483 = vcmp.gt.s32.totalorder %v482, 0
      %v484 = vsel %vm483, %v482, 0
      %v485 = vshrl.u32 %v484, 5
      %v486 = vand.u32 %v484, 31
      %v487 = vsub.s32 32, %v486
      %v488 = vshrl.u32 683565275, %v487
      %v489 = vshll.u32 683565275, %v486
      %v490 = vshrl.u32 2475754826, %v487
      %v491 = vor.u32 %v489, %v490
      %v492 = vshll.u32 2475754826, %v486
      %v493 = vshrl.u32 2131351028, %v487
      %v494 = vor.u32 %v492, %v493
      %v495 = vshll.u32 2131351028, %v486
      %v496 = vshrl.u32 2102212464, %v487
      %v497 = vor.u32 %v495, %v496
      %v498 = vshll.u32 2102212464, %v486
      %v499 = vshrl.u32 920167782, %v487
      %v500 = vor.u32 %v498, %v499
      %v501 = vshll.u32 920167782, %v486
      %v502 = vshrl.u32 1326507024, %v487
      %v503 = vor.u32 %v501, %v502
      %vm504 = vcmp.lt.s32.totalorder %v485, 1
      %vm505 = vcmp.lt.s32.totalorder %v485, 2
      %vm506 = vcmp.lt.s32.totalorder %v485, 3
      %vm507 = vcmp.lt.s32.totalorder %v485, 4
      %v508 = vsel %vm504, %v488, %v491
      %v509 = vsel %vm507, %v497, 2102212464
      %v510 = vsel %vm506, %v494, %v509
      %v511 = vsel %vm505, %v508, %v510
      %v512 = vsel %vm504, %v491, %v494
      %v513 = vsel %vm507, %v500, 920167782
      %v514 = vsel %vm506, %v497, %v513
      %v515 = vsel %vm505, %v512, %v514
      %v516 = vsel %vm504, %v494, %v497
      %v517 = vsel %vm507, %v503, 1326507024
      %v518 = vsel %vm506, %v500, %v517
      %v519 = vsel %vm505, %v516, %v518
      %v520 = vshll.u32 %v480, 8
      %v521 = vand.u32 %v520, 65535
      %v522 = vshrl.u32 %v520, 16
      %v523 = vand.u32 %v519, 65535
      %v524 = vshrl.u32 %v519, 16
      %v525 = vmul.u32 %v521, %v523
      %v526 = vmul.u32 %v521, %v524
      %v527 = vmul.u32 %v522, %v523
      %v528 = vmul.u32 %v522, %v524
      %v529 = vshll.u32 %v526, 16
      %v530 = vshrl.u32 %v526, 16
      %v531 = vshll.u32 %v527, 16
      %v532 = vshrl.u32 %v527, 16
      %vm533 = vc.u32 %v525, %v529
      %v534 = vsel %vm533, 1, 0
      %v535 = vadd.s32 %v525, %v529
      %v536 = vadd.s32 %v528, %v534
      %vm537 = vc.u32 %v535, %v531
      %v538 = vsel %vm537, 1, 0
      %v539 = vadd.s32 %v535, %v531
      %v540 = vadd.s32 %v536, %v538
      %v541 = vadd.s32 %v540, %v530
      %v542 = vadd.s32 %v541, %v532
      %v543 = vand.u32 %v520, 65535
      %v544 = vshrl.u32 %v520, 16
      %v545 = vand.u32 %v515, 65535
      %v546 = vshrl.u32 %v515, 16
      %v547 = vmul.u32 %v543, %v545
      %v548 = vmul.u32 %v543, %v546
      %v549 = vmul.u32 %v544, %v545
      %v550 = vmul.u32 %v544, %v546
      %v551 = vshll.u32 %v548, 16
      %v552 = vshrl.u32 %v548, 16
      %v553 = vshll.u32 %v549, 16
      %v554 = vshrl.u32 %v549, 16
      %vm555 = vc.u32 %v547, %v551
      %v556 = vsel %vm555, 1, 0
      %v557 = vadd.s32 %v547, %v551
      %v558 = vadd.s32 %v550, %v556
      %vm559 = vc.u32 %v557, %v553
      %v560 = vsel %vm559, 1, 0
      %v561 = vadd.s32 %v557, %v553
      %v562 = vadd.s32 %v558, %v560
      %v563 = vadd.s32 %v562, %v552
      %v564 = vadd.s32 %v563, %v554
      %v565 = vmul.u32 %v520, %v511
      %v566 = vadd.s32 %v542, %v561
      %vm567 = vc.u32 %v542, %v561
      %v568 = vadd.s32 %v564, 1
      %v569 = vsel %vm567, %v568, %v564
      %v570 = vadd.s32 %v565, %v569
      %v571 = vadd.s32 %v570, 536870912
      %v572 = vshrl.u32 %v571, 30
      %v573 = vshll.u32 %v572, 30
      %v574 = vsub.s32 %v570, %v573
      %vm575 = vcmp.lt.s32.totalorder %v574, 0
      %v576 = vsub.s32 0, %v574
      %v577 = vsel %vm575, %v576, %v574
      %v578 = vclz %v577
      %v579 = vsub.s32 %v578, 2
      %vm580 = vcmp.gt.s32.totalorder 0, %v579
      %v581 = vsel %vm580, 0, %v579
      %v582 = vsub.s32 32, %v581
      %v583 = vshll.u32 %v574, %v581
      %v584 = vshrl.u32 %v566, %v582
      %v585 = vor.u32 %v583, %v584
      %v586 = vsub.s32 4294967266, %v581
      %v587 = vadd.s32 %v586, 127
      %v588 = vshll.u32 %v587, 23
      %v589 = vor.u32 4788187, %v588
      %v590 = vand.u32 2147483647, %v589
      %v592 = vcvt.s32.f32 %v585
      %v593 = vmul.f32 %v592, %v590
      %v594 = vxor.u32 %v593, 2147483648
      %v595 = vsel %vm474, %v594, %v593
      %v596 = vsub.s32 4, %v572
      %v597 = vsel %vm474, %v596, %v572
      %v598 = vsel %vm473, %v283, %v595
      %v599 = vsel %vm473, 0, %v597
      %v600 = vmul.f32 %v598, %v598
      %v601 = vmul.f32 %v600, -0.001358992
      %v602 = vadd.f32 %v601, 0.041655596
      %v603 = vmul.f32 %v600, %v602
      %v604 = vadd.f32 %v603, -0.4999988
      %v605 = vmul.f32 %v600, %v604
      %v606 = vadd.f32 1.0, %v605
      %v607 = vmul.f32 %v598, %v598
      %v608 = vmul.f32 %v607, -0.00019511016
      %v609 = vadd.f32 %v608, 0.008332121
      %v610 = vmul.f32 %v607, %v609
      %v611 = vadd.f32 %v610, -0.16666654
      %v612 = vmul.f32 %v607, %v611
      %v613 = vadd.f32 %v612, 1.0
      %v614 = vmul.f32 %v613, %v598
      %vm615 = vweird.f32 %v283
      %v616 = vadd.s32 %v599, 3
      %v617 = vand.u32 %v616, 3
      %vm618 = vcmp.lt.s32.totalorder %v617, 2
      %vm619 = vcmp.eq.s32.totalorder %v617, 0
      %v620 = vxor.u32 %v614, 2147483648
      %v621 = vsel %vm619, %v606, %v620
      %vm622 = vcmp.eq.s32.totalorder %v617, 2
      %v623 = vxor.u32 %v606, 2147483648
      %v624 = vsel %vm622, %v623, %v614
      %v625 = vsel %vm618, %v621, %v624
      %v626 = vsel %vm615, nan, %v625
      %v627 = vand.u32 2147483647, %v284
      %vm628 = vcmp.le.f32.partialorder %v627, 0.7853982
      %vm629 = vcmp.lt.s32.totalorder %v284, 0
      %v630 = vand.u32 %v284, 2139095040
      %v631 = vshrl.u32 %v630, 23
      %v632 = vsub.s32 %v631, 127
      %v633 = vand.u32 2147483647, %v284
      %v634 = vand.u32 %v633, 8388607
      %v635 = vor.u32 %v634, 8388608
      %v636 = vsub.s32 0, %v635
      %v637 = vadd.s32 %v632, 1
      %vm638 = vcmp.gt.s32.totalorder %v637, 0
      %v639 = vsel %vm638, %v637, 0
      %v640 = vshrl.u32 %v639, 5
      %v641 = vand.u32 %v639, 31
      %v642 = vsub.s32 32, %v641
      %v643 = vshrl.u32 683565275, %v642
      %v644 = vshll.u32 683565275, %v641
      %v645 = vshrl.u32 2475754826, %v642
      %v646 = vor.u32 %v644, %v645
      %v647 = vshll.u32 2475754826, %v641
      %v648 = vshrl.u32 2131351028, %v642
      %v649 = vor.u32 %v647, %v648
      %v650 = vshll.u32 2131351028, %v641
      %v651 = vshrl.u32 2102212464, %v642
      %v652 = vor.u32 %v650, %v651
      %v653 = vshll.u32 2102212464, %v641
      %v654 = vshrl.u32 920167782, %v642
      %v655 = vor.u32 %v653, %v654
      %v656 = vshll.u32 920167782, %v641
      %v657 = vshrl.u32 1326507024, %v642
      %v658 = vor.u32 %v656, %v657
      %vm659 = vcmp.lt.s32.totalorder %v640, 1
      %vm660 = vcmp.lt.s32.totalorder %v640, 2
      %vm661 = vcmp.lt.s32.totalorder %v640, 3
      %vm662 = vcmp.lt.s32.totalorder %v640, 4
      %v663 = vsel %vm659, %v643, %v646
      %v664 = vsel %vm662, %v652, 2102212464
      %v665 = vsel %vm661, %v649, %v664
      %v666 = vsel %vm660, %v663, %v665
      %v667 = vsel %vm659, %v646, %v649
      %v668 = vsel %vm662, %v655, 920167782
      %v669 = vsel %vm661, %v652, %v668
      %v670 = vsel %vm660, %v667, %v669
      %v671 = vsel %vm659, %v649, %v652
      %v672 = vsel %vm662, %v658, 1326507024
      %v673 = vsel %vm661, %v655, %v672
      %v674 = vsel %vm660, %v671, %v673
      %v675 = vshll.u32 %v635, 8
      %v676 = vand.u32 %v675, 65535
      %v677 = vshrl.u32 %v675, 16
      %v678 = vand.u32 %v674, 65535
      %v679 = vshrl.u32 %v674, 16
      %v680 = vmul.u32 %v676, %v678
      %v681 = vmul.u32 %v676, %v679
      %v682 = vmul.u32 %v677, %v678
      %v683 = vmul.u32 %v677, %v679
      %v684 = vshll.u32 %v681, 16
      %v685 = vshrl.u32 %v681, 16
      %v686 = vshll.u32 %v682, 16
      %v687 = vshrl.u32 %v682, 16
      %vm688 = vc.u32 %v680, %v684
      %v689 = vsel %vm688, 1, 0
      %v690 = vadd.s32 %v680, %v684
      %v691 = vadd.s32 %v683, %v689
      %vm692 = vc.u32 %v690, %v686
      %v693 = vsel %vm692, 1, 0
      %v694 = vadd.s32 %v690, %v686
      %v695 = vadd.s32 %v691, %v693
      %v696 = vadd.s32 %v695, %v685
      %v697 = vadd.s32 %v696, %v687
      %v698 = vand.u32 %v675, 65535
      %v699 = vshrl.u32 %v675, 16
      %v700 = vand.u32 %v670, 65535
      %v701 = vshrl.u32 %v670, 16
      %v702 = vmul.u32 %v698, %v700
      %v703 = vmul.u32 %v698, %v701
      %v704 = vmul.u32 %v699, %v700
      %v705 = vmul.u32 %v699, %v701
      %v706 = vshll.u32 %v703, 16
      %v707 = vshrl.u32 %v703, 16
      %v708 = vshll.u32 %v704, 16
      %v709 = vshrl.u32 %v704, 16
      %vm710 = vc.u32 %v702, %v706
      %v711 = vsel %vm710, 1, 0
      %v712 = vadd.s32 %v702, %v706
      %v713 = vadd.s32 %v705, %v711
      %vm714 = vc.u32 %v712, %v708
      %v715 = vsel %vm714, 1, 0
      %v716 = vadd.s32 %v712, %v708
      %v717 = vadd.s32 %v713, %v715
      %v718 = vadd.s32 %v717, %v707
      %v719 = vadd.s32 %v718, %v709
      %v720 = vmul.u32 %v675, %v666
      %v721 = vadd.s32 %v697, %v716
      %vm722 = vc.u32 %v697, %v716
      %v723 = vadd.s32 %v719, 1
      %v724 = vsel %vm722, %v723, %v719
      %v725 = vadd.s32 %v720, %v724
      %v726 = vadd.s32 %v725, 536870912
      %v727 = vshrl.u32 %v726, 30
      %v728 = vshll.u32 %v727, 30
      %v729 = vsub.s32 %v725, %v728
      %vm730 = vcmp.lt.s32.totalorder %v729, 0
      %v731 = vsub.s32 0, %v729
      %v732 = vsel %vm730, %v731, %v729
      %v733 = vclz %v732
      %v734 = vsub.s32 %v733, 2
      %vm735 = vcmp.gt.s32.totalorder 0, %v734
      %v736 = vsel %vm735, 0, %v734
      %v737 = vsub.s32 32, %v736
      %v738 = vshll.u32 %v729, %v736
      %v739 = vshrl.u32 %v721, %v737
      %v740 = vor.u32 %v738, %v739
      %v741 = vsub.s32 4294967266, %v736
      %v742 = vadd.s32 %v741, 127
      %v743 = vshll.u32 %v742, 23
      %v744 = vor.u32 4788187, %v743
      %v745 = vand.u32 2147483647, %v744
      %v747 = vcvt.s32.f32 %v740
      %v748 = vmul.f32 %v747, %v745
      %v749 = vxor.u32 %v748, 2147483648
      %v750 = vsel %vm629, %v749, %v748
      %v751 = vsub.s32 4, %v727
      %v752 = vsel %vm629, %v751, %v727
      %v753 = vsel %vm628, %v284, %v750
      %v754 = vsel %vm628, 0, %v752
      %v755 = vmul.f32 %v753, %v753
      %v756 = vmul.f32 %v755, -0.001358992
      %v757 = vadd.f32 %v756, 0.041655596
      %v758 = vmul.f32 %v755, %v757
      %v759 = vadd.f32 %v758, -0.4999988
      %v760 = vmul.f32 %v755, %v759
      %v761 = vadd.f32 1.0, %v760
      %v762 = vmul.f32 %v753, %v753
      %v763 = vmul.f32 %v762, -0.00019511016
      %v764 = vadd.f32 %v763, 0.008332121
      %v765 = vmul.f32 %v762, %v764
      %v766 = vadd.f32 %v765, -0.16666654
      %v767 = vmul.f32 %v762, %v766
      %v768 = vadd.f32 %v767, 1.0
      %v769 = vmul.f32 %v768, %v753
      %vm770 = vweird.f32 %v284
      %v771 = vadd.s32 %v754, 3
      %v772 = vand.u32 %v771, 3
      %vm773 = vcmp.lt.s32.totalorder %v772, 2
      %vm774 = vcmp.eq.s32.totalorder %v772, 0
      %v775 = vxor.u32 %v769, 2147483648
      %v776 = vsel %vm774, %v761, %v775
      %vm777 = vcmp.eq.s32.totalorder %v772, 2
      %v778 = vxor.u32 %v761, 2147483648
      %v779 = vsel %vm777, %v778, %v769
      %v780 = vsel %vm773, %v776, %v779
      %v781 = vsel %vm770, nan, %v780
      %v782 = vand.u32 2147483647, %v285
      %vm783 = vcmp.le.f32.partialorder %v782, 0.7853982
      %vm784 = vcmp.lt.s32.totalorder %v285, 0
      %v785 = vand.u32 %v285, 2139095040
      %v786 = vshrl.u32 %v785, 23
      %v787 = vsub.s32 %v786, 127
      %v788 = vand.u32 2147483647, %v285
      %v789 = vand.u32 %v788, 8388607
      %v790 = vor.u32 %v789, 8388608
      %v791 = vsub.s32 0, %v790
      %v792 = vadd.s32 %v787, 1
      %vm793 = vcmp.gt.s32.totalorder %v792, 0
      %v794 = vsel %vm793, %v792, 0
      %v795 = vshrl.u32 %v794, 5
      %v796 = vand.u32 %v794, 31
      %v797 = vsub.s32 32, %v796
      %v798 = vshrl.u32 683565275, %v797
      %v799 = vshll.u32 683565275, %v796
      %v800 = vshrl.u32 2475754826, %v797
      %v801 = vor.u32 %v799, %v800
      %v802 = vshll.u32 2475754826, %v796
      %v803 = vshrl.u32 2131351028, %v797
      %v804 = vor.u32 %v802, %v803
      %v805 = vshll.u32 2131351028, %v796
      %v806 = vshrl.u32 2102212464, %v797
      %v807 = vor.u32 %v805, %v806
      %v808 = vshll.u32 2102212464, %v796
      %v809 = vshrl.u32 920167782, %v797
      %v810 = vor.u32 %v808, %v809
      %v811 = vshll.u32 920167782, %v796
      %v812 = vshrl.u32 1326507024, %v797
      %v813 = vor.u32 %v811, %v812
      %vm814 = vcmp.lt.s32.totalorder %v795, 1
      %vm815 = vcmp.lt.s32.totalorder %v795, 2
      %vm816 = vcmp.lt.s32.totalorder %v795, 3
      %vm817 = vcmp.lt.s32.totalorder %v795, 4
      %v818 = vsel %vm814, %v798, %v801
      %v819 = vsel %vm817, %v807, 2102212464
      %v820 = vsel %vm816, %v804, %v819
      %v821 = vsel %vm815, %v818, %v820
      %v822 = vsel %vm814, %v801, %v804
      %v823 = vsel %vm817, %v810, 920167782
      %v824 = vsel %vm816, %v807, %v823
      %v825 = vsel %vm815, %v822, %v824
      %v826 = vsel %vm814, %v804, %v807
      %v827 = vsel %vm817, %v813, 1326507024
      %v828 = vsel %vm816, %v810, %v827
      %v829 = vsel %vm815, %v826, %v828
      %v830 = vshll.u32 %v790, 8
      %v831 = vand.u32 %v830, 65535
      %v832 = vshrl.u32 %v830, 16
      %v833 = vand.u32 %v829, 65535
      %v834 = vshrl.u32 %v829, 16
      %v835 = vmul.u32 %v831, %v833
      %v836 = vmul.u32 %v831, %v834
      %v837 = vmul.u32 %v832, %v833
      %v838 = vmul.u32 %v832, %v834
      %v839 = vshll.u32 %v836, 16
      %v840 = vshrl.u32 %v836, 16
      %v841 = vshll.u32 %v837, 16
      %v842 = vshrl.u32 %v837, 16
      %vm843 = vc.u32 %v835, %v839
      %v844 = vsel %vm843, 1, 0
      %v845 = vadd.s32 %v835, %v839
      %v846 = vadd.s32 %v838, %v844
      %vm847 = vc.u32 %v845, %v841
      %v848 = vsel %vm847, 1, 0
      %v849 = vadd.s32 %v845, %v841
      %v850 = vadd.s32 %v846, %v848
      %v851 = vadd.s32 %v850, %v840
      %v852 = vadd.s32 %v851, %v842
      %v853 = vand.u32 %v830, 65535
      %v854 = vshrl.u32 %v830, 16
      %v855 = vand.u32 %v825, 65535
      %v856 = vshrl.u32 %v825, 16
      %v857 = vmul.u32 %v853, %v855
      %v858 = vmul.u32 %v853, %v856
      %v859 = vmul.u32 %v854, %v855
      %v860 = vmul.u32 %v854, %v856
      %v861 = vshll.u32 %v858, 16
      %v862 = vshrl.u32 %v858, 16
      %v863 = vshll.u32 %v859, 16
      %v864 = vshrl.u32 %v859, 16
      %vm865 = vc.u32 %v857, %v861
      %v866 = vsel %vm865, 1, 0
      %v867 = vadd.s32 %v857, %v861
      %v868 = vadd.s32 %v860, %v866
      %vm869 = vc.u32 %v867, %v863
      %v870 = vsel %vm869, 1, 0
      %v871 = vadd.s32 %v867, %v863
      %v872 = vadd.s32 %v868, %v870
      %v873 = vadd.s32 %v872, %v862
      %v874 = vadd.s32 %v873, %v864
      %v875 = vmul.u32 %v830, %v821
      %v876 = vadd.s32 %v852, %v871
      %vm877 = vc.u32 %v852, %v871
      %v878 = vadd.s32 %v874, 1
      %v879 = vsel %vm877, %v878, %v874
      %v880 = vadd.s32 %v875, %v879
      %v881 = vadd.s32 %v880, 536870912
      %v882 = vshrl.u32 %v881, 30
      %v883 = vshll.u32 %v882, 30
      %v884 = vsub.s32 %v880, %v883
      %vm885 = vcmp.lt.s32.totalorder %v884, 0
      %v886 = vsub.s32 0, %v884
      %v887 = vsel %vm885, %v886, %v884
      %v888 = vclz %v887
      %v889 = vsub.s32 %v888, 2
      %vm890 = vcmp.gt.s32.totalorder 0, %v889
      %v891 = vsel %vm890, 0, %v889
      %v892 = vsub.s32 32, %v891
      %v893 = vshll.u32 %v884, %v891
      %v894 = vshrl.u32 %v876, %v892
      %v895 = vor.u32 %v893, %v894
      %v896 = vsub.s32 4294967266, %v891
      %v897 = vadd.s32 %v896, 127
      %v898 = vshll.u32 %v897, 23
      %v899 = vor.u32 4788187, %v898
      %v900 = vand.u32 2147483647, %v899
      %v902 = vcvt.s32.f32 %v895
      %v903 = vmul.f32 %v902, %v900
      %v904 = vxor.u32 %v903, 2147483648
      %v905 = vsel %vm784, %v904, %v903
      %v906 = vsub.s32 4, %v882
      %v907 = vsel %vm784, %v906, %v882
      %v908 = vsel %vm783, %v285, %v905
      %v909 = vsel %vm783, 0, %v907
      %v910 = vmul.f32 %v908, %v908
      %v911 = vmul.f32 %v910, -0.001358992
      %v912 = vadd.f32 %v911, 0.041655596
      %v913 = vmul.f32 %v910, %v912
      %v914 = vadd.f32 %v913, -0.4999988
      %v915 = vmul.f32 %v910, %v914
      %v916 = vadd.f32 1.0, %v915
      %v917 = vmul.f32 %v908, %v908
      %v918 = vmul.f32 %v917, -0.00019511016
      %v919 = vadd.f32 %v918, 0.008332121
      %v920 = vmul.f32 %v917, %v919
      %v921 = vadd.f32 %v920, -0.16666654
      %v922 = vmul.f32 %v917, %v921
      %v923 = vadd.f32 %v922, 1.0
      %v924 = vmul.f32 %v923, %v908
      %vm925 = vweird.f32 %v285
      %v926 = vadd.s32 %v909, 3
      %v927 = vand.u32 %v926, 3
      %vm928 = vcmp.lt.s32.totalorder %v927, 2
      %vm929 = vcmp.eq.s32.totalorder %v927, 0
      %v930 = vxor.u32 %v924, 2147483648
      %v931 = vsel %vm929, %v916, %v930
      %vm932 = vcmp.eq.s32.totalorder %v927, 2
      %v933 = vxor.u32 %v916, 2147483648
      %v934 = vsel %vm932, %v933, %v924
      %v935 = vsel %vm928, %v931, %v934
      %v936 = vsel %vm925, nan, %v935
      %v937 = vand.u32 2147483647, %v282
      %vm938 = vcmp.le.f32.partialorder %v937, 0.7853982
      %vm939 = vcmp.lt.s32.totalorder %v282, 0
      %v940 = vand.u32 %v282, 2139095040
      %v941 = vshrl.u32 %v940, 23
      %v942 = vsub.s32 %v941, 127
      %v943 = vand.u32 2147483647, %v282
      %v944 = vand.u32 %v943, 8388607
      %v945 = vor.u32 %v944, 8388608
      %v946 = vsub.s32 0, %v945
      %v947 = vadd.s32 %v942, 1
      %vm948 = vcmp.gt.s32.totalorder %v947, 0
      %v949 = vsel %vm948, %v947, 0
      %v950 = vshrl.u32 %v949, 5
      %v951 = vand.u32 %v949, 31
      %v952 = vsub.s32 32, %v951
      %v953 = vshrl.u32 683565275, %v952
      %v954 = vshll.u32 683565275, %v951
      %v955 = vshrl.u32 2475754826, %v952
      %v956 = vor.u32 %v954, %v955
      %v957 = vshll.u32 2475754826, %v951
      %v958 = vshrl.u32 2131351028, %v952
      %v959 = vor.u32 %v957, %v958
      %v960 = vshll.u32 2131351028, %v951
      %v961 = vshrl.u32 2102212464, %v952
      %v962 = vor.u32 %v960, %v961
      %v963 = vshll.u32 2102212464, %v951
      %v964 = vshrl.u32 920167782, %v952
      %v965 = vor.u32 %v963, %v964
      %v966 = vshll.u32 920167782, %v951
      %v967 = vshrl.u32 1326507024, %v952
      %v968 = vor.u32 %v966, %v967
      %vm969 = vcmp.lt.s32.totalorder %v950, 1
      %vm970 = vcmp.lt.s32.totalorder %v950, 2
      %vm971 = vcmp.lt.s32.totalorder %v950, 3
      %vm972 = vcmp.lt.s32.totalorder %v950, 4
      %v973 = vsel %vm969, %v953, %v956
      %v974 = vsel %vm972, %v962, 2102212464
      %v975 = vsel %vm971, %v959, %v974
      %v976 = vsel %vm970, %v973, %v975
      %v977 = vsel %vm969, %v956, %v959
      %v978 = vsel %vm972, %v965, 920167782
      %v979 = vsel %vm971, %v962, %v978
      %v980 = vsel %vm970, %v977, %v979
      %v981 = vsel %vm969, %v959, %v962
      %v982 = vsel %vm972, %v968, 1326507024
      %v983 = vsel %vm971, %v965, %v982
      %v984 = vsel %vm970, %v981, %v983
      %v985 = vshll.u32 %v945, 8
      %v986 = vand.u32 %v985, 65535
      %v987 = vshrl.u32 %v985, 16
      %v988 = vand.u32 %v984, 65535
      %v989 = vshrl.u32 %v984, 16
      %v990 = vmul.u32 %v986, %v988
      %v991 = vmul.u32 %v986, %v989
      %v992 = vmul.u32 %v987, %v988
      %v993 = vmul.u32 %v987, %v989
      %v994 = vshll.u32 %v991, 16
      %v995 = vshrl.u32 %v991, 16
      %v996 = vshll.u32 %v992, 16
      %v997 = vshrl.u32 %v992, 16
      %vm998 = vc.u32 %v990, %v994
      %v999 = vsel %vm998, 1, 0
      %v1000 = vadd.s32 %v990, %v994
      %v1001 = vadd.s32 %v993, %v999
      %vm1002 = vc.u32 %v1000, %v996
      %v1003 = vsel %vm1002, 1, 0
      %v1004 = vadd.s32 %v1000, %v996
      %v1005 = vadd.s32 %v1001, %v1003
      %v1006 = vadd.s32 %v1005, %v995
      %v1007 = vadd.s32 %v1006, %v997
      %v1008 = vand.u32 %v985, 65535
      %v1009 = vshrl.u32 %v985, 16
      %v1010 = vand.u32 %v980, 65535
      %v1011 = vshrl.u32 %v980, 16
      %v1012 = vmul.u32 %v1008, %v1010
      %v1013 = vmul.u32 %v1008, %v1011
      %v1014 = vmul.u32 %v1009, %v1010
      %v1015 = vmul.u32 %v1009, %v1011
      %v1016 = vshll.u32 %v1013, 16
      %v1017 = vshrl.u32 %v1013, 16
      %v1018 = vshll.u32 %v1014, 16
      %v1019 = vshrl.u32 %v1014, 16
      %vm1020 = vc.u32 %v1012, %v1016
      %v1021 = vsel %vm1020, 1, 0
      %v1022 = vadd.s32 %v1012, %v1016
      %v1023 = vadd.s32 %v1015, %v1021
      %vm1024 = vc.u32 %v1022, %v1018
      %v1025 = vsel %vm1024, 1, 0
      %v1026 = vadd.s32 %v1022, %v1018
      %v1027 = vadd.s32 %v1023, %v1025
      %v1028 = vadd.s32 %v1027, %v1017
      %v1029 = vadd.s32 %v1028, %v1019
      %v1030 = vmul.u32 %v985, %v976
      %v1031 = vadd.s32 %v1007, %v1026
      %vm1032 = vc.u32 %v1007, %v1026
      %v1033 = vadd.s32 %v1029, 1
      %v1034 = vsel %vm1032, %v1033, %v1029
      %v1035 = vadd.s32 %v1030, %v1034
      %v1036 = vadd.s32 %v1035, 536870912
      %v1037 = vshrl.u32 %v1036, 30
      %v1038 = vshll.u32 %v1037, 30
      %v1039 = vsub.s32 %v1035, %v1038
      %vm1040 = vcmp.lt.s32.totalorder %v1039, 0
      %v1041 = vsub.s32 0, %v1039
      %v1042 = vsel %vm1040, %v1041, %v1039
      %v1043 = vclz %v1042
      %v1044 = vsub.s32 %v1043, 2
      %vm1045 = vcmp.gt.s32.totalorder 0, %v1044
      %v1046 = vsel %vm1045, 0, %v1044
      %v1047 = vsub.s32 32, %v1046
      %v1048 = vshll.u32 %v1039, %v1046
      %v1049 = vshrl.u32 %v1031, %v1047
      %v1050 = vor.u32 %v1048, %v1049
      %v1051 = vsub.s32 4294967266, %v1046
      %v1052 = vadd.s32 %v1051, 127
      %v1053 = vshll.u32 %v1052, 23
      %v1054 = vor.u32 4788187, %v1053
      %v1055 = vand.u32 2147483647, %v1054
      %v1057 = vcvt.s32.f32 %v1050
      %v1058 = vmul.f32 %v1057, %v1055
      %v1059 = vxor.u32 %v1058, 2147483648
      %v1060 = vsel %vm939, %v1059, %v1058
      %v1061 = vsub.s32 4, %v1037
      %v1062 = vsel %vm939, %v1061, %v1037
      %v1063 = vsel %vm938, %v282, %v1060
      %v1064 = vsel %vm938, 0, %v1062
      %v1065 = vmul.f32 %v1063, %v1063
      %v1066 = vmul.f32 %v1065, -0.001358992
      %v1067 = vadd.f32 %v1066, 0.041655596
      %v1068 = vmul.f32 %v1065, %v1067
      %v1069 = vadd.f32 %v1068, -0.4999988
      %v1070 = vmul.f32 %v1065, %v1069
      %v1071 = vadd.f32 1.0, %v1070
      %v1072 = vmul.f32 %v1063, %v1063
      %v1073 = vmul.f32 %v1072, -0.00019511016
      %v1074 = vadd.f32 %v1073, 0.008332121
      %v1075 = vmul.f32 %v1072, %v1074
      %v1076 = vadd.f32 %v1075, -0.16666654
      %v1077 = vmul.f32 %v1072, %v1076
      %v1078 = vadd.f32 %v1077, 1.0
      %v1079 = vmul.f32 %v1078, %v1063
      %vm1080 = vweird.f32 %v282
      %v1081 = vand.u32 %v1064, 3
      %vm1082 = vcmp.lt.s32.totalorder %v1081, 2
      %vm1083 = vcmp.eq.s32.totalorder %v1081, 0
      %v1084 = vxor.u32 %v1079, 2147483648
      %v1085 = vsel %vm1083, %v1071, %v1084
      %vm1086 = vcmp.eq.s32.totalorder %v1081, 2
      %v1087 = vxor.u32 %v1071, 2147483648
      %v1088 = vsel %vm1086, %v1087, %v1079
      %v1089 = vsel %vm1082, %v1085, %v1088
      %v1090 = vsel %vm1080, nan, %v1089
      %v1091 = vand.u32 2147483647, %v283
      %vm1092 = vcmp.le.f32.partialorder %v1091, 0.7853982
      %vm1093 = vcmp.lt.s32.totalorder %v283, 0
      %v1094 = vand.u32 %v283, 2139095040
      %v1095 = vshrl.u32 %v1094, 23
      %v1096 = vsub.s32 %v1095, 127
      %v1097 = vand.u32 2147483647, %v283
      %v1098 = vand.u32 %v1097, 8388607
      %v1099 = vor.u32 %v1098, 8388608
      %v1100 = vsub.s32 0, %v1099
      %v1101 = vadd.s32 %v1096, 1
      %vm1102 = vcmp.gt.s32.totalorder %v1101, 0
      %v1103 = vsel %vm1102, %v1101, 0
      %v1104 = vshrl.u32 %v1103, 5
      %v1105 = vand.u32 %v1103, 31
      %v1106 = vsub.s32 32, %v1105
      %v1107 = vshrl.u32 683565275, %v1106
      %v1108 = vshll.u32 683565275, %v1105
      %v1109 = vshrl.u32 2475754826, %v1106
      %v1110 = vor.u32 %v1108, %v1109
      %v1111 = vshll.u32 2475754826, %v1105
      %v1112 = vshrl.u32 2131351028, %v1106
      %v1113 = vor.u32 %v1111, %v1112
      %v1114 = vshll.u32 2131351028, %v1105
      %v1115 = vshrl.u32 2102212464, %v1106
      %v1116 = vor.u32 %v1114, %v1115
      %v1117 = vshll.u32 2102212464, %v1105
      %v1118 = vshrl.u32 920167782, %v1106
      %v1119 = vor.u32 %v1117, %v1118
      %v1120 = vshll.u32 920167782, %v1105
      %v1121 = vshrl.u32 1326507024, %v1106
      %v1122 = vor.u32 %v1120, %v1121
      %vm1123 = vcmp.lt.s32.totalorder %v1104, 1
      %vm1124 = vcmp.lt.s32.totalorder %v1104, 2
      %vm1125 = vcmp.lt.s32.totalorder %v1104, 3
      %vm1126 = vcmp.lt.s32.totalorder %v1104, 4
      %v1127 = vsel %vm1123, %v1107, %v1110
      %v1128 = vsel %vm1126, %v1116, 2102212464
      %v1129 = vsel %vm1125, %v1113, %v1128
      %v1130 = vsel %vm1124, %v1127, %v1129
      %v1131 = vsel %vm1123, %v1110, %v1113
      %v1132 = vsel %vm1126, %v1119, 920167782
      %v1133 = vsel %vm1125, %v1116, %v1132
      %v1134 = vsel %vm1124, %v1131, %v1133
      %v1135 = vsel %vm1123, %v1113, %v1116
      %v1136 = vsel %vm1126, %v1122, 1326507024
      %v1137 = vsel %vm1125, %v1119, %v1136
      %v1138 = vsel %vm1124, %v1135, %v1137
      %v1139 = vshll.u32 %v1099, 8
      %v1140 = vand.u32 %v1139, 65535
      %v1141 = vshrl.u32 %v1139, 16
      %v1142 = vand.u32 %v1138, 65535
      %v1143 = vshrl.u32 %v1138, 16
      %v1144 = vmul.u32 %v1140, %v1142
      %v1145 = vmul.u32 %v1140, %v1143
      %v1146 = vmul.u32 %v1141, %v1142
      %v1147 = vmul.u32 %v1141, %v1143
      %v1148 = vshll.u32 %v1145, 16
      %v1149 = vshrl.u32 %v1145, 16
      %v1150 = vshll.u32 %v1146, 16
      %v1151 = vshrl.u32 %v1146, 16
      %vm1152 = vc.u32 %v1144, %v1148
      %v1153 = vsel %vm1152, 1, 0
      %v1154 = vadd.s32 %v1144, %v1148
      %v1155 = vadd.s32 %v1147, %v1153
      %vm1156 = vc.u32 %v1154, %v1150
      %v1157 = vsel %vm1156, 1, 0
      %v1158 = vadd.s32 %v1154, %v1150
      %v1159 = vadd.s32 %v1155, %v1157
      %v1160 = vadd.s32 %v1159, %v1149
      %v1161 = vadd.s32 %v1160, %v1151
      %v1162 = vand.u32 %v1139, 65535
      %v1163 = vshrl.u32 %v1139, 16
      %v1164 = vand.u32 %v1134, 65535
      %v1165 = vshrl.u32 %v1134, 16
      %v1166 = vmul.u32 %v1162, %v1164
      %v1167 = vmul.u32 %v1162, %v1165
      %v1168 = vmul.u32 %v1163, %v1164
      %v1169 = vmul.u32 %v1163, %v1165
      %v1170 = vshll.u32 %v1167, 16
      %v1171 = vshrl.u32 %v1167, 16
      %v1172 = vshll.u32 %v1168, 16
      %v1173 = vshrl.u32 %v1168, 16
      %vm1174 = vc.u32 %v1166, %v1170
      %v1175 = vsel %vm1174, 1, 0
      %v1176 = vadd.s32 %v1166, %v1170
      %v1177 = vadd.s32 %v1169, %v1175
      %vm1178 = vc.u32 %v1176, %v1172
      %v1179 = vsel %vm1178, 1, 0
      %v1180 = vadd.s32 %v1176, %v1172
      %v1181 = vadd.s32 %v1177, %v1179
      %v1182 = vadd.s32 %v1181, %v1171
      %v1183 = vadd.s32 %v1182, %v1173
      %v1184 = vmul.u32 %v1139, %v1130
      %v1185 = vadd.s32 %v1161, %v1180
      %vm1186 = vc.u32 %v1161, %v1180
      %v1187 = vadd.s32 %v1183, 1
      %v1188 = vsel %vm1186, %v1187, %v1183
      %v1189 = vadd.s32 %v1184, %v1188
      %v1190 = vadd.s32 %v1189, 536870912
      %v1191 = vshrl.u32 %v1190, 30
      %v1192 = vshll.u32 %v1191, 30
      %v1193 = vsub.s32 %v1189, %v1192
      %vm1194 = vcmp.lt.s32.totalorder %v1193, 0
      %v1195 = vsub.s32 0, %v1193
      %v1196 = vsel %vm1194, %v1195, %v1193
      %v1197 = vclz %v1196
      %v1198 = vsub.s32 %v1197, 2
      %vm1199 = vcmp.gt.s32.totalorder 0, %v1198
      %v1200 = vsel %vm1199, 0, %v1198
      %v1201 = vsub.s32 32, %v1200
      %v1202 = vshll.u32 %v1193, %v1200
      %v1203 = vshrl.u32 %v1185, %v1201
      %v1204 = vor.u32 %v1202, %v1203
      %v1205 = vsub.s32 4294967266, %v1200
      %v1206 = vadd.s32 %v1205, 127
      %v1207 = vshll.u32 %v1206, 23
      %v1208 = vor.u32 4788187, %v1207
      %v1209 = vand.u32 2147483647, %v1208
      %v1211 = vcvt.s32.f32 %v1204
      %v1212 = vmul.f32 %v1211, %v1209
      %v1213 = vxor.u32 %v1212, 2147483648
      %v1214 = vsel %vm1093, %v1213, %v1212
      %v1215 = vsub.s32 4, %v1191
      %v1216 = vsel %vm1093, %v1215, %v1191
      %v1217 = vsel %vm1092, %v283, %v1214
      %v1218 = vsel %vm1092, 0, %v1216
      %v1219 = vmul.f32 %v1217, %v1217
      %v1220 = vmul.f32 %v1219, -0.001358992
      %v1221 = vadd.f32 %v1220, 0.041655596
      %v1222 = vmul.f32 %v1219, %v1221
      %v1223 = vadd.f32 %v1222, -0.4999988
      %v1224 = vmul.f32 %v1219, %v1223
      %v1225 = vadd.f32 1.0, %v1224
      %v1226 = vmul.f32 %v1217, %v1217
      %v1227 = vmul.f32 %v1226, -0.00019511016
      %v1228 = vadd.f32 %v1227, 0.008332121
      %v1229 = vmul.f32 %v1226, %v1228
      %v1230 = vadd.f32 %v1229, -0.16666654
      %v1231 = vmul.f32 %v1226, %v1230
      %v1232 = vadd.f32 %v1231, 1.0
      %v1233 = vmul.f32 %v1232, %v1217
      %vm1234 = vweird.f32 %v283
      %v1235 = vand.u32 %v1218, 3
      %vm1236 = vcmp.lt.s32.totalorder %v1235, 2
      %vm1237 = vcmp.eq.s32.totalorder %v1235, 0
      %v1238 = vxor.u32 %v1233, 2147483648
      %v1239 = vsel %vm1237, %v1225, %v1238
      %vm1240 = vcmp.eq.s32.totalorder %v1235, 2
      %v1241 = vxor.u32 %v1225, 2147483648
      %v1242 = vsel %vm1240, %v1241, %v1233
      %v1243 = vsel %vm1236, %v1239, %v1242
      %v1244 = vsel %vm1234, nan, %v1243
      %v1245 = vand.u32 2147483647, %v284
      %vm1246 = vcmp.le.f32.partialorder %v1245, 0.7853982
      %vm1247 = vcmp.lt.s32.totalorder %v284, 0
      %v1248 = vand.u32 %v284, 2139095040
      %v1249 = vshrl.u32 %v1248, 23
      %v1250 = vsub.s32 %v1249, 127
      %v1251 = vand.u32 2147483647, %v284
      %v1252 = vand.u32 %v1251, 8388607
      %v1253 = vor.u32 %v1252, 8388608
      %v1254 = vsub.s32 0, %v1253
      %v1255 = vadd.s32 %v1250, 1
      %vm1256 = vcmp.gt.s32.totalorder %v1255, 0
      %v1257 = vsel %vm1256, %v1255, 0
      %v1258 = vshrl.u32 %v1257, 5
      %v1259 = vand.u32 %v1257, 31
      %v1260 = vsub.s32 32, %v1259
      %v1261 = vshrl.u32 683565275, %v1260
      %v1262 = vshll.u32 683565275, %v1259
      %v1263 = vshrl.u32 2475754826, %v1260
      %v1264 = vor.u32 %v1262, %v1263
      %v1265 = vshll.u32 2475754826, %v1259
      %v1266 = vshrl.u32 2131351028, %v1260
      %v1267 = vor.u32 %v1265, %v1266
      %v1268 = vshll.u32 2131351028, %v1259
      %v1269 = vshrl.u32 2102212464, %v1260
      %v1270 = vor.u32 %v1268, %v1269
      %v1271 = vshll.u32 2102212464, %v1259
      %v1272 = vshrl.u32 920167782, %v1260
      %v1273 = vor.u32 %v1271, %v1272
      %v1274 = vshll.u32 920167782, %v1259
      %v1275 = vshrl.u32 1326507024, %v1260
      %v1276 = vor.u32 %v1274, %v1275
      %vm1277 = vcmp.lt.s32.totalorder %v1258, 1
      %vm1278 = vcmp.lt.s32.totalorder %v1258, 2
      %vm1279 = vcmp.lt.s32.totalorder %v1258, 3
      %vm1280 = vcmp.lt.s32.totalorder %v1258, 4
      %v1281 = vsel %vm1277, %v1261, %v1264
      %v1282 = vsel %vm1280, %v1270, 2102212464
      %v1283 = vsel %vm1279, %v1267, %v1282
      %v1284 = vsel %vm1278, %v1281, %v1283
      %v1285 = vsel %vm1277, %v1264, %v1267
      %v1286 = vsel %vm1280, %v1273, 920167782
      %v1287 = vsel %vm1279, %v1270, %v1286
      %v1288 = vsel %vm1278, %v1285, %v1287
      %v1289 = vsel %vm1277, %v1267, %v1270
      %v1290 = vsel %vm1280, %v1276, 1326507024
      %v1291 = vsel %vm1279, %v1273, %v1290
      %v1292 = vsel %vm1278, %v1289, %v1291
      %v1293 = vshll.u32 %v1253, 8
      %v1294 = vand.u32 %v1293, 65535
      %v1295 = vshrl.u32 %v1293, 16
      %v1296 = vand.u32 %v1292, 65535
      %v1297 = vshrl.u32 %v1292, 16
      %v1298 = vmul.u32 %v1294, %v1296
      %v1299 = vmul.u32 %v1294, %v1297
      %v1300 = vmul.u32 %v1295, %v1296
      %v1301 = vmul.u32 %v1295, %v1297
      %v1302 = vshll.u32 %v1299, 16
      %v1303 = vshrl.u32 %v1299, 16
      %v1304 = vshll.u32 %v1300, 16
      %v1305 = vshrl.u32 %v1300, 16
      %vm1306 = vc.u32 %v1298, %v1302
      %v1307 = vsel %vm1306, 1, 0
      %v1308 = vadd.s32 %v1298, %v1302
      %v1309 = vadd.s32 %v1301, %v1307
      %vm1310 = vc.u32 %v1308, %v1304
      %v1311 = vsel %vm1310, 1, 0
      %v1312 = vadd.s32 %v1308, %v1304
      %v1313 = vadd.s32 %v1309, %v1311
      %v1314 = vadd.s32 %v1313, %v1303
      %v1315 = vadd.s32 %v1314, %v1305
      %v1316 = vand.u32 %v1293, 65535
      %v1317 = vshrl.u32 %v1293, 16
      %v1318 = vand.u32 %v1288, 65535
      %v1319 = vshrl.u32 %v1288, 16
      %v1320 = vmul.u32 %v1316, %v1318
      %v1321 = vmul.u32 %v1316, %v1319
      %v1322 = vmul.u32 %v1317, %v1318
      %v1323 = vmul.u32 %v1317, %v1319
      %v1324 = vshll.u32 %v1321, 16
      %v1325 = vshrl.u32 %v1321, 16
      %v1326 = vshll.u32 %v1322, 16
      %v1327 = vshrl.u32 %v1322, 16
      %vm1328 = vc.u32 %v1320, %v1324
      %v1329 = vsel %vm1328, 1, 0
      %v1330 = vadd.s32 %v1320, %v1324
      %v1331 = vadd.s32 %v1323, %v1329
      %vm1332 = vc.u32 %v1330, %v1326
      %v1333 = vsel %vm1332, 1, 0
      %v1334 = vadd.s32 %v1330, %v1326
      %v1335 = vadd.s32 %v1331, %v1333
      %v1336 = vadd.s32 %v1335, %v1325
      %v1337 = vadd.s32 %v1336, %v1327
      %v1338 = vmul.u32 %v1293, %v1284
      %v1339 = vadd.s32 %v1315, %v1334
      %vm1340 = vc.u32 %v1315, %v1334
      %v1341 = vadd.s32 %v1337, 1
      %v1342 = vsel %vm1340, %v1341, %v1337
      %v1343 = vadd.s32 %v1338, %v1342
      %v1344 = vadd.s32 %v1343, 536870912
      %v1345 = vshrl.u32 %v1344, 30
      %v1346 = vshll.u32 %v1345, 30
      %v1347 = vsub.s32 %v1343, %v1346
      %vm1348 = vcmp.lt.s32.totalorder %v1347, 0
      %v1349 = vsub.s32 0, %v1347
      %v1350 = vsel %vm1348, %v1349, %v1347
      %v1351 = vclz %v1350
      %v1352 = vsub.s32 %v1351, 2
      %vm1353 = vcmp.gt.s32.totalorder 0, %v1352
      %v1354 = vsel %vm1353, 0, %v1352
      %v1355 = vsub.s32 32, %v1354
      %v1356 = vshll.u32 %v1347, %v1354
      %v1357 = vshrl.u32 %v1339, %v1355
      %v1358 = vor.u32 %v1356, %v1357
      %v1359 = vsub.s32 4294967266, %v1354
      %v1360 = vadd.s32 %v1359, 127
      %v1361 = vshll.u32 %v1360, 23
      %v1362 = vor.u32 4788187, %v1361
      %v1363 = vand.u32 2147483647, %v1362
      %v1365 = vcvt.s32.f32 %v1358
      %v1366 = vmul.f32 %v1365, %v1363
      %v1367 = vxor.u32 %v1366, 2147483648
      %v1368 = vsel %vm1247, %v1367, %v1366
      %v1369 = vsub.s32 4, %v1345
      %v1370 = vsel %vm1247, %v1369, %v1345
      %v1371 = vsel %vm1246, %v284, %v1368
      %v1372 = vsel %vm1246, 0, %v1370
      %v1373 = vmul.f32 %v1371, %v1371
      %v1374 = vmul.f32 %v1373, -0.001358992
      %v1375 = vadd.f32 %v1374, 0.041655596
      %v1376 = vmul.f32 %v1373, %v1375
      %v1377 = vadd.f32 %v1376, -0.4999988
      %v1378 = vmul.f32 %v1373, %v1377
      %v1379 = vadd.f32 1.0, %v1378
      %v1380 = vmul.f32 %v1371, %v1371
      %v1381 = vmul.f32 %v1380, -0.00019511016
      %v1382 = vadd.f32 %v1381, 0.008332121
      %v1383 = vmul.f32 %v1380, %v1382
      %v1384 = vadd.f32 %v1383, -0.16666654
      %v1385 = vmul.f32 %v1380, %v1384
      %v1386 = vadd.f32 %v1385, 1.0
      %v1387 = vmul.f32 %v1386, %v1371
      %vm1388 = vweird.f32 %v284
      %v1389 = vand.u32 %v1372, 3
      %vm1390 = vcmp.lt.s32.totalorder %v1389, 2
      %vm1391 = vcmp.eq.s32.totalorder %v1389, 0
      %v1392 = vxor.u32 %v1387, 2147483648
      %v1393 = vsel %vm1391, %v1379, %v1392
      %vm1394 = vcmp.eq.s32.totalorder %v1389, 2
      %v1395 = vxor.u32 %v1379, 2147483648
      %v1396 = vsel %vm1394, %v1395, %v1387
      %v1397 = vsel %vm1390, %v1393, %v1396
      %v1398 = vsel %vm1388, nan, %v1397
      %v1399 = vand.u32 2147483647, %v285
      %vm1400 = vcmp.le.f32.partialorder %v1399, 0.7853982
      %vm1401 = vcmp.lt.s32.totalorder %v285, 0
      %v1402 = vand.u32 %v285, 2139095040
      %v1403 = vshrl.u32 %v1402, 23
      %v1404 = vsub.s32 %v1403, 127
      %v1405 = vand.u32 2147483647, %v285
      %v1406 = vand.u32 %v1405, 8388607
      %v1407 = vor.u32 %v1406, 8388608
      %v1408 = vsub.s32 0, %v1407
      %v1409 = vadd.s32 %v1404, 1
      %vm1410 = vcmp.gt.s32.totalorder %v1409, 0
      %v1411 = vsel %vm1410, %v1409, 0
      %v1412 = vshrl.u32 %v1411, 5
      %v1413 = vand.u32 %v1411, 31
      %v1414 = vsub.s32 32, %v1413
      %v1415 = vshrl.u32 683565275, %v1414
      %v1416 = vshll.u32 683565275, %v1413
      %v1417 = vshrl.u32 2475754826, %v1414
      %v1418 = vor.u32 %v1416, %v1417
      %v1419 = vshll.u32 2475754826, %v1413
      %v1420 = vshrl.u32 2131351028, %v1414
      %v1421 = vor.u32 %v1419, %v1420
      %v1422 = vshll.u32 2131351028, %v1413
      %v1423 = vshrl.u32 2102212464, %v1414
      %v1424 = vor.u32 %v1422, %v1423
      %v1425 = vshll.u32 2102212464, %v1413
      %v1426 = vshrl.u32 920167782, %v1414
      %v1427 = vor.u32 %v1425, %v1426
      %v1428 = vshll.u32 920167782, %v1413
      %v1429 = vshrl.u32 1326507024, %v1414
      %v1430 = vor.u32 %v1428, %v1429
      %vm1431 = vcmp.lt.s32.totalorder %v1412, 1
      %vm1432 = vcmp.lt.s32.totalorder %v1412, 2
      %vm1433 = vcmp.lt.s32.totalorder %v1412, 3
      %vm1434 = vcmp.lt.s32.totalorder %v1412, 4
      %v1435 = vsel %vm1431, %v1415, %v1418
      %v1436 = vsel %vm1434, %v1424, 2102212464
      %v1437 = vsel %vm1433, %v1421, %v1436
      %v1438 = vsel %vm1432, %v1435, %v1437
      %v1439 = vsel %vm1431, %v1418, %v1421
      %v1440 = vsel %vm1434, %v1427, 920167782
      %v1441 = vsel %vm1433, %v1424, %v1440
      %v1442 = vsel %vm1432, %v1439, %v1441
      %v1443 = vsel %vm1431, %v1421, %v1424
      %v1444 = vsel %vm1434, %v1430, 1326507024
      %v1445 = vsel %vm1433, %v1427, %v1444
      %v1446 = vsel %vm1432, %v1443, %v1445
      %v1447 = vshll.u32 %v1407, 8
      %v1448 = vand.u32 %v1447, 65535
      %v1449 = vshrl.u32 %v1447, 16
      %v1450 = vand.u32 %v1446, 65535
      %v1451 = vshrl.u32 %v1446, 16
      %v1452 = vmul.u32 %v1448, %v1450
      %v1453 = vmul.u32 %v1448, %v1451
      %v1454 = vmul.u32 %v1449, %v1450
      %v1455 = vmul.u32 %v1449, %v1451
      %v1456 = vshll.u32 %v1453, 16
      %v1457 = vshrl.u32 %v1453, 16
      %v1458 = vshll.u32 %v1454, 16
      %v1459 = vshrl.u32 %v1454, 16
      %vm1460 = vc.u32 %v1452, %v1456
      %v1461 = vsel %vm1460, 1, 0
      %v1462 = vadd.s32 %v1452, %v1456
      %v1463 = vadd.s32 %v1455, %v1461
      %vm1464 = vc.u32 %v1462, %v1458
      %v1465 = vsel %vm1464, 1, 0
      %v1466 = vadd.s32 %v1462, %v1458
      %v1467 = vadd.s32 %v1463, %v1465
      %v1468 = vadd.s32 %v1467, %v1457
      %v1469 = vadd.s32 %v1468, %v1459
      %v1470 = vand.u32 %v1447, 65535
      %v1471 = vshrl.u32 %v1447, 16
      %v1472 = vand.u32 %v1442, 65535
      %v1473 = vshrl.u32 %v1442, 16
      %v1474 = vmul.u32 %v1470, %v1472
      %v1475 = vmul.u32 %v1470, %v1473
      %v1476 = vmul.u32 %v1471, %v1472
      %v1477 = vmul.u32 %v1471, %v1473
      %v1478 = vshll.u32 %v1475, 16
      %v1479 = vshrl.u32 %v1475, 16
      %v1480 = vshll.u32 %v1476, 16
      %v1481 = vshrl.u32 %v1476, 16
      %vm1482 = vc.u32 %v1474, %v1478
      %v1483 = vsel %vm1482, 1, 0
      %v1484 = vadd.s32 %v1474, %v1478
      %v1485 = vadd.s32 %v1477, %v1483
      %vm1486 = vc.u32 %v1484, %v1480
      %v1487 = vsel %vm1486, 1, 0
      %v1488 = vadd.s32 %v1484, %v1480
      %v1489 = vadd.s32 %v1485, %v1487
      %v1490 = vadd.s32 %v1489, %v1479
      %v1491 = vadd.s32 %v1490, %v1481
      %v1492 = vmul.u32 %v1447, %v1438
      %v1493 = vadd.s32 %v1469, %v1488
      %vm1494 = vc.u32 %v1469, %v1488
      %v1495 = vadd.s32 %v1491, 1
      %v1496 = vsel %vm1494, %v1495, %v1491
      %v1497 = vadd.s32 %v1492, %v1496
      %v1498 = vadd.s32 %v1497, 536870912
      %v1499 = vshrl.u32 %v1498, 30
      %v1500 = vshll.u32 %v1499, 30
      %v1501 = vsub.s32 %v1497, %v1500
      %vm1502 = vcmp.lt.s32.totalorder %v1501, 0
      %v1503 = vsub.s32 0, %v1501
      %v1504 = vsel %vm1502, %v1503, %v1501
      %v1505 = vclz %v1504
      %v1506 = vsub.s32 %v1505, 2
      %vm1507 = vcmp.gt.s32.totalorder 0, %v1506
      %v1508 = vsel %vm1507, 0, %v1506
      %v1509 = vsub.s32 32, %v1508
      %v1510 = vshll.u32 %v1501, %v1508
      %v1511 = vshrl.u32 %v1493, %v1509
      %v1512 = vor.u32 %v1510, %v1511
      %v1513 = vsub.s32 4294967266, %v1508
      %v1514 = vadd.s32 %v1513, 127
      %v1515 = vshll.u32 %v1514, 23
      %v1516 = vor.u32 4788187, %v1515
      %v1517 = vand.u32 2147483647, %v1516
      %v1519 = vcvt.s32.f32 %v1512
      %v1520 = vmul.f32 %v1519, %v1517
      %v1521 = vxor.u32 %v1520, 2147483648
      %v1522 = vsel %vm1401, %v1521, %v1520
      %v1523 = vsub.s32 4, %v1499
      %v1524 = vsel %vm1401, %v1523, %v1499
      %v1525 = vsel %vm1400, %v285, %v1522
      %v1526 = vsel %vm1400, 0, %v1524
      %v1527 = vmul.f32 %v1525, %v1525
      %v1528 = vmul.f32 %v1527, -0.001358992
      %v1529 = vadd.f32 %v1528, 0.041655596
      %v1530 = vmul.f32 %v1527, %v1529
      %v1531 = vadd.f32 %v1530, -0.4999988
      %v1532 = vmul.f32 %v1527, %v1531
      %v1533 = vadd.f32 1.0, %v1532
      %v1534 = vmul.f32 %v1525, %v1525
      %v1535 = vmul.f32 %v1534, -0.00019511016
      %v1536 = vadd.f32 %v1535, 0.008332121
      %v1537 = vmul.f32 %v1534, %v1536
      %v1538 = vadd.f32 %v1537, -0.16666654
      %v1539 = vmul.f32 %v1534, %v1538
      %v1540 = vadd.f32 %v1539, 1.0
      %v1541 = vmul.f32 %v1540, %v1525
      %vm1542 = vweird.f32 %v285
      %v1543 = vand.u32 %v1526, 3
      %vm1544 = vcmp.lt.s32.totalorder %v1543, 2
      %vm1545 = vcmp.eq.s32.totalorder %v1543, 0
      %v1546 = vxor.u32 %v1541, 2147483648
      %v1547 = vsel %vm1545, %v1533, %v1546
      %vm1548 = vcmp.eq.s32.totalorder %v1543, 2
      %v1549 = vxor.u32 %v1533, 2147483648
      %v1550 = vsel %vm1548, %v1549, %v1541
      %v1551 = vsel %vm1544, %v1547, %v1550
      %v1552 = vsel %vm1542, nan, %v1551
      %v1553 = vmul.f32 %v471, 2.0
      %v1554 = vmul.f32 %v626, 2.0
      %v1555 = vmul.f32 %v781, 2.0
      %v1556 = vmul.f32 %v936, 2.0
      %v1557 = vmul.f32 %v1553, %v1090
      %v1558 = vmul.f32 %v1554, %v1244
      %v1559 = vmul.f32 %v1555, %v1398
      %v1560 = vmul.f32 %v1556, %v1552
      %v1561 = vmul.f32 %v1090, %v1090
      %v1562 = vmul.f32 %v1244, %v1244
      %v1563 = vmul.f32 %v1398, %v1398
      %v1564 = vmul.f32 %v1552, %v1552
      %v1565 = vmul.f32 %v471, %v471
      %v1566 = vmul.f32 %v626, %v626
      %v1567 = vmul.f32 %v781, %v781
      %v1568 = vmul.f32 %v936, %v936
      %v1569 = vsub.f32 %v1561, %v1565
      %v1570 = vsub.f32 %v1562, %v1566
      %v1571 = vsub.f32 %v1563, %v1567
      %v1572 = vsub.f32 %v1564, %v1568
      %v1573 = vmul.f32 %v1557, 2.0
      %v1574 = vmul.f32 %v1558, 2.0
      %v1575 = vmul.f32 %v1559, 2.0
      %v1576 = vmul.f32 %v1560, 2.0
      %v1577 = vmul.f32 %v1573, %v1569
      %v1578 = vmul.f32 %v1574, %v1570
      %v1579 = vmul.f32 %v1575, %v1571
      %v1580 = vmul.f32 %v1576, %v1572
      %v1581 = vmul.f32 %v1569, %v1569
      %v1582 = vmul.f32 %v1570, %v1570
      %v1583 = vmul.f32 %v1571, %v1571
      %v1584 = vmul.f32 %v1572, %v1572
      %v1585 = vmul.f32 %v1557, %v1557
      %v1586 = vmul.f32 %v1558, %v1558
      %v1587 = vmul.f32 %v1559, %v1559
      %v1588 = vmul.f32 %v1560, %v1560
      %v1589 = vsub.f32 %v1581, %v1585
      %v1590 = vsub.f32 %v1582, %v1586
      %v1591 = vsub.f32 %v1583, %v1587
      %v1592 = vsub.f32 %v1584, %v1588
      %v1593 = vmul.f32 %v1577, 2.0
      %v1594 = vmul.f32 %v1578, 2.0
      %v1595 = vmul.f32 %v1579, 2.0
      %v1596 = vmul.f32 %v1580, 2.0
      %v1597 = vmul.f32 %v1593, %v1589
      %v1598 = vmul.f32 %v1594, %v1590
      %v1599 = vmul.f32 %v1595, %v1591
      %v1600 = vmul.f32 %v1596, %v1592
      %v1601 = vmul.f32 %v1589, %v1589
      %v1602 = vmul.f32 %v1590, %v1590
      %v1603 = vmul.f32 %v1591, %v1591
      %v1604 = vmul.f32 %v1592, %v1592
      %v1605 = vmul.f32 %v1577, %v1577
      %v1606 = vmul.f32 %v1578, %v1578
      %v1607 = vmul.f32 %v1579, %v1579
      %v1608 = vmul.f32 %v1580, %v1580
      %v1609 = vsub.f32 %v1601, %v1605
      %v1610 = vsub.f32 %v1602, %v1606
      %v1611 = vsub.f32 %v1603, %v1607
      %v1612 = vsub.f32 %v1604, %v1608
      %1617 = vst [vmem:[#allocation1] ss:$2 sm:$0xff] %v282
      %s1618 = scalar_lea.vmem [#allocation1], 16
      %1619 = vst [vmem:[%s1618] ss:$2 sm:$0xff] %v283
      %s1620 = scalar_lea.vmem [#allocation1], 32
      %1621 = vst [vmem:[%s1620] ss:$2 sm:$0xff] %v284
      %s1622 = scalar_lea.vmem [#allocation1], 48
      %1623 = vst [vmem:[%s1622] ss:$2 sm:$0xff] %v285
      %v1624 = vld.sshfl [vmem:[#allocation1] sm:$0xff pattern:$0x75316420]
      %v1625 = vld.sshfl [vmem:[#allocation1 + $0x8] sm:$0xff pattern:$0x75316420]
      %v1626 = vld.sshfl [vmem:[#allocation1 + $0x10] sm:$0xff pattern:$0x75316420]
      %v1627 = vld.sshfl [vmem:[#allocation1 + $0x18] sm:$0xff pattern:$0x75316420]
      %v1628 = vld.sshfl [vmem:[#allocation1 + $0x20] sm:$0xff pattern:$0x75316420]
      %v1629 = vld.sshfl [vmem:[#allocation1 + $0x28] sm:$0xff pattern:$0x75316420]
      %v1630 = vld.sshfl [vmem:[#allocation1 + $0x30] sm:$0xff pattern:$0x75316420]
      %v1631 = vld.sshfl [vmem:[#allocation1 + $0x38] sm:$0xff pattern:$0x75316420]
      %1644 = vst [vmem:[#allocation1] ss:$2 sm:$0xff] %v471
      %s1645 = scalar_lea.vmem [#allocation1], 16
      %1646 = vst [vmem:[%s1645] ss:$2 sm:$0xff] %v626
      %s1647 = scalar_lea.vmem [#allocation1], 32
      %1648 = vst [vmem:[%s1647] ss:$2 sm:$0xff] %v781
      %s1649 = scalar_lea.vmem [#allocation1], 48
      %1650 = vst [vmem:[%s1649] ss:$2 sm:$0xff] %v936
      %v1651 = vld.sshfl [vmem:[#allocation1] sm:$0xff pattern:$0x75316420]
      %v1652 = vld.sshfl [vmem:[#allocation1 + $0x8] sm:$0xff pattern:$0x75316420]
      %v1653 = vld.sshfl [vmem:[#allocation1 + $0x10] sm:$0xff pattern:$0x75316420]
      %v1654 = vld.sshfl [vmem:[#allocation1 + $0x18] sm:$0xff pattern:$0x75316420]
      %v1655 = vld.sshfl [vmem:[#allocation1 + $0x20] sm:$0xff pattern:$0x75316420]
      %v1656 = vld.sshfl [vmem:[#allocation1 + $0x28] sm:$0xff pattern:$0x75316420]
      %v1657 = vld.sshfl [vmem:[#allocation1 + $0x30] sm:$0xff pattern:$0x75316420]
      %v1658 = vld.sshfl [vmem:[#allocation1 + $0x38] sm:$0xff pattern:$0x75316420]
      %v1659 = vrot.slane %v1651, 5
      %v1660 = vrot.slane %v1652, 5
      %v1661 = vrot.slane %v1653, 5
      %v1662 = vrot.slane %v1654, 5
      %v1663 = vrot.slane %v1655, 5
      %v1664 = vrot.slane %v1656, 5
      %v1665 = vrot.slane %v1657, 5
      %v1666 = vrot.slane %v1658, 5
      %1679 = vst [vmem:[#allocation1] ss:$2 sm:$0xff] %v1090
      %s1680 = scalar_lea.vmem [#allocation1], 16
      %1681 = vst [vmem:[%s1680] ss:$2 sm:$0xff] %v1244
      %s1682 = scalar_lea.vmem [#allocation1], 32
      %1683 = vst [vmem:[%s1682] ss:$2 sm:$0xff] %v1398
      %s1684 = scalar_lea.vmem [#allocation1], 48
      %1685 = vst [vmem:[%s1684] ss:$2 sm:$0xff] %v1552
      %v1686 = vld.sshfl [vmem:[#allocation1] sm:$0xff pattern:$0x75316420]
      %v1687 = vld.sshfl [vmem:[#allocation1 + $0x8] sm:$0xff pattern:$0x75316420]
      %v1688 = vld.sshfl [vmem:[#allocation1 + $0x10] sm:$0xff pattern:$0x75316420]
      %v1689 = vld.sshfl [vmem:[#allocation1 + $0x18] sm:$0xff pattern:$0x75316420]
      %v1690 = vld.sshfl [vmem:[#allocation1 + $0x20] sm:$0xff pattern:$0x75316420]
      %v1691 = vld.sshfl [vmem:[#allocation1 + $0x28] sm:$0xff pattern:$0x75316420]
      %v1692 = vld.sshfl [vmem:[#allocation1 + $0x30] sm:$0xff pattern:$0x75316420]
      %v1693 = vld.sshfl [vmem:[#allocation1 + $0x38] sm:$0xff pattern:$0x75316420]
      %v1694 = vrot.slane %v1686, 2
      %v1695 = vrot.slane %v1687, 2
      %v1696 = vrot.slane %v1688, 2
      %v1697 = vrot.slane %v1689, 2
      %v1698 = vrot.slane %v1690, 2
      %v1699 = vrot.slane %v1691, 2
      %v1700 = vrot.slane %v1692, 2
      %v1701 = vrot.slane %v1693, 2
      %1714 = vst [vmem:[#allocation1] ss:$2 sm:$0xff] %v1557
      %s1715 = scalar_lea.vmem [#allocation1], 16
      %1716 = vst [vmem:[%s1715] ss:$2 sm:$0xff] %v1558
      %s1717 = scalar_lea.vmem [#allocation1], 32
      %1718 = vst [vmem:[%s1717] ss:$2 sm:$0xff] %v1559
      %s1719 = scalar_lea.vmem [#allocation1], 48
      %1720 = vst [vmem:[%s1719] ss:$2 sm:$0xff] %v1560
      %v1721 = vld.sshfl [vmem:[#allocation1] sm:$0xff pattern:$0x75316420]
      %v1722 = vld.sshfl [vmem:[#allocation1 + $0x8] sm:$0xff pattern:$0x75316420]
      %v1723 = vld.sshfl [vmem:[#allocation1 + $0x10] sm:$0xff pattern:$0x75316420]
      %v1724 = vld.sshfl [vmem:[#allocation1 + $0x18] sm:$0xff pattern:$0x75316420]
      %v1725 = vld.sshfl [vmem:[#allocation1 + $0x20] sm:$0xff pattern:$0x75316420]
      %v1726 = vld.sshfl [vmem:[#allocation1 + $0x28] sm:$0xff pattern:$0x75316420]
      %v1727 = vld.sshfl [vmem:[#allocation1 + $0x30] sm:$0xff pattern:$0x75316420]
      %v1728 = vld.sshfl [vmem:[#allocation1 + $0x38] sm:$0xff pattern:$0x75316420]
      %v1729 = vrot.slane %v1721, 7
      %v1730 = vrot.slane %v1722, 7
      %v1731 = vrot.slane %v1723, 7
      %v1732 = vrot.slane %v1724, 7
      %v1733 = vrot.slane %v1725, 7
      %v1734 = vrot.slane %v1726, 7
      %v1735 = vrot.slane %v1727, 7
      %v1736 = vrot.slane %v1728, 7
      %s1749 = scalar_lea.vmem [#allocation1], 1
      %1750 = vst [vmem:[%s1749] ss:$2 sm:$0xff] %v1569
      %s1751 = scalar_lea.vmem [#allocation1], 17
      %1752 = vst [vmem:[%s1751] ss:$2 sm:$0xff] %v1570
      %s1753 = scalar_lea.vmem [#allocation1], 33
      %1754 = vst [vmem:[%s1753] ss:$2 sm:$0xff] %v1571
      %s1755 = scalar_lea.vmem [#allocation1], 49
      %1756 = vst [vmem:[%s1755] ss:$2 sm:$0xff] %v1572
      %v1757 = vld.sshfl [vmem:[#allocation1] sm:$0xff pattern:$0x75316420]
      %v1758 = vld.sshfl [vmem:[#allocation1 + $0x8] sm:$0xff pattern:$0x75316420]
      %v1759 = vld.sshfl [vmem:[#allocation1 + $0x10] sm:$0xff pattern:$0x75316420]
      %v1760 = vld.sshfl [vmem:[#allocation1 + $0x18] sm:$0xff pattern:$0x75316420]
      %v1761 = vld.sshfl [vmem:[#allocation1 + $0x20] sm:$0xff pattern:$0x75316420]
      %v1762 = vld.sshfl [vmem:[#allocation1 + $0x28] sm:$0xff pattern:$0x75316420]
      %v1763 = vld.sshfl [vmem:[#allocation1 + $0x30] sm:$0xff pattern:$0x75316420]
      %v1764 = vld.sshfl [vmem:[#allocation1 + $0x38] sm:$0xff pattern:$0x75316420]
      %1777 = vst [vmem:[#allocation1] ss:$2 sm:$0xff] %v1577
      %s1778 = scalar_lea.vmem [#allocation1], 16
      %1779 = vst [vmem:[%s1778] ss:$2 sm:$0xff] %v1578
      %s1780 = scalar_lea.vmem [#allocation1], 32
      %1781 = vst [vmem:[%s1780] ss:$2 sm:$0xff] %v1579
      %s1782 = scalar_lea.vmem [#allocation1], 48
      %1783 = vst [vmem:[%s1782] ss:$2 sm:$0xff] %v1580
      %v1784 = vld.sshfl [vmem:[#allocation1] sm:$0xff pattern:$0x75316420]
      %v1785 = vld.sshfl [vmem:[#allocation1 + $0x8] sm:$0xff pattern:$0x75316420]
      %v1786 = vld.sshfl [vmem:[#allocation1 + $0x10] sm:$0xff pattern:$0x75316420]
      %v1787 = vld.sshfl [vmem:[#allocation1 + $0x18] sm:$0xff pattern:$0x75316420]
      %v1788 = vld.sshfl [vmem:[#allocation1 + $0x20] sm:$0xff pattern:$0x75316420]
      %v1789 = vld.sshfl [vmem:[#allocation1 + $0x28] sm:$0xff pattern:$0x75316420]
      %v1790 = vld.sshfl [vmem:[#allocation1 + $0x30] sm:$0xff pattern:$0x75316420]
      %v1791 = vld.sshfl [vmem:[#allocation1 + $0x38] sm:$0xff pattern:$0x75316420]
      %v1792 = vrot.slane %v1784, 1
      %v1793 = vrot.slane %v1785, 1
      %v1794 = vrot.slane %v1786, 1
      %v1795 = vrot.slane %v1787, 1
      %v1796 = vrot.slane %v1788, 1
      %v1797 = vrot.slane %v1789, 1
      %v1798 = vrot.slane %v1790, 1
      %v1799 = vrot.slane %v1791, 1
      %1812 = vst [vmem:[#allocation1] ss:$2 sm:$0xff] %v1589
      %s1813 = scalar_lea.vmem [#allocation1], 16
      %1814 = vst [vmem:[%s1813] ss:$2 sm:$0xff] %v1590
      %s1815 = scalar_lea.vmem [#allocation1], 32
      %1816 = vst [vmem:[%s1815] ss:$2 sm:$0xff] %v1591
      %s1817 = scalar_lea.vmem [#allocation1], 48
      %1818 = vst [vmem:[%s1817] ss:$2 sm:$0xff] %v1592
      %v1819 = vld.sshfl [vmem:[#allocation1] sm:$0xff pattern:$0x75316420]
      %v1820 = vld.sshfl [vmem:[#allocation1 + $0x8] sm:$0xff pattern:$0x75316420]
      %v1821 = vld.sshfl [vmem:[#allocation1 + $0x10] sm:$0xff pattern:$0x75316420]
      %v1822 = vld.sshfl [vmem:[#allocation1 + $0x18] sm:$0xff pattern:$0x75316420]
      %v1823 = vld.sshfl [vmem:[#allocation1 + $0x20] sm:$0xff pattern:$0x75316420]
      %v1824 = vld.sshfl [vmem:[#allocation1 + $0x28] sm:$0xff pattern:$0x75316420]
      %v1825 = vld.sshfl [vmem:[#allocation1 + $0x30] sm:$0xff pattern:$0x75316420]
      %v1826 = vld.sshfl [vmem:[#allocation1 + $0x38] sm:$0xff pattern:$0x75316420]
      %v1827 = vrot.slane %v1819, 6
      %v1828 = vrot.slane %v1820, 6
      %v1829 = vrot.slane %v1821, 6
      %v1830 = vrot.slane %v1822, 6
      %v1831 = vrot.slane %v1823, 6
      %v1832 = vrot.slane %v1824, 6
      %v1833 = vrot.slane %v1825, 6
      %v1834 = vrot.slane %v1826, 6
      %1847 = vst [vmem:[#allocation1] ss:$2 sm:$0xff] %v1597
      %s1848 = scalar_lea.vmem [#allocation1], 16
      %1849 = vst [vmem:[%s1848] ss:$2 sm:$0xff] %v1598
      %s1850 = scalar_lea.vmem [#allocation1], 32
      %1851 = vst [vmem:[%s1850] ss:$2 sm:$0xff] %v1599
      %s1852 = scalar_lea.vmem [#allocation1], 48
      %1853 = vst [vmem:[%s1852] ss:$2 sm:$0xff] %v1600
      %v1854 = vld.sshfl [vmem:[#allocation1] sm:$0xff pattern:$0x75316420]
      %v1855 = vld.sshfl [vmem:[#allocation1 + $0x8] sm:$0xff pattern:$0x75316420]
      %v1856 = vld.sshfl [vmem:[#allocation1 + $0x10] sm:$0xff pattern:$0x75316420]
      %v1857 = vld.sshfl [vmem:[#allocation1 + $0x18] sm:$0xff pattern:$0x75316420]
      %v1858 = vld.sshfl [vmem:[#allocation1 + $0x20] sm:$0xff pattern:$0x75316420]
      %v1859 = vld.sshfl [vmem:[#allocation1 + $0x28] sm:$0xff pattern:$0x75316420]
      %v1860 = vld.sshfl [vmem:[#allocation1 + $0x30] sm:$0xff pattern:$0x75316420]
      %v1861 = vld.sshfl [vmem:[#allocation1 + $0x38] sm:$0xff pattern:$0x75316420]
      %v1862 = vrot.slane %v1854, 3
      %v1863 = vrot.slane %v1855, 3
      %v1864 = vrot.slane %v1856, 3
      %v1865 = vrot.slane %v1857, 3
      %v1866 = vrot.slane %v1858, 3
      %v1867 = vrot.slane %v1859, 3
      %v1868 = vrot.slane %v1860, 3
      %v1869 = vrot.slane %v1861, 3
      %1882 = vst [vmem:[#allocation1] ss:$2 sm:$0xff] %v1609
      %s1883 = scalar_lea.vmem [#allocation1], 16
      %1884 = vst [vmem:[%s1883] ss:$2 sm:$0xff] %v1610
      %s1885 = scalar_lea.vmem [#allocation1], 32
      %1886 = vst [vmem:[%s1885] ss:$2 sm:$0xff] %v1611
      %s1887 = scalar_lea.vmem [#allocation1], 48
      %1888 = vst [vmem:[%s1887] ss:$2 sm:$0xff] %v1612
      %v1889 = vld.sshfl [vmem:[#allocation1] sm:$0xff pattern:$0x75316420]
      %v1890 = vld.sshfl [vmem:[#allocation1 + $0x8] sm:$0xff pattern:$0x75316420]
      %v1891 = vld.sshfl [vmem:[#allocation1 + $0x10] sm:$0xff pattern:$0x75316420]
      %v1892 = vld.sshfl [vmem:[#allocation1 + $0x18] sm:$0xff pattern:$0x75316420]
      %v1893 = vld.sshfl [vmem:[#allocation1 + $0x20] sm:$0xff pattern:$0x75316420]
      %v1894 = vld.sshfl [vmem:[#allocation1 + $0x28] sm:$0xff pattern:$0x75316420]
      %v1895 = vld.sshfl [vmem:[#allocation1 + $0x30] sm:$0xff pattern:$0x75316420]
      %v1896 = vld.sshfl [vmem:[#allocation1 + $0x38] sm:$0xff pattern:$0x75316420]
      %vm1897 = vcmask 1042432
      %v1898 = vsel %vm1897, %v1624, %v1659
      %v1899 = vsel %vm1897, %v1625, %v1660
      %v1900 = vsel %vm1897, %v1626, %v1661
      %v1901 = vsel %vm1897, %v1627, %v1662
      %v1902 = vsel %vm1897, %v1628, %v1663
      %v1903 = vsel %vm1897, %v1629, %v1664
      %v1904 = vsel %vm1897, %v1630, %v1665
      %v1905 = vsel %vm1897, %v1631, %v1666
      %vm1906 = vcmask 1045504
      %v1907 = vsel %vm1906, %v1898, %v1694
      %v1908 = vsel %vm1906, %v1899, %v1695
      %v1909 = vsel %vm1906, %v1900, %v1696
      %v1910 = vsel %vm1906, %v1901, %v1697
      %v1911 = vsel %vm1906, %v1902, %v1698
      %v1912 = vsel %vm1906, %v1903, %v1699
      %v1913 = vsel %vm1906, %v1904, %v1700
      %v1914 = vsel %vm1906, %v1905, %v1701
      %vm1915 = vcmask 1040384
      %v1916 = vsel %vm1915, %v1694, %v1729
      %v1917 = vsel %vm1915, %v1695, %v1730
      %v1918 = vsel %vm1915, %v1696, %v1731
      %v1919 = vsel %vm1915, %v1697, %v1732
      %v1920 = vsel %vm1915, %v1698, %v1733
      %v1921 = vsel %vm1915, %v1699, %v1734
      %v1922 = vsel %vm1915, %v1700, %v1735
      %v1923 = vsel %vm1915, %v1701, %v1736
      %vm1924 = vcmask 1043456
      %v1925 = vsel %vm1924, %v1916, %v1757
      %v1926 = vsel %vm1924, %v1917, %v1758
      %v1927 = vsel %vm1924, %v1918, %v1759
      %v1928 = vsel %vm1924, %v1919, %v1760
      %v1929 = vsel %vm1924, %v1920, %v1761
      %v1930 = vsel %vm1924, %v1921, %v1762
      %v1931 = vsel %vm1924, %v1922, %v1763
      %v1932 = vsel %vm1924, %v1923, %v1764
      %vm1933 = vcmask 1046528
      %v1934 = vsel %vm1933, %v1925, %v1792
      %v1935 = vsel %vm1933, %v1926, %v1793
      %v1936 = vsel %vm1933, %v1927, %v1794
      %v1937 = vsel %vm1933, %v1928, %v1795
      %v1938 = vsel %vm1933, %v1929, %v1796
      %v1939 = vsel %vm1933, %v1930, %v1797
      %v1940 = vsel %vm1933, %v1931, %v1798
      %v1941 = vsel %vm1933, %v1932, %v1799
      %vm1942 = vcmask 1041408
      %v1943 = vsel %vm1942, %v1792, %v1827
      %v1944 = vsel %vm1942, %v1793, %v1828
      %v1945 = vsel %vm1942, %v1794, %v1829
      %v1946 = vsel %vm1942, %v1795, %v1830
      %v1947 = vsel %vm1942, %v1796, %v1831
      %v1948 = vsel %vm1942, %v1797, %v1832
      %v1949 = vsel %vm1942, %v1798, %v1833
      %v1950 = vsel %vm1942, %v1799, %v1834
      %vm1951 = vcmask 1044480
      %v1952 = vsel %vm1951, %v1943, %v1862
      %v1953 = vsel %vm1951, %v1944, %v1863
      %v1954 = vsel %vm1951, %v1945, %v1864
      %v1955 = vsel %vm1951, %v1946, %v1865
      %v1956 = vsel %vm1951, %v1947, %v1866
      %v1957 = vsel %vm1951, %v1948, %v1867
      %v1958 = vsel %vm1951, %v1949, %v1868
      %v1959 = vsel %vm1951, %v1950, %v1869
      %1961 = vset.pattern.permute.xlu0 0
      %1962 = vperm.xlu0 %1961, %v294
      %v1963 = vpop.permute.xlu0 %1962
      %1966 = vset.pattern.permute.xlu0 0
      %1967 = vperm.xlu0 %1966, %v295
      %v1968 = vpop.permute.xlu0 %1967
      %1971 = vset.pattern.permute.xlu0 0
      %1972 = vperm.xlu0 %1971, %v296
      %v1973 = vpop.permute.xlu0 %1972
      %1976 = vset.pattern.permute.xlu0 0
      %1977 = vperm.xlu0 %1976, %v297
      %v1978 = vpop.permute.xlu0 %1977
      %1981 = vset.pattern.permute.xlu0 0
      %1982 = vperm.xlu0 %1981, %v298
      %v1983 = vpop.permute.xlu0 %1982
      %1986 = vset.pattern.permute.xlu0 0
      %1987 = vperm.xlu0 %1986, %v299
      %v1988 = vpop.permute.xlu0 %1987
      %1991 = vset.pattern.permute.xlu0 0
      %1992 = vperm.xlu0 %1991, %v300
      %v1993 = vpop.permute.xlu0 %1992
      %1996 = vset.pattern.permute.xlu0 0
      %1997 = vperm.xlu0 %1996, %v301
      %v1998 = vpop.permute.xlu0 %1997
      %vm2000 = vcmask 220160
      %v2002 = vsel %vm2000, %v286, 0
      %v2005 = vsel %vm2000, %v287, 0
      %v2008 = vsel %vm2000, %v288, 0
      %v2011 = vsel %vm2000, %v289, 0
      %v2014 = vsel %vm2000, %v290, 0
      %v2017 = vsel %vm2000, %v291, 0
      %v2020 = vsel %vm2000, %v292, 0
      %v2023 = vsel %vm2000, %v293, 0
      %v2025 = vsel %vm1897, %v1889, 0
      %v2027 = vsel %vm1897, %v1890, 0
      %v2029 = vsel %vm1897, %v1891, 0
      %v2031 = vsel %vm1897, %v1892, 0
      %v2033 = vsel %vm1897, %v1893, 0
      %v2035 = vsel %vm1897, %v1894, 0
      %v2037 = vsel %vm1897, %v1895, 0
      %v2039 = vsel %vm1897, %v1896, 0
      %2041 = vmatpush.msra.mxu0 0.0
      %2042 = vmatpush.msra.mxu0 0.0
      %2043 = vmatpush.msra.mxu0 0.0
      %2044 = vmatpush.msra.mxu0 0.0
      %2045 = vmatpush.msra.mxu0 0.0
      %2046 = vmatpush.msra.mxu0 0.0
      %2047 = vmatpush.msra.mxu0 0.0
      %2048 = vmatpush.msra.mxu0 0.0
      %2049 = vmatpush.msra.mxu0 0.0
      %2050 = vmatpush.msra.mxu0 0.0
      %2051 = vmatpush.msra.mxu0 0.0
      %2052 = vmatpush.msra.mxu0 0.0
      %2053 = vmatpush.msra.mxu0 %v2025
      %2054 = vmatpush.msra.mxu0 %v1952
      %2055 = vmatpush.msra.mxu0 %v1934
      %2056 = vmatpush.msra.mxu0 %v1907
      %2057 = vmatmul.f32.gmra.mxu0 %v2002
      %v2058 = vpop.f32.mrf.mxu0
      %v2059 = vadd.f32 %v1963, %v2058
      %2060 = vmatmul.f32.gmra.mxu0 %v2005
      %v2061 = vpop.f32.mrf.mxu0
      %v2062 = vadd.f32 %v1968, %v2061
      %2063 = vmatmul.f32.gmra.mxu0 %v2008
      %v2064 = vpop.f32.mrf.mxu0
      %v2065 = vadd.f32 %v1973, %v2064
      %2066 = vmatmul.f32.gmra.mxu0 %v2011
      %v2067 = vpop.f32.mrf.mxu0
      %v2068 = vadd.f32 %v1978, %v2067
      %2069 = vmatmul.f32.gmra.mxu0 %v2014
      %v2070 = vpop.f32.mrf.mxu0
      %v2071 = vadd.f32 %v1983, %v2070
      %2072 = vmatmul.f32.gmra.mxu0 %v2017
      %v2073 = vpop.f32.mrf.mxu0
      %v2074 = vadd.f32 %v1988, %v2073
      %2075 = vmatmul.f32.gmra.mxu0 %v2020
      %v2076 = vpop.f32.mrf.mxu0
      %v2077 = vadd.f32 %v1993, %v2076
      %2078 = vmatmul.f32.gmra.mxu0 %v2023
      %v2079 = vpop.f32.mrf.mxu0
      %v2080 = vadd.f32 %v1998, %v2079
      %2081 = vdwg.mxu0
      %2082 = vmatpush.msra.mxu0 0.0
      %2083 = vmatpush.msra.mxu0 0.0
      %2084 = vmatpush.msra.mxu0 0.0
      %2085 = vmatpush.msra.mxu0 0.0
      %2086 = vmatpush.msra.mxu0 0.0
      %2087 = vmatpush.msra.mxu0 0.0
      %2088 = vmatpush.msra.mxu0 0.0
      %2089 = vmatpush.msra.mxu0 0.0
      %2090 = vmatpush.msra.mxu0 0.0
      %2091 = vmatpush.msra.mxu0 0.0
      %2092 = vmatpush.msra.mxu0 0.0
      %2093 = vmatpush.msra.mxu0 0.0
      %2094 = vmatpush.msra.mxu0 %v2027
      %2095 = vmatpush.msra.mxu0 %v1953
      %2096 = vmatpush.msra.mxu0 %v1935
      %2097 = vmatpush.msra.mxu0 %v1908
      %2098 = vmatmul.f32.gmra.mxu0 %v2002
      %v2099 = vpop.f32.mrf.mxu0
      %v2100 = vadd.f32 %v1963, %v2099
      %2101 = vmatmul.f32.gmra.mxu0 %v2005
      %v2102 = vpop.f32.mrf.mxu0
      %v2103 = vadd.f32 %v1968, %v2102
      %2104 = vmatmul.f32.gmra.mxu0 %v2008
      %v2105 = vpop.f32.mrf.mxu0
      %v2106 = vadd.f32 %v1973, %v2105
      %2107 = vmatmul.f32.gmra.mxu0 %v2011
      %v2108 = vpop.f32.mrf.mxu0
      %v2109 = vadd.f32 %v1978, %v2108
      %2110 = vmatmul.f32.gmra.mxu0 %v2014
      %v2111 = vpop.f32.mrf.mxu0
      %v2112 = vadd.f32 %v1983, %v2111
      %2113 = vmatmul.f32.gmra.mxu0 %v2017
      %v2114 = vpop.f32.mrf.mxu0
      %v2115 = vadd.f32 %v1988, %v2114
      %2116 = vmatmul.f32.gmra.mxu0 %v2020
      %v2117 = vpop.f32.mrf.mxu0
      %v2118 = vadd.f32 %v1993, %v2117
      %2119 = vmatmul.f32.gmra.mxu0 %v2023
      %v2120 = vpop.f32.mrf.mxu0
      %v2121 = vadd.f32 %v1998, %v2120
      %2122 = vdwg.mxu0
      %2123 = vmatpush.msra.mxu0 0.0
      %2124 = vmatpush.msra.mxu0 0.0
      %2125 = vmatpush.msra.mxu0 0.0
      %2126 = vmatpush.msra.mxu0 0.0
      %2127 = vmatpush.msra.mxu0 0.0
      %2128 = vmatpush.msra.mxu0 0.0
      %2129 = vmatpush.msra.mxu0 0.0
      %2130 = vmatpush.msra.mxu0 0.0
      %2131 = vmatpush.msra.mxu0 0.0
      %2132 = vmatpush.msra.mxu0 0.0
      %2133 = vmatpush.msra.mxu0 0.0
      %2134 = vmatpush.msra.mxu0 0.0
      %2135 = vmatpush.msra.mxu0 %v2029
      %2136 = vmatpush.msra.mxu0 %v1954
      %2137 = vmatpush.msra.mxu0 %v1936
      %2138 = vmatpush.msra.mxu0 %v1909
      %2139 = vmatmul.f32.gmra.mxu0 %v2002
      %v2140 = vpop.f32.mrf.mxu0
      %v2141 = vadd.f32 %v1963, %v2140
      %2142 = vmatmul.f32.gmra.mxu0 %v2005
      %v2143 = vpop.f32.mrf.mxu0
      %v2144 = vadd.f32 %v1968, %v2143
      %2145 = vmatmul.f32.gmra.mxu0 %v2008
      %v2146 = vpop.f32.mrf.mxu0
      %v2147 = vadd.f32 %v1973, %v2146
      %2148 = vmatmul.f32.gmra.mxu0 %v2011
      %v2149 = vpop.f32.mrf.mxu0
      %v2150 = vadd.f32 %v1978, %v2149
      %2151 = vmatmul.f32.gmra.mxu0 %v2014
      %v2152 = vpop.f32.mrf.mxu0
      %v2153 = vadd.f32 %v1983, %v2152
      %2154 = vmatmul.f32.gmra.mxu0 %v2017
      %v2155 = vpop.f32.mrf.mxu0
      %v2156 = vadd.f32 %v1988, %v2155
      %2157 = vmatmul.f32.gmra.mxu0 %v2020
      %v2158 = vpop.f32.mrf.mxu0
      %v2159 = vadd.f32 %v1993, %v2158
      %2160 = vmatmul.f32.gmra.mxu0 %v2023
      %v2161 = vpop.f32.mrf.mxu0
      %v2162 = vadd.f32 %v1998, %v2161
      %2163 = vdwg.mxu0
      %2164 = vmatpush.msra.mxu0 0.0
      %2165 = vmatpush.msra.mxu0 0.0
      %2166 = vmatpush.msra.mxu0 0.0
      %2167 = vmatpush.msra.mxu0 0.0
      %2168 = vmatpush.msra.mxu0 0.0
      %2169 = vmatpush.msra.mxu0 0.0
      %2170 = vmatpush.msra.mxu0 0.0
      %2171 = vmatpush.msra.mxu0 0.0
      %2172 = vmatpush.msra.mxu0 0.0
      %2173 = vmatpush.msra.mxu0 0.0
      %2174 = vmatpush.msra.mxu0 0.0
      %2175 = vmatpush.msra.mxu0 0.0
      %2176 = vmatpush.msra.mxu0 %v2031
      %2177 = vmatpush.msra.mxu0 %v1955
      %2178 = vmatpush.msra.mxu0 %v1937
      %2179 = vmatpush.msra.mxu0 %v1910
      %2180 = vmatmul.f32.gmra.mxu0 %v2002
      %v2181 = vpop.f32.mrf.mxu0
      %v2182 = vadd.f32 %v1963, %v2181
      %2183 = vmatmul.f32.gmra.mxu0 %v2005
      %v2184 = vpop.f32.mrf.mxu0
      %v2185 = vadd.f32 %v1968, %v2184
      %2186 = vmatmul.f32.gmra.mxu0 %v2008
      %v2187 = vpop.f32.mrf.mxu0
      %v2188 = vadd.f32 %v1973, %v2187
      %2189 = vmatmul.f32.gmra.mxu0 %v2011
      %v2190 = vpop.f32.mrf.mxu0
      %v2191 = vadd.f32 %v1978, %v2190
      %2192 = vmatmul.f32.gmra.mxu0 %v2014
      %v2193 = vpop.f32.mrf.mxu0
      %v2194 = vadd.f32 %v1983, %v2193
      %2195 = vmatmul.f32.gmra.mxu0 %v2017
      %v2196 = vpop.f32.mrf.mxu0
      %v2197 = vadd.f32 %v1988, %v2196
      %2198 = vmatmul.f32.gmra.mxu0 %v2020
      %v2199 = vpop.f32.mrf.mxu0
      %v2200 = vadd.f32 %v1993, %v2199
      %2201 = vmatmul.f32.gmra.mxu0 %v2023
      %v2202 = vpop.f32.mrf.mxu0
      %v2203 = vadd.f32 %v1998, %v2202
      %2204 = vdwg.mxu0
      %2205 = vmatpush.msra.mxu0 0.0
      %2206 = vmatpush.msra.mxu0 0.0
      %2207 = vmatpush.msra.mxu0 0.0
      %2208 = vmatpush.msra.mxu0 0.0
      %2209 = vmatpush.msra.mxu0 0.0
      %2210 = vmatpush.msra.mxu0 0.0
      %2211 = vmatpush.msra.mxu0 0.0
      %2212 = vmatpush.msra.mxu0 0.0
      %2213 = vmatpush.msra.mxu0 0.0
      %2214 = vmatpush.msra.mxu0 0.0
      %2215 = vmatpush.msra.mxu0 0.0
      %2216 = vmatpush.msra.mxu0 0.0
      %2217 = vmatpush.msra.mxu0 %v2033
      %2218 = vmatpush.msra.mxu0 %v1956
      %2219 = vmatpush.msra.mxu0 %v1938
      %2220 = vmatpush.msra.mxu0 %v1911
      %2221 = vmatmul.f32.gmra.mxu0 %v2002
      %v2222 = vpop.f32.mrf.mxu0
      %v2223 = vadd.f32 %v1963, %v2222
      %2224 = vmatmul.f32.gmra.mxu0 %v2005
      %v2225 = vpop.f32.mrf.mxu0
      %v2226 = vadd.f32 %v1968, %v2225
      %2227 = vmatmul.f32.gmra.mxu0 %v2008
      %v2228 = vpop.f32.mrf.mxu0
      %v2229 = vadd.f32 %v1973, %v2228
      %2230 = vmatmul.f32.gmra.mxu0 %v2011
      %v2231 = vpop.f32.mrf.mxu0
      %v2232 = vadd.f32 %v1978, %v2231
      %2233 = vmatmul.f32.gmra.mxu0 %v2014
      %v2234 = vpop.f32.mrf.mxu0
      %v2235 = vadd.f32 %v1983, %v2234
      %2236 = vmatmul.f32.gmra.mxu0 %v2017
      %v2237 = vpop.f32.mrf.mxu0
      %v2238 = vadd.f32 %v1988, %v2237
      %2239 = vmatmul.f32.gmra.mxu0 %v2020
      %v2240 = vpop.f32.mrf.mxu0
      %v2241 = vadd.f32 %v1993, %v2240
      %2242 = vmatmul.f32.gmra.mxu0 %v2023
      %v2243 = vpop.f32.mrf.mxu0
      %v2244 = vadd.f32 %v1998, %v2243
      %2245 = vdwg.mxu0
      %2246 = vmatpush.msra.mxu0 0.0
      %2247 = vmatpush.msra.mxu0 0.0
      %2248 = vmatpush.msra.mxu0 0.0
      %2249 = vmatpush.msra.mxu0 0.0
      %2250 = vmatpush.msra.mxu0 0.0
      %2251 = vmatpush.msra.mxu0 0.0
      %2252 = vmatpush.msra.mxu0 0.0
      %2253 = vmatpush.msra.mxu0 0.0
      %2254 = vmatpush.msra.mxu0 0.0
      %2255 = vmatpush.msra.mxu0 0.0
      %2256 = vmatpush.msra.mxu0 0.0
      %2257 = vmatpush.msra.mxu0 0.0
      %2258 = vmatpush.msra.mxu0 %v2035
      %2259 = vmatpush.msra.mxu0 %v1957
      %2260 = vmatpush.msra.mxu0 %v1939
      %2261 = vmatpush.msra.mxu0 %v1912
      %2262 = vmatmul.f32.gmra.mxu0 %v2002
      %v2263 = vpop.f32.mrf.mxu0
      %v2264 = vadd.f32 %v1963, %v2263
      %2265 = vmatmul.f32.gmra.mxu0 %v2005
      %v2266 = vpop.f32.mrf.mxu0
      %v2267 = vadd.f32 %v1968, %v2266
      %2268 = vmatmul.f32.gmra.mxu0 %v2008
      %v2269 = vpop.f32.mrf.mxu0
      %v2270 = vadd.f32 %v1973, %v2269
      %2271 = vmatmul.f32.gmra.mxu0 %v2011
      %v2272 = vpop.f32.mrf.mxu0
      %v2273 = vadd.f32 %v1978, %v2272
      %2274 = vmatmul.f32.gmra.mxu0 %v2014
      %v2275 = vpop.f32.mrf.mxu0
      %v2276 = vadd.f32 %v1983, %v2275
      %2277 = vmatmul.f32.gmra.mxu0 %v2017
      %v2278 = vpop.f32.mrf.mxu0
      %v2279 = vadd.f32 %v1988, %v2278
      %2280 = vmatmul.f32.gmra.mxu0 %v2020
      %v2281 = vpop.f32.mrf.mxu0
      %v2282 = vadd.f32 %v1993, %v2281
      %2283 = vmatmul.f32.gmra.mxu0 %v2023
      %v2284 = vpop.f32.mrf.mxu0
      %v2285 = vadd.f32 %v1998, %v2284
      %2286 = vdwg.mxu0
      %2287 = vmatpush.msra.mxu0 0.0
      %2288 = vmatpush.msra.mxu0 0.0
      %2289 = vmatpush.msra.mxu0 0.0
      %2290 = vmatpush.msra.mxu0 0.0
      %2291 = vmatpush.msra.mxu0 0.0
      %2292 = vmatpush.msra.mxu0 0.0
      %2293 = vmatpush.msra.mxu0 0.0
      %2294 = vmatpush.msra.mxu0 0.0
      %2295 = vmatpush.msra.mxu0 0.0
      %2296 = vmatpush.msra.mxu0 0.0
      %2297 = vmatpush.msra.mxu0 0.0
      %2298 = vmatpush.msra.mxu0 0.0
      %2299 = vmatpush.msra.mxu0 %v2037
      %2300 = vmatpush.msra.mxu0 %v1958
      %2301 = vmatpush.msra.mxu0 %v1940
      %2302 = vmatpush.msra.mxu0 %v1913
      %2303 = vmatmul.f32.gmra.mxu0 %v2002
      %v2304 = vpop.f32.mrf.mxu0
      %v2305 = vadd.f32 %v1963, %v2304
      %2306 = vmatmul.f32.gmra.mxu0 %v2005
      %v2307 = vpop.f32.mrf.mxu0
      %v2308 = vadd.f32 %v1968, %v2307
      %2309 = vmatmul.f32.gmra.mxu0 %v2008
      %v2310 = vpop.f32.mrf.mxu0
      %v2311 = vadd.f32 %v1973, %v2310
      %2312 = vmatmul.f32.gmra.mxu0 %v2011
      %v2313 = vpop.f32.mrf.mxu0
      %v2314 = vadd.f32 %v1978, %v2313
      %2315 = vmatmul.f32.gmra.mxu0 %v2014
      %v2316 = vpop.f32.mrf.mxu0
      %v2317 = vadd.f32 %v1983, %v2316
      %2318 = vmatmul.f32.gmra.mxu0 %v2017
      %v2319 = vpop.f32.mrf.mxu0
      %v2320 = vadd.f32 %v1988, %v2319
      %2321 = vmatmul.f32.gmra.mxu0 %v2020
      %v2322 = vpop.f32.mrf.mxu0
      %v2323 = vadd.f32 %v1993, %v2322
      %2324 = vmatmul.f32.gmra.mxu0 %v2023
      %v2325 = vpop.f32.mrf.mxu0
      %v2326 = vadd.f32 %v1998, %v2325
      %2327 = vdwg.mxu0
      %2328 = vmatpush.msra.mxu0 0.0
      %2329 = vmatpush.msra.mxu0 0.0
      %2330 = vmatpush.msra.mxu0 0.0
      %2331 = vmatpush.msra.mxu0 0.0
      %2332 = vmatpush.msra.mxu0 0.0
      %2333 = vmatpush.msra.mxu0 0.0
      %2334 = vmatpush.msra.mxu0 0.0
      %2335 = vmatpush.msra.mxu0 0.0
      %2336 = vmatpush.msra.mxu0 0.0
      %2337 = vmatpush.msra.mxu0 0.0
      %2338 = vmatpush.msra.mxu0 0.0
      %2339 = vmatpush.msra.mxu0 0.0
      %2340 = vmatpush.msra.mxu0 %v2039
      %2341 = vmatpush.msra.mxu0 %v1959
      %2342 = vmatpush.msra.mxu0 %v1941
      %2343 = vmatpush.msra.mxu0 %v1914
      %2344 = vmatmul.f32.gmra.mxu0 %v2002
      %v2345 = vpop.f32.mrf.mxu0
      %v2346 = vadd.f32 %v1963, %v2345
      %2347 = vmatmul.f32.gmra.mxu0 %v2005
      %v2348 = vpop.f32.mrf.mxu0
      %v2349 = vadd.f32 %v1968, %v2348
      %2350 = vmatmul.f32.gmra.mxu0 %v2008
      %v2351 = vpop.f32.mrf.mxu0
      %v2352 = vadd.f32 %v1973, %v2351
      %2353 = vmatmul.f32.gmra.mxu0 %v2011
      %v2354 = vpop.f32.mrf.mxu0
      %v2355 = vadd.f32 %v1978, %v2354
      %2356 = vmatmul.f32.gmra.mxu0 %v2014
      %v2357 = vpop.f32.mrf.mxu0
      %v2358 = vadd.f32 %v1983, %v2357
      %2359 = vmatmul.f32.gmra.mxu0 %v2017
      %v2360 = vpop.f32.mrf.mxu0
      %v2361 = vadd.f32 %v1988, %v2360
      %2362 = vmatmul.f32.gmra.mxu0 %v2020
      %v2363 = vpop.f32.mrf.mxu0
      %v2364 = vadd.f32 %v1993, %v2363
      %2365 = vmatmul.f32.gmra.mxu0 %v2023
      %v2366 = vpop.f32.mrf.mxu0
      %v2367 = vadd.f32 %v1998, %v2366
      %2368 = vdwg.mxu0
      %v2369 = vmax.f32 %v2059, 0.0
      %v2370 = vmax.f32 %v2100, 0.0
      %v2371 = vmax.f32 %v2141, 0.0
      %v2372 = vmax.f32 %v2182, 0.0
      %v2373 = vmax.f32 %v2223, 0.0
      %v2374 = vmax.f32 %v2264, 0.0
      %v2375 = vmax.f32 %v2305, 0.0
      %v2376 = vmax.f32 %v2346, 0.0
      %v2377 = vmax.f32 %v2062, 0.0
      %v2378 = vmax.f32 %v2103, 0.0
      %v2379 = vmax.f32 %v2144, 0.0
      %v2380 = vmax.f32 %v2185, 0.0
      %v2381 = vmax.f32 %v2226, 0.0
      %v2382 = vmax.f32 %v2267, 0.0
      %v2383 = vmax.f32 %v2308, 0.0
      %v2384 = vmax.f32 %v2349, 0.0
      %v2385 = vmax.f32 %v2065, 0.0
      %v2386 = vmax.f32 %v2106, 0.0
      %v2387 = vmax.f32 %v2147, 0.0
      %v2388 = vmax.f32 %v2188, 0.0
      %v2389 = vmax.f32 %v2229, 0.0
      %v2390 = vmax.f32 %v2270, 0.0
      %v2391 = vmax.f32 %v2311, 0.0
      %v2392 = vmax.f32 %v2352, 0.0
      %v2393 = vmax.f32 %v2068, 0.0
      %v2394 = vmax.f32 %v2109, 0.0
      %v2395 = vmax.f32 %v2150, 0.0
      %v2396 = vmax.f32 %v2191, 0.0
      %v2397 = vmax.f32 %v2232, 0.0
      %v2398 = vmax.f32 %v2273, 0.0
      %v2399 = vmax.f32 %v2314, 0.0
      %v2400 = vmax.f32 %v2355, 0.0
      %v2401 = vmax.f32 %v2071, 0.0
      %v2402 = vmax.f32 %v2112, 0.0
      %v2403 = vmax.f32 %v2153, 0.0
      %v2404 = vmax.f32 %v2194, 0.0
      %v2405 = vmax.f32 %v2235, 0.0
      %v2406 = vmax.f32 %v2276, 0.0
      %v2407 = vmax.f32 %v2317, 0.0
      %v2408 = vmax.f32 %v2358, 0.0
      %v2409 = vmax.f32 %v2074, 0.0
      %v2410 = vmax.f32 %v2115, 0.0
      %v2411 = vmax.f32 %v2156, 0.0
      %v2412 = vmax.f32 %v2197, 0.0
      %v2413 = vmax.f32 %v2238, 0.0
      %v2414 = vmax.f32 %v2279, 0.0
      %v2415 = vmax.f32 %v2320, 0.0
      %v2416 = vmax.f32 %v2361, 0.0
      %v2417 = vmax.f32 %v2077, 0.0
      %v2418 = vmax.f32 %v2118, 0.0
      %v2419 = vmax.f32 %v2159, 0.0
      %v2420 = vmax.f32 %v2200, 0.0
      %v2421 = vmax.f32 %v2241, 0.0
      %v2422 = vmax.f32 %v2282, 0.0
      %v2423 = vmax.f32 %v2323, 0.0
      %v2424 = vmax.f32 %v2364, 0.0
      %v2425 = vmax.f32 %v2080, 0.0
      %v2426 = vmax.f32 %v2121, 0.0
      %v2427 = vmax.f32 %v2162, 0.0
      %v2428 = vmax.f32 %v2203, 0.0
      %v2429 = vmax.f32 %v2244, 0.0
      %v2430 = vmax.f32 %v2285, 0.0
      %v2431 = vmax.f32 %v2326, 0.0
      %v2432 = vmax.f32 %v2367, 0.0
      %2434 = vset.pattern.permute.xlu0 0
      %2435 = vperm.xlu0 %2434, %v303
      %v2436 = vpop.permute.xlu0 %2435
      %vm2438 = vcmask 523264
      %v2440 = vsel %vm2438, %v302, 0
      %2442 = vmatpush.msra.mxu0 0.0
      %2443 = vmatpush.msra.mxu0 0.0
      %2444 = vmatpush.msra.mxu0 0.0
      %2445 = vmatpush.msra.mxu0 0.0
      %2446 = vmatpush.msra.mxu0 0.0
      %2447 = vmatpush.msra.mxu0 0.0
      %2448 = vmatpush.msra.mxu0 0.0
      %2449 = vmatpush.msra.mxu0 0.0
      %2450 = vmatpush.msra.mxu0 %v2425
      %2451 = vmatpush.msra.mxu0 %v2417
      %2452 = vmatpush.msra.mxu0 %v2409
      %2453 = vmatpush.msra.mxu0 %v2401
      %2454 = vmatpush.msra.mxu0 %v2393
      %2455 = vmatpush.msra.mxu0 %v2385
      %2456 = vmatpush.msra.mxu0 %v2377
      %2457 = vmatpush.msra.mxu0 %v2369
      %2458 = vmatmul.f32.gmra.mxu0 %v2440
      %v2459 = vpop.f32.mrf.mxu0
      %v2460 = vadd.f32 %v2436, %v2459
      %2461 = vdwg.mxu0
      %2462 = vmatpush.msra.mxu0 0.0
      %2463 = vmatpush.msra.mxu0 0.0
      %2464 = vmatpush.msra.mxu0 0.0
      %2465 = vmatpush.msra.mxu0 0.0
      %2466 = vmatpush.msra.mxu0 0.0
      %2467 = vmatpush.msra.mxu0 0.0
      %2468 = vmatpush.msra.mxu0 0.0
      %2469 = vmatpush.msra.mxu0 0.0
      %2470 = vmatpush.msra.mxu0 %v2426
      %2471 = vmatpush.msra.mxu0 %v2418
      %2472 = vmatpush.msra.mxu0 %v2410
      %2473 = vmatpush.msra.mxu0 %v2402
      %2474 = vmatpush.msra.mxu0 %v2394
      %2475 = vmatpush.msra.mxu0 %v2386
      %2476 = vmatpush.msra.mxu0 %v2378
      %2477 = vmatpush.msra.mxu0 %v2370
      %2478 = vmatmul.f32.gmra.mxu0 %v2440
      %v2479 = vpop.f32.mrf.mxu0
      %v2480 = vadd.f32 %v2436, %v2479
      %2481 = vdwg.mxu0
      %2482 = vmatpush.msra.mxu0 0.0
      %2483 = vmatpush.msra.mxu0 0.0
      %2484 = vmatpush.msra.mxu0 0.0
      %2485 = vmatpush.msra.mxu0 0.0
      %2486 = vmatpush.msra.mxu0 0.0
      %2487 = vmatpush.msra.mxu0 0.0
      %2488 = vmatpush.msra.mxu0 0.0
      %2489 = vmatpush.msra.mxu0 0.0
      %2490 = vmatpush.msra.mxu0 %v2427
      %2491 = vmatpush.msra.mxu0 %v2419
      %2492 = vmatpush.msra.mxu0 %v2411
      %2493 = vmatpush.msra.mxu0 %v2403
      %2494 = vmatpush.msra.mxu0 %v2395
      %2495 = vmatpush.msra.mxu0 %v2387
      %2496 = vmatpush.msra.mxu0 %v2379
      %2497 = vmatpush.msra.mxu0 %v2371
      %2498 = vmatmul.f32.gmra.mxu0 %v2440
      %v2499 = vpop.f32.mrf.mxu0
      %v2500 = vadd.f32 %v2436, %v2499
      %2501 = vdwg.mxu0
      %2502 = vmatpush.msra.mxu0 0.0
      %2503 = vmatpush.msra.mxu0 0.0
      %2504 = vmatpush.msra.mxu0 0.0
      %2505 = vmatpush.msra.mxu0 0.0
      %2506 = vmatpush.msra.mxu0 0.0
      %2507 = vmatpush.msra.mxu0 0.0
      %2508 = vmatpush.msra.mxu0 0.0
      %2509 = vmatpush.msra.mxu0 0.0
      %2510 = vmatpush.msra.mxu0 %v2428
      %2511 = vmatpush.msra.mxu0 %v2420
      %2512 = vmatpush.msra.mxu0 %v2412
      %2513 = vmatpush.msra.mxu0 %v2404
      %2514 = vmatpush.msra.mxu0 %v2396
      %2515 = vmatpush.msra.mxu0 %v2388
      %2516 = vmatpush.msra.mxu0 %v2380
      %2517 = vmatpush.msra.mxu0 %v2372
      %2518 = vmatmul.f32.gmra.mxu0 %v2440
      %v2519 = vpop.f32.mrf.mxu0
      %v2520 = vadd.f32 %v2436, %v2519
      %2521 = vdwg.mxu0
      %2522 = vmatpush.msra.mxu0 0.0
      %2523 = vmatpush.msra.mxu0 0.0
      %2524 = vmatpush.msra.mxu0 0.0
      %2525 = vmatpush.msra.mxu0 0.0
      %2526 = vmatpush.msra.mxu0 0.0
      %2527 = vmatpush.msra.mxu0 0.0
      %2528 = vmatpush.msra.mxu0 0.0
      %2529 = vmatpush.msra.mxu0 0.0
      %2530 = vmatpush.msra.mxu0 %v2429
      %2531 = vmatpush.msra.mxu0 %v2421
      %2532 = vmatpush.msra.mxu0 %v2413
      %2533 = vmatpush.msra.mxu0 %v2405
      %2534 = vmatpush.msra.mxu0 %v2397
      %2535 = vmatpush.msra.mxu0 %v2389
      %2536 = vmatpush.msra.mxu0 %v2381
      %2537 = vmatpush.msra.mxu0 %v2373
      %2538 = vmatmul.f32.gmra.mxu0 %v2440
      %v2539 = vpop.f32.mrf.mxu0
      %v2540 = vadd.f32 %v2436, %v2539
      %2541 = vdwg.mxu0
      %2542 = vmatpush.msra.mxu0 0.0
      %2543 = vmatpush.msra.mxu0 0.0
      %2544 = vmatpush.msra.mxu0 0.0
      %2545 = vmatpush.msra.mxu0 0.0
      %2546 = vmatpush.msra.mxu0 0.0
      %2547 = vmatpush.msra.mxu0 0.0
      %2548 = vmatpush.msra.mxu0 0.0
      %2549 = vmatpush.msra.mxu0 0.0
      %2550 = vmatpush.msra.mxu0 %v2430
      %2551 = vmatpush.msra.mxu0 %v2422
      %2552 = vmatpush.msra.mxu0 %v2414
      %2553 = vmatpush.msra.mxu0 %v2406
      %2554 = vmatpush.msra.mxu0 %v2398
      %2555 = vmatpush.msra.mxu0 %v2390
      %2556 = vmatpush.msra.mxu0 %v2382
      %2557 = vmatpush.msra.mxu0 %v2374
      %2558 = vmatmul.f32.gmra.mxu0 %v2440
      %v2559 = vpop.f32.mrf.mxu0
      %v2560 = vadd.f32 %v2436, %v2559
      %2561 = vdwg.mxu0
      %2562 = vmatpush.msra.mxu0 0.0
      %2563 = vmatpush.msra.mxu0 0.0
      %2564 = vmatpush.msra.mxu0 0.0
      %2565 = vmatpush.msra.mxu0 0.0
      %2566 = vmatpush.msra.mxu0 0.0
      %2567 = vmatpush.msra.mxu0 0.0
      %2568 = vmatpush.msra.mxu0 0.0
      %2569 = vmatpush.msra.mxu0 0.0
      %2570 = vmatpush.msra.mxu0 %v2431
      %2571 = vmatpush.msra.mxu0 %v2423
      %2572 = vmatpush.msra.mxu0 %v2415
      %2573 = vmatpush.msra.mxu0 %v2407
      %2574 = vmatpush.msra.mxu0 %v2399
      %2575 = vmatpush.msra.mxu0 %v2391
      %2576 = vmatpush.msra.mxu0 %v2383
      %2577 = vmatpush.msra.mxu0 %v2375
      %2578 = vmatmul.f32.gmra.mxu0 %v2440
      %v2579 = vpop.f32.mrf.mxu0
      %v2580 = vadd.f32 %v2436, %v2579
      %2581 = vdwg.mxu0
      %2582 = vmatpush.msra.mxu0 0.0
      %2583 = vmatpush.msra.mxu0 0.0
      %2584 = vmatpush.msra.mxu0 0.0
      %2585 = vmatpush.msra.mxu0 0.0
      %2586 = vmatpush.msra.mxu0 0.0
      %2587 = vmatpush.msra.mxu0 0.0
      %2588 = vmatpush.msra.mxu0 0.0
      %2589 = vmatpush.msra.mxu0 0.0
      %2590 = vmatpush.msra.mxu0 %v2432
      %2591 = vmatpush.msra.mxu0 %v2424
      %2592 = vmatpush.msra.mxu0 %v2416
      %2593 = vmatpush.msra.mxu0 %v2408
      %2594 = vmatpush.msra.mxu0 %v2400
      %2595 = vmatpush.msra.mxu0 %v2392
      %2596 = vmatpush.msra.mxu0 %v2384
      %2597 = vmatpush.msra.mxu0 %v2376
      %2598 = vmatmul.f32.gmra.mxu0 %v2440
      %v2599 = vpop.f32.mrf.mxu0
      %v2600 = vadd.f32 %v2436, %v2599
      %2601 = vdwg.mxu0
      %v2602 = vmul.f32 %v282, %v282
      %v2603 = vmul.f32 %v283, %v283
      %v2604 = vmul.f32 %v284, %v284
      %v2605 = vmul.f32 %v285, %v285
      %2610 = vst [vmem:[#allocation1] ss:$2 sm:$0xff] %v2602
      %s2611 = scalar_lea.vmem [#allocation1], 16
      %2612 = vst [vmem:[%s2611] ss:$2 sm:$0xff] %v2603
      %s2613 = scalar_lea.vmem [#allocation1], 32
      %2614 = vst [vmem:[%s2613] ss:$2 sm:$0xff] %v2604
      %s2615 = scalar_lea.vmem [#allocation1], 48
      %2616 = vst [vmem:[%s2615] ss:$2 sm:$0xff] %v2605
      %v2617 = vld.sshfl [vmem:[#allocation1] sm:$0xff pattern:$0x75316420]
      %v2618 = vld.sshfl [vmem:[#allocation1 + $0x8] sm:$0xff pattern:$0x75316420]
      %v2619 = vld.sshfl [vmem:[#allocation1 + $0x10] sm:$0xff pattern:$0x75316420]
      %v2620 = vld.sshfl [vmem:[#allocation1 + $0x18] sm:$0xff pattern:$0x75316420]
      %v2621 = vld.sshfl [vmem:[#allocation1 + $0x20] sm:$0xff pattern:$0x75316420]
      %v2622 = vld.sshfl [vmem:[#allocation1 + $0x28] sm:$0xff pattern:$0x75316420]
      %v2623 = vld.sshfl [vmem:[#allocation1 + $0x30] sm:$0xff pattern:$0x75316420]
      %v2624 = vld.sshfl [vmem:[#allocation1 + $0x38] sm:$0xff pattern:$0x75316420]
      %v2633 = vsel %vm1897, %v2617, 0.0
      %v2634 = vrot.slane %v2633, 4
      %v2635 = vadd.f32 %v2633, %v2634
      %v2636 = vrot.slane %v2635, 2
      %v2637 = vadd.f32 %v2635, %v2636
      %v2638 = vrot.slane %v2637, 1
      %v2639 = vadd.f32 %v2637, %v2638
      %v2640 = vsel %vm1897, %v2618, 0.0
      %v2641 = vrot.slane %v2640, 4
      %v2642 = vadd.f32 %v2640, %v2641
      %v2643 = vrot.slane %v2642, 2
      %v2644 = vadd.f32 %v2642, %v2643
      %v2645 = vrot.slane %v2644, 1
      %v2646 = vadd.f32 %v2644, %v2645
      %v2647 = vsel %vm1897, %v2619, 0.0
      %v2648 = vrot.slane %v2647, 4
      %v2649 = vadd.f32 %v2647, %v2648
      %v2650 = vrot.slane %v2649, 2
      %v2651 = vadd.f32 %v2649, %v2650
      %v2652 = vrot.slane %v2651, 1
      %v2653 = vadd.f32 %v2651, %v2652
      %v2654 = vsel %vm1897, %v2620, 0.0
      %v2655 = vrot.slane %v2654, 4
      %v2656 = vadd.f32 %v2654, %v2655
      %v2657 = vrot.slane %v2656, 2
      %v2658 = vadd.f32 %v2656, %v2657
      %v2659 = vrot.slane %v2658, 1
      %v2660 = vadd.f32 %v2658, %v2659
      %v2661 = vsel %vm1897, %v2621, 0.0
      %v2662 = vrot.slane %v2661, 4
      %v2663 = vadd.f32 %v2661, %v2662
      %v2664 = vrot.slane %v2663, 2
      %v2665 = vadd.f32 %v2663, %v2664
      %v2666 = vrot.slane %v2665, 1
      %v2667 = vadd.f32 %v2665, %v2666
      %v2668 = vsel %vm1897, %v2622, 0.0
      %v2669 = vrot.slane %v2668, 4
      %v2670 = vadd.f32 %v2668, %v2669
      %v2671 = vrot.slane %v2670, 2
      %v2672 = vadd.f32 %v2670, %v2671
      %v2673 = vrot.slane %v2672, 1
      %v2674 = vadd.f32 %v2672, %v2673
      %v2675 = vsel %vm1897, %v2623, 0.0
      %v2676 = vrot.slane %v2675, 4
      %v2677 = vadd.f32 %v2675, %v2676
      %v2678 = vrot.slane %v2677, 2
      %v2679 = vadd.f32 %v2677, %v2678
      %v2680 = vrot.slane %v2679, 1
      %v2681 = vadd.f32 %v2679, %v2680
      %v2682 = vsel %vm1897, %v2624, 0.0
      %v2683 = vrot.slane %v2682, 4
      %v2684 = vadd.f32 %v2682, %v2683
      %v2685 = vrot.slane %v2684, 2
      %v2686 = vadd.f32 %v2684, %v2685
      %v2687 = vrot.slane %v2686, 1
      %v2688 = vadd.f32 %v2686, %v2687
      %v2689 = vsub.f32 0.0, %v2639
      %v2690 = vsub.f32 0.0, %v2646
      %v2691 = vsub.f32 0.0, %v2653
      %v2692 = vsub.f32 0.0, %v2660
      %v2693 = vsub.f32 0.0, %v2667
      %v2694 = vsub.f32 0.0, %v2674
      %v2695 = vsub.f32 0.0, %v2681
      %v2696 = vsub.f32 0.0, %v2688
      %v2697 = vmul.f32 %v2689, 2.0
      %v2698 = vmul.f32 %v2690, 2.0
      %v2699 = vmul.f32 %v2691, 2.0
      %v2700 = vmul.f32 %v2692, 2.0
      %v2701 = vmul.f32 %v2693, 2.0
      %v2702 = vmul.f32 %v2694, 2.0
      %v2703 = vmul.f32 %v2695, 2.0
      %v2704 = vmul.f32 %v2696, 2.0
      %v2705 = vmul.f32 %v2697, 1.442695
      %v2706 = vpow.pop %v2705
      %v2707 = vmul.f32 %v2698, 1.442695
      %v2708 = vpow.pop %v2707
      %v2709 = vmul.f32 %v2699, 1.442695
      %v2710 = vpow.pop %v2709
      %v2711 = vmul.f32 %v2700, 1.442695
      %v2712 = vpow.pop %v2711
      %v2713 = vmul.f32 %v2701, 1.442695
      %v2714 = vpow.pop %v2713
      %v2715 = vmul.f32 %v2702, 1.442695
      %v2716 = vpow.pop %v2715
      %v2717 = vmul.f32 %v2703, 1.442695
      %v2718 = vpow.pop %v2717
      %v2719 = vmul.f32 %v2704, 1.442695
      %v2720 = vpow.pop %v2719
      %v2721 = vmul.f32 %v2706, 10.0
      %v2722 = vmul.f32 %v2708, 10.0
      %v2723 = vmul.f32 %v2710, 10.0
      %v2724 = vmul.f32 %v2712, 10.0
      %v2725 = vmul.f32 %v2714, 10.0
      %v2726 = vmul.f32 %v2716, 10.0
      %v2727 = vmul.f32 %v2718, 10.0
      %v2728 = vmul.f32 %v2720, 10.0
      %v2729 = vadd.f32 %v2460, %v2721
      %v2730 = vadd.f32 %v2480, %v2722
      %v2731 = vadd.f32 %v2500, %v2723
      %v2732 = vadd.f32 %v2520, %v2724
      %v2733 = vadd.f32 %v2540, %v2725
      %v2734 = vadd.f32 %v2560, %v2726
      %v2735 = vadd.f32 %v2580, %v2727
      %v2736 = vadd.f32 %v2600, %v2728
      %v2737 = vmul.f32 %v2729, 1.442695
      %v2738 = vpow.pop %v2737
      %v2739 = vmul.f32 %v2730, 1.442695
      %v2740 = vpow.pop %v2739
      %v2741 = vmul.f32 %v2731, 1.442695
      %v2742 = vpow.pop %v2741
      %v2743 = vmul.f32 %v2732, 1.442695
      %v2744 = vpow.pop %v2743
      %v2745 = vmul.f32 %v2733, 1.442695
      %v2746 = vpow.pop %v2745
      %v2747 = vmul.f32 %v2734, 1.442695
      %v2748 = vpow.pop %v2747
      %v2749 = vmul.f32 %v2735, 1.442695
      %v2750 = vpow.pop %v2749
      %v2751 = vmul.f32 %v2736, 1.442695
      %v2752 = vpow.pop %v2751
      %v2753 = vxor.u32 %v2460, 2147483648
      %v2754 = vxor.u32 %v2480, 2147483648
      %v2755 = vxor.u32 %v2500, 2147483648
      %v2756 = vxor.u32 %v2520, 2147483648
      %v2757 = vxor.u32 %v2540, 2147483648
      %v2758 = vxor.u32 %v2560, 2147483648
      %v2759 = vxor.u32 %v2580, 2147483648
      %v2760 = vxor.u32 %v2600, 2147483648
      %v2761 = vmul.f32 %v2753, 1.442695
      %v2762 = vpow.pop %v2761
      %v2763 = vmul.f32 %v2754, 1.442695
      %v2764 = vpow.pop %v2763
      %v2765 = vmul.f32 %v2755, 1.442695
      %v2766 = vpow.pop %v2765
      %v2767 = vmul.f32 %v2756, 1.442695
      %v2768 = vpow.pop %v2767
      %v2769 = vmul.f32 %v2757, 1.442695
      %v2770 = vpow.pop %v2769
      %v2771 = vmul.f32 %v2758, 1.442695
      %v2772 = vpow.pop %v2771
      %v2773 = vmul.f32 %v2759, 1.442695
      %v2774 = vpow.pop %v2773
      %v2775 = vmul.f32 %v2760, 1.442695
      %v2776 = vpow.pop %v2775
      %v2777 = vadd.f32 %v2762, 1.0
      %v2778 = vadd.f32 %v2764, 1.0
      %v2779 = vadd.f32 %v2766, 1.0
      %v2780 = vadd.f32 %v2768, 1.0
      %v2781 = vadd.f32 %v2770, 1.0
      %v2782 = vadd.f32 %v2772, 1.0
      %v2783 = vadd.f32 %v2774, 1.0
      %v2784 = vadd.f32 %v2776, 1.0
      %v2785 = vrcp.pop %v2777
      %v2786 = vmul.f32 %v2777, %v2785
      %v2787 = vsub.f32 1.0, %v2786
      %v2788 = vmul.f32 %v2785, %v2787
      %v2789 = vadd.f32 %v2785, %v2788
      %vm2790 = vweird.f32 %v2777
      %vm2791 = vweird.f32 %v2785
      %vm2792 = vmor %vm2790, %vm2791
      %v2793 = vsel %vm2792, %v2785, %v2789
      %v2794 = vand.u32 2147483647, %v2777
      %vm2795 = vcmp.eq.f32.partialorder %v2794, 8.507059e+37
      %v2796 = vand.u32 %v2777, 2147483648
      %v2797 = vor.u32 1.1754944e-38, %v2796
      %v2798 = vsel %vm2795, %v2797, %v2793
      %v2799 = vmul.f32 1.0, %v2798
      %v2800 = vrcp.pop %v2778
      %v2801 = vmul.f32 %v2778, %v2800
      %v2802 = vsub.f32 1.0, %v2801
      %v2803 = vmul.f32 %v2800, %v2802
      %v2804 = vadd.f32 %v2800, %v2803
      %vm2805 = vweird.f32 %v2778
      %vm2806 = vweird.f32 %v2800
      %vm2807 = vmor %vm2805, %vm2806
      %v2808 = vsel %vm2807, %v2800, %v2804
      %v2809 = vand.u32 2147483647, %v2778
      %vm2810 = vcmp.eq.f32.partialorder %v2809, 8.507059e+37
      %v2811 = vand.u32 %v2778, 2147483648
      %v2812 = vor.u32 1.1754944e-38, %v2811
      %v2813 = vsel %vm2810, %v2812, %v2808
      %v2814 = vmul.f32 1.0, %v2813
      %v2815 = vrcp.pop %v2779
      %v2816 = vmul.f32 %v2779, %v2815
      %v2817 = vsub.f32 1.0, %v2816
      %v2818 = vmul.f32 %v2815, %v2817
      %v2819 = vadd.f32 %v2815, %v2818
      %vm2820 = vweird.f32 %v2779
      %vm2821 = vweird.f32 %v2815
      %vm2822 = vmor %vm2820, %vm2821
      %v2823 = vsel %vm2822, %v2815, %v2819
      %v2824 = vand.u32 2147483647, %v2779
      %vm2825 = vcmp.eq.f32.partialorder %v2824, 8.507059e+37
      %v2826 = vand.u32 %v2779, 2147483648
      %v2827 = vor.u32 1.1754944e-38, %v2826
      %v2828 = vsel %vm2825, %v2827, %v2823
      %v2829 = vmul.f32 1.0, %v2828
      %v2830 = vrcp.pop %v2780
      %v2831 = vmul.f32 %v2780, %v2830
      %v2832 = vsub.f32 1.0, %v2831
      %v2833 = vmul.f32 %v2830, %v2832
      %v2834 = vadd.f32 %v2830, %v2833
      %vm2835 = vweird.f32 %v2780
      %vm2836 = vweird.f32 %v2830
      %vm2837 = vmor %vm2835, %vm2836
      %v2838 = vsel %vm2837, %v2830, %v2834
      %v2839 = vand.u32 2147483647, %v2780
      %vm2840 = vcmp.eq.f32.partialorder %v2839, 8.507059e+37
      %v2841 = vand.u32 %v2780, 2147483648
      %v2842 = vor.u32 1.1754944e-38, %v2841
      %v2843 = vsel %vm2840, %v2842, %v2838
      %v2844 = vmul.f32 1.0, %v2843
      %v2845 = vrcp.pop %v2781
      %v2846 = vmul.f32 %v2781, %v2845
      %v2847 = vsub.f32 1.0, %v2846
      %v2848 = vmul.f32 %v2845, %v2847
      %v2849 = vadd.f32 %v2845, %v2848
      %vm2850 = vweird.f32 %v2781
      %vm2851 = vweird.f32 %v2845
      %vm2852 = vmor %vm2850, %vm2851
      %v2853 = vsel %vm2852, %v2845, %v2849
      %v2854 = vand.u32 2147483647, %v2781
      %vm2855 = vcmp.eq.f32.partialorder %v2854, 8.507059e+37
      %v2856 = vand.u32 %v2781, 2147483648
      %v2857 = vor.u32 1.1754944e-38, %v2856
      %v2858 = vsel %vm2855, %v2857, %v2853
      %v2859 = vmul.f32 1.0, %v2858
      %v2860 = vrcp.pop %v2782
      %v2861 = vmul.f32 %v2782, %v2860
      %v2862 = vsub.f32 1.0, %v2861
      %v2863 = vmul.f32 %v2860, %v2862
      %v2864 = vadd.f32 %v2860, %v2863
      %vm2865 = vweird.f32 %v2782
      %vm2866 = vweird.f32 %v2860
      %vm2867 = vmor %vm2865, %vm2866
      %v2868 = vsel %vm2867, %v2860, %v2864
      %v2869 = vand.u32 2147483647, %v2782
      %vm2870 = vcmp.eq.f32.partialorder %v2869, 8.507059e+37
      %v2871 = vand.u32 %v2782, 2147483648
      %v2872 = vor.u32 1.1754944e-38, %v2871
      %v2873 = vsel %vm2870, %v2872, %v2868
      %v2874 = vmul.f32 1.0, %v2873
      %v2875 = vrcp.pop %v2783
      %v2876 = vmul.f32 %v2783, %v2875
      %v2877 = vsub.f32 1.0, %v2876
      %v2878 = vmul.f32 %v2875, %v2877
      %v2879 = vadd.f32 %v2875, %v2878
      %vm2880 = vweird.f32 %v2783
      %vm2881 = vweird.f32 %v2875
      %vm2882 = vmor %vm2880, %vm2881
      %v2883 = vsel %vm2882, %v2875, %v2879
      %v2884 = vand.u32 2147483647, %v2783
      %vm2885 = vcmp.eq.f32.partialorder %v2884, 8.507059e+37
      %v2886 = vand.u32 %v2783, 2147483648
      %v2887 = vor.u32 1.1754944e-38, %v2886
      %v2888 = vsel %vm2885, %v2887, %v2883
      %v2889 = vmul.f32 1.0, %v2888
      %v2890 = vrcp.pop %v2784
      %v2891 = vmul.f32 %v2784, %v2890
      %v2892 = vsub.f32 1.0, %v2891
      %v2893 = vmul.f32 %v2890, %v2892
      %v2894 = vadd.f32 %v2890, %v2893
      %vm2895 = vweird.f32 %v2784
      %vm2896 = vweird.f32 %v2890
      %vm2897 = vmor %vm2895, %vm2896
      %v2898 = vsel %vm2897, %v2890, %v2894
      %v2899 = vand.u32 2147483647, %v2784
      %vm2900 = vcmp.eq.f32.partialorder %v2899, 8.507059e+37
      %v2901 = vand.u32 %v2784, 2147483648
      %v2902 = vor.u32 1.1754944e-38, %v2901
      %v2903 = vsel %vm2900, %v2902, %v2898
      %v2904 = vmul.f32 1.0, %v2903
      %v2905 = vmul.f32 %v471, -4.9999584e-05
      %v2906 = vmul.f32 %v626, -4.9999584e-05
      %v2907 = vmul.f32 %v781, -4.9999584e-05
      %v2908 = vmul.f32 %v936, -4.9999584e-05
      %v2909 = vmul.f32 %v1090, -4.9999584e-05
      %v2910 = vmul.f32 %v1244, -4.9999584e-05
      %v2911 = vmul.f32 %v1398, -4.9999584e-05
      %v2912 = vmul.f32 %v1552, -4.9999584e-05
      %v2913 = vmul.f32 %v1090, 0.009999833
      %v2914 = vmul.f32 %v1244, 0.009999833
      %v2915 = vmul.f32 %v1398, 0.009999833
      %v2916 = vmul.f32 %v1552, 0.009999833
      %v2917 = vsub.f32 0.0, %v471
      %v2918 = vsub.f32 0.0, %v626
      %v2919 = vsub.f32 0.0, %v781
      %v2920 = vsub.f32 0.0, %v936
      %v2921 = vmul.f32 %v2917, 0.009999833
      %v2922 = vmul.f32 %v2918, 0.009999833
      %v2923 = vmul.f32 %v2919, 0.009999833
      %v2924 = vmul.f32 %v2920, 0.009999833
      %v2925 = vmul.f32 %v1557, -0.00019999333
      %v2926 = vmul.f32 %v1558, -0.00019999333
      %v2927 = vmul.f32 %v1559, -0.00019999333
      %v2928 = vmul.f32 %v1560, -0.00019999333
      %v2929 = vmul.f32 %v1569, -0.00019999333
      %v2930 = vmul.f32 %v1570, -0.00019999333
      %v2931 = vmul.f32 %v1571, -0.00019999333
      %v2932 = vmul.f32 %v1572, -0.00019999333
      %v2933 = vmul.f32 %v1569, 0.019998666
      %v2934 = vmul.f32 %v1570, 0.019998666
      %v2935 = vmul.f32 %v1571, 0.019998666
      %v2936 = vmul.f32 %v1572, 0.019998666
      %v2937 = vsub.f32 0.0, %v1557
      %v2938 = vsub.f32 0.0, %v1558
      %v2939 = vsub.f32 0.0, %v1559
      %v2940 = vsub.f32 0.0, %v1560
      %v2941 = vmul.f32 %v2937, 0.019998666
      %v2942 = vmul.f32 %v2938, 0.019998666
      %v2943 = vmul.f32 %v2939, 0.019998666
      %v2944 = vmul.f32 %v2940, 0.019998666
      %v2945 = vmul.f32 %v1577, -0.00079989334
      %v2946 = vmul.f32 %v1578, -0.00079989334
      %v2947 = vmul.f32 %v1579, -0.00079989334
      %v2948 = vmul.f32 %v1580, -0.00079989334
      %v2949 = vmul.f32 %v1589, -0.00079989334
      %v2950 = vmul.f32 %v1590, -0.00079989334
      %v2951 = vmul.f32 %v1591, -0.00079989334
      %v2952 = vmul.f32 %v1592, -0.00079989334
      %v2953 = vmul.f32 %v1589, 0.039989334
      %v2954 = vmul.f32 %v1590, 0.039989334
      %v2955 = vmul.f32 %v1591, 0.039989334
      %v2956 = vmul.f32 %v1592, 0.039989334
      %v2957 = vsub.f32 0.0, %v1577
      %v2958 = vsub.f32 0.0, %v1578
      %v2959 = vsub.f32 0.0, %v1579
      %v2960 = vsub.f32 0.0, %v1580
      %v2961 = vmul.f32 %v2957, 0.039989334
      %v2962 = vmul.f32 %v2958, 0.039989334
      %v2963 = vmul.f32 %v2959, 0.039989334
      %v2964 = vmul.f32 %v2960, 0.039989334
      %v2965 = vmul.f32 %v1597, -0.0031982937
      %v2966 = vmul.f32 %v1598, -0.0031982937
      %v2967 = vmul.f32 %v1599, -0.0031982937
      %v2968 = vmul.f32 %v1600, -0.0031982937
      %v2969 = vmul.f32 %v1609, -0.0031982937
      %v2970 = vmul.f32 %v1610, -0.0031982937
      %v2971 = vmul.f32 %v1611, -0.0031982937
      %v2972 = vmul.f32 %v1612, -0.0031982937
      %v2973 = vmul.f32 %v1609, 0.0799147
      %v2974 = vmul.f32 %v1610, 0.0799147
      %v2975 = vmul.f32 %v1611, 0.0799147
      %v2976 = vmul.f32 %v1612, 0.0799147
      %v2977 = vsub.f32 0.0, %v1597
      %v2978 = vsub.f32 0.0, %v1598
      %v2979 = vsub.f32 0.0, %v1599
      %v2980 = vsub.f32 0.0, %v1600
      %v2981 = vmul.f32 %v2977, 0.0799147
      %v2982 = vmul.f32 %v2978, 0.0799147
      %v2983 = vmul.f32 %v2979, 0.0799147
      %v2984 = vmul.f32 %v2980, 0.0799147
      %2989 = vst [vmem:[#allocation1] ss:$2 sm:$0xff] %v2905
      %s2990 = scalar_lea.vmem [#allocation1], 16
      %2991 = vst [vmem:[%s2990] ss:$2 sm:$0xff] %v2906
      %s2992 = scalar_lea.vmem [#allocation1], 32
      %2993 = vst [vmem:[%s2992] ss:$2 sm:$0xff] %v2907
      %s2994 = scalar_lea.vmem [#allocation1], 48
      %2995 = vst [vmem:[%s2994] ss:$2 sm:$0xff] %v2908
      %v2996 = vld.sshfl [vmem:[#allocation1] sm:$0xff pattern:$0x75316420]
      %v2997 = vld.sshfl [vmem:[#allocation1 + $0x8] sm:$0xff pattern:$0x75316420]
      %v2998 = vld.sshfl [vmem:[#allocation1 + $0x10] sm:$0xff pattern:$0x75316420]
      %v2999 = vld.sshfl [vmem:[#allocation1 + $0x18] sm:$0xff pattern:$0x75316420]
      %v3000 = vld.sshfl [vmem:[#allocation1 + $0x20] sm:$0xff pattern:$0x75316420]
      %v3001 = vld.sshfl [vmem:[#allocation1 + $0x28] sm:$0xff pattern:$0x75316420]
      %v3002 = vld.sshfl [vmem:[#allocation1 + $0x30] sm:$0xff pattern:$0x75316420]
      %v3003 = vld.sshfl [vmem:[#allocation1 + $0x38] sm:$0xff pattern:$0x75316420]
      %v3004 = vrot.slane %v2996, 5
      %v3005 = vrot.slane %v2997, 5
      %v3006 = vrot.slane %v2998, 5
      %v3007 = vrot.slane %v2999, 5
      %v3008 = vrot.slane %v3000, 5
      %v3009 = vrot.slane %v3001, 5
      %v3010 = vrot.slane %v3002, 5
      %v3011 = vrot.slane %v3003, 5
      %3024 = vst [vmem:[#allocation1] ss:$2 sm:$0xff] %v2909
      %s3025 = scalar_lea.vmem [#allocation1], 16
      %3026 = vst [vmem:[%s3025] ss:$2 sm:$0xff] %v2910
      %s3027 = scalar_lea.vmem [#allocation1], 32
      %3028 = vst [vmem:[%s3027] ss:$2 sm:$0xff] %v2911
      %s3029 = scalar_lea.vmem [#allocation1], 48
      %3030 = vst [vmem:[%s3029] ss:$2 sm:$0xff] %v2912
      %v3031 = vld.sshfl [vmem:[#allocation1] sm:$0xff pattern:$0x75316420]
      %v3032 = vld.sshfl [vmem:[#allocation1 + $0x8] sm:$0xff pattern:$0x75316420]
      %v3033 = vld.sshfl [vmem:[#allocation1 + $0x10] sm:$0xff pattern:$0x75316420]
      %v3034 = vld.sshfl [vmem:[#allocation1 + $0x18] sm:$0xff pattern:$0x75316420]
      %v3035 = vld.sshfl [vmem:[#allocation1 + $0x20] sm:$0xff pattern:$0x75316420]
      %v3036 = vld.sshfl [vmem:[#allocation1 + $0x28] sm:$0xff pattern:$0x75316420]
      %v3037 = vld.sshfl [vmem:[#allocation1 + $0x30] sm:$0xff pattern:$0x75316420]
      %v3038 = vld.sshfl [vmem:[#allocation1 + $0x38] sm:$0xff pattern:$0x75316420]
      %v3039 = vrot.slane %v3031, 2
      %v3040 = vrot.slane %v3032, 2
      %v3041 = vrot.slane %v3033, 2
      %v3042 = vrot.slane %v3034, 2
      %v3043 = vrot.slane %v3035, 2
      %v3044 = vrot.slane %v3036, 2
      %v3045 = vrot.slane %v3037, 2
      %v3046 = vrot.slane %v3038, 2
      %3059 = vst [vmem:[#allocation1] ss:$2 sm:$0xff] %v2925
      %s3060 = scalar_lea.vmem [#allocation1], 16
      %3061 = vst [vmem:[%s3060] ss:$2 sm:$0xff] %v2926
      %s3062 = scalar_lea.vmem [#allocation1], 32
      %3063 = vst [vmem:[%s3062] ss:$2 sm:$0xff] %v2927
      %s3064 = scalar_lea.vmem [#allocation1], 48
      %3065 = vst [vmem:[%s3064] ss:$2 sm:$0xff] %v2928
      %v3066 = vld.sshfl [vmem:[#allocation1] sm:$0xff pattern:$0x75316420]
      %v3067 = vld.sshfl [vmem:[#allocation1 + $0x8] sm:$0xff pattern:$0x75316420]
      %v3068 = vld.sshfl [vmem:[#allocation1 + $0x10] sm:$0xff pattern:$0x75316420]
      %v3069 = vld.sshfl [vmem:[#allocation1 + $0x18] sm:$0xff pattern:$0x75316420]
      %v3070 = vld.sshfl [vmem:[#allocation1 + $0x20] sm:$0xff pattern:$0x75316420]
      %v3071 = vld.sshfl [vmem:[#allocation1 + $0x28] sm:$0xff pattern:$0x75316420]
      %v3072 = vld.sshfl [vmem:[#allocation1 + $0x30] sm:$0xff pattern:$0x75316420]
      %v3073 = vld.sshfl [vmem:[#allocation1 + $0x38] sm:$0xff pattern:$0x75316420]
      %v3074 = vrot.slane %v3066, 7
      %v3075 = vrot.slane %v3067, 7
      %v3076 = vrot.slane %v3068, 7
      %v3077 = vrot.slane %v3069, 7
      %v3078 = vrot.slane %v3070, 7
      %v3079 = vrot.slane %v3071, 7
      %v3080 = vrot.slane %v3072, 7
      %v3081 = vrot.slane %v3073, 7
      %s3094 = scalar_lea.vmem [#allocation1], 1
      %3095 = vst [vmem:[%s3094] ss:$2 sm:$0xff] %v2929
      %s3096 = scalar_lea.vmem [#allocation1], 17
      %3097 = vst [vmem:[%s3096] ss:$2 sm:$0xff] %v2930
      %s3098 = scalar_lea.vmem [#allocation1], 33
      %3099 = vst [vmem:[%s3098] ss:$2 sm:$0xff] %v2931
      %s3100 = scalar_lea.vmem [#allocation1], 49
      %3101 = vst [vmem:[%s3100] ss:$2 sm:$0xff] %v2932
      %v3102 = vld.sshfl [vmem:[#allocation1] sm:$0xff pattern:$0x75316420]
      %v3103 = vld.sshfl [vmem:[#allocation1 + $0x8] sm:$0xff pattern:$0x75316420]
      %v3104 = vld.sshfl [vmem:[#allocation1 + $0x10] sm:$0xff pattern:$0x75316420]
      %v3105 = vld.sshfl [vmem:[#allocation1 + $0x18] sm:$0xff pattern:$0x75316420]
      %v3106 = vld.sshfl [vmem:[#allocation1 + $0x20] sm:$0xff pattern:$0x75316420]
      %v3107 = vld.sshfl [vmem:[#allocation1 + $0x28] sm:$0xff pattern:$0x75316420]
      %v3108 = vld.sshfl [vmem:[#allocation1 + $0x30] sm:$0xff pattern:$0x75316420]
      %v3109 = vld.sshfl [vmem:[#allocation1 + $0x38] sm:$0xff pattern:$0x75316420]
      %3122 = vst [vmem:[#allocation1] ss:$2 sm:$0xff] %v2945
      %s3123 = scalar_lea.vmem [#allocation1], 16
      %3124 = vst [vmem:[%s3123] ss:$2 sm:$0xff] %v2946
      %s3125 = scalar_lea.vmem [#allocation1], 32
      %3126 = vst [vmem:[%s3125] ss:$2 sm:$0xff] %v2947
      %s3127 = scalar_lea.vmem [#allocation1], 48
      %3128 = vst [vmem:[%s3127] ss:$2 sm:$0xff] %v2948
      %v3129 = vld.sshfl [vmem:[#allocation1] sm:$0xff pattern:$0x75316420]
      %v3130 = vld.sshfl [vmem:[#allocation1 + $0x8] sm:$0xff pattern:$0x75316420]
      %v3131 = vld.sshfl [vmem:[#allocation1 + $0x10] sm:$0xff pattern:$0x75316420]
      %v3132 = vld.sshfl [vmem:[#allocation1 + $0x18] sm:$0xff pattern:$0x75316420]
      %v3133 = vld.sshfl [vmem:[#allocation1 + $0x20] sm:$0xff pattern:$0x75316420]
      %v3134 = vld.sshfl [vmem:[#allocation1 + $0x28] sm:$0xff pattern:$0x75316420]
      %v3135 = vld.sshfl [vmem:[#allocation1 + $0x30] sm:$0xff pattern:$0x75316420]
      %v3136 = vld.sshfl [vmem:[#allocation1 + $0x38] sm:$0xff pattern:$0x75316420]
      %v3137 = vrot.slane %v3129, 1
      %v3138 = vrot.slane %v3130, 1
      %v3139 = vrot.slane %v3131, 1
      %v3140 = vrot.slane %v3132, 1
      %v3141 = vrot.slane %v3133, 1
      %v3142 = vrot.slane %v3134, 1
      %v3143 = vrot.slane %v3135, 1
      %v3144 = vrot.slane %v3136, 1
      %3157 = vst [vmem:[#allocation1] ss:$2 sm:$0xff] %v2949
      %s3158 = scalar_lea.vmem [#allocation1], 16
      %3159 = vst [vmem:[%s3158] ss:$2 sm:$0xff] %v2950
      %s3160 = scalar_lea.vmem [#allocation1], 32
      %3161 = vst [vmem:[%s3160] ss:$2 sm:$0xff] %v2951
      %s3162 = scalar_lea.vmem [#allocation1], 48
      %3163 = vst [vmem:[%s3162] ss:$2 sm:$0xff] %v2952
      %v3164 = vld.sshfl [vmem:[#allocation1] sm:$0xff pattern:$0x75316420]
      %v3165 = vld.sshfl [vmem:[#allocation1 + $0x8] sm:$0xff pattern:$0x75316420]
      %v3166 = vld.sshfl [vmem:[#allocation1 + $0x10] sm:$0xff pattern:$0x75316420]
      %v3167 = vld.sshfl [vmem:[#allocation1 + $0x18] sm:$0xff pattern:$0x75316420]
      %v3168 = vld.sshfl [vmem:[#allocation1 + $0x20] sm:$0xff pattern:$0x75316420]
      %v3169 = vld.sshfl [vmem:[#allocation1 + $0x28] sm:$0xff pattern:$0x75316420]
      %v3170 = vld.sshfl [vmem:[#allocation1 + $0x30] sm:$0xff pattern:$0x75316420]
      %v3171 = vld.sshfl [vmem:[#allocation1 + $0x38] sm:$0xff pattern:$0x75316420]
      %v3172 = vrot.slane %v3164, 6
      %v3173 = vrot.slane %v3165, 6
      %v3174 = vrot.slane %v3166, 6
      %v3175 = vrot.slane %v3167, 6
      %v3176 = vrot.slane %v3168, 6
      %v3177 = vrot.slane %v3169, 6
      %v3178 = vrot.slane %v3170, 6
      %v3179 = vrot.slane %v3171, 6
      %3192 = vst [vmem:[#allocation1] ss:$2 sm:$0xff] %v2965
      %s3193 = scalar_lea.vmem [#allocation1], 16
      %3194 = vst [vmem:[%s3193] ss:$2 sm:$0xff] %v2966
      %s3195 = scalar_lea.vmem [#allocation1], 32
      %3196 = vst [vmem:[%s3195] ss:$2 sm:$0xff] %v2967
      %s3197 = scalar_lea.vmem [#allocation1], 48
      %3198 = vst [vmem:[%s3197] ss:$2 sm:$0xff] %v2968
      %v3199 = vld.sshfl [vmem:[#allocation1] sm:$0xff pattern:$0x75316420]
      %v3200 = vld.sshfl [vmem:[#allocation1 + $0x8] sm:$0xff pattern:$0x75316420]
      %v3201 = vld.sshfl [vmem:[#allocation1 + $0x10] sm:$0xff pattern:$0x75316420]
      %v3202 = vld.sshfl [vmem:[#allocation1 + $0x18] sm:$0xff pattern:$0x75316420]
      %v3203 = vld.sshfl [vmem:[#allocation1 + $0x20] sm:$0xff pattern:$0x75316420]
      %v3204 = vld.sshfl [vmem:[#allocation1 + $0x28] sm:$0xff pattern:$0x75316420]
      %v3205 = vld.sshfl [vmem:[#allocation1 + $0x30] sm:$0xff pattern:$0x75316420]
      %v3206 = vld.sshfl [vmem:[#allocation1 + $0x38] sm:$0xff pattern:$0x75316420]
      %v3207 = vrot.slane %v3199, 3
      %v3208 = vrot.slane %v3200, 3
      %v3209 = vrot.slane %v3201, 3
      %v3210 = vrot.slane %v3202, 3
      %v3211 = vrot.slane %v3203, 3
      %v3212 = vrot.slane %v3204, 3
      %v3213 = vrot.slane %v3205, 3
      %v3214 = vrot.slane %v3206, 3
      %3227 = vst [vmem:[#allocation1] ss:$2 sm:$0xff] %v2969
      %s3228 = scalar_lea.vmem [#allocation1], 16
      %3229 = vst [vmem:[%s3228] ss:$2 sm:$0xff] %v2970
      %s3230 = scalar_lea.vmem [#allocation1], 32
      %3231 = vst [vmem:[%s3230] ss:$2 sm:$0xff] %v2971
      %s3232 = scalar_lea.vmem [#allocation1], 48
      %3233 = vst [vmem:[%s3232] ss:$2 sm:$0xff] %v2972
      %v3234 = vld.sshfl [vmem:[#allocation1] sm:$0xff pattern:$0x75316420]
      %v3235 = vld.sshfl [vmem:[#allocation1 + $0x8] sm:$0xff pattern:$0x75316420]
      %v3236 = vld.sshfl [vmem:[#allocation1 + $0x10] sm:$0xff pattern:$0x75316420]
      %v3237 = vld.sshfl [vmem:[#allocation1 + $0x18] sm:$0xff pattern:$0x75316420]
      %v3238 = vld.sshfl [vmem:[#allocation1 + $0x20] sm:$0xff pattern:$0x75316420]
      %v3239 = vld.sshfl [vmem:[#allocation1 + $0x28] sm:$0xff pattern:$0x75316420]
      %v3240 = vld.sshfl [vmem:[#allocation1 + $0x30] sm:$0xff pattern:$0x75316420]
      %v3241 = vld.sshfl [vmem:[#allocation1 + $0x38] sm:$0xff pattern:$0x75316420]
      %v3242 = vsel %vm1897, 0.0, %v3004
      %v3243 = vsel %vm1897, 0.0, %v3005
      %v3244 = vsel %vm1897, 0.0, %v3006
      %v3245 = vsel %vm1897, 0.0, %v3007
      %v3246 = vsel %vm1897, 0.0, %v3008
      %v3247 = vsel %vm1897, 0.0, %v3009
      %v3248 = vsel %vm1897, 0.0, %v3010
      %v3249 = vsel %vm1897, 0.0, %v3011
      %v3250 = vsel %vm1906, %v3242, %v3039
      %v3251 = vsel %vm1906, %v3243, %v3040
      %v3252 = vsel %vm1906, %v3244, %v3041
      %v3253 = vsel %vm1906, %v3245, %v3042
      %v3254 = vsel %vm1906, %v3246, %v3043
      %v3255 = vsel %vm1906, %v3247, %v3044
      %v3256 = vsel %vm1906, %v3248, %v3045
      %v3257 = vsel %vm1906, %v3249, %v3046
      %v3258 = vsel %vm1915, %v3039, %v3074
      %v3259 = vsel %vm1915, %v3040, %v3075
      %v3260 = vsel %vm1915, %v3041, %v3076
      %v3261 = vsel %vm1915, %v3042, %v3077
      %v3262 = vsel %vm1915, %v3043, %v3078
      %v3263 = vsel %vm1915, %v3044, %v3079
      %v3264 = vsel %vm1915, %v3045, %v3080
      %v3265 = vsel %vm1915, %v3046, %v3081
      %v3266 = vsel %vm1924, %v3258, %v3102
      %v3267 = vsel %vm1924, %v3259, %v3103
      %v3268 = vsel %vm1924, %v3260, %v3104
      %v3269 = vsel %vm1924, %v3261, %v3105
      %v3270 = vsel %vm1924, %v3262, %v3106
      %v3271 = vsel %vm1924, %v3263, %v3107
      %v3272 = vsel %vm1924, %v3264, %v3108
      %v3273 = vsel %vm1924, %v3265, %v3109
      %v3274 = vsel %vm1933, %v3266, %v3137
      %v3275 = vsel %vm1933, %v3267, %v3138
      %v3276 = vsel %vm1933, %v3268, %v3139
      %v3277 = vsel %vm1933, %v3269, %v3140
      %v3278 = vsel %vm1933, %v3270, %v3141
      %v3279 = vsel %vm1933, %v3271, %v3142
      %v3280 = vsel %vm1933, %v3272, %v3143
      %v3281 = vsel %vm1933, %v3273, %v3144
      %v3282 = vsel %vm1942, %v3137, %v3172
      %v3283 = vsel %vm1942, %v3138, %v3173
      %v3284 = vsel %vm1942, %v3139, %v3174
      %v3285 = vsel %vm1942, %v3140, %v3175
      %v3286 = vsel %vm1942, %v3141, %v3176
      %v3287 = vsel %vm1942, %v3142, %v3177
      %v3288 = vsel %vm1942, %v3143, %v3178
      %v3289 = vsel %vm1942, %v3144, %v3179
      %v3290 = vsel %vm1951, %v3282, %v3207
      %v3291 = vsel %vm1951, %v3283, %v3208
      %v3292 = vsel %vm1951, %v3284, %v3209
      %v3293 = vsel %vm1951, %v3285, %v3210
      %v3294 = vsel %vm1951, %v3286, %v3211
      %v3295 = vsel %vm1951, %v3287, %v3212
      %v3296 = vsel %vm1951, %v3288, %v3213
      %v3297 = vsel %vm1951, %v3289, %v3214
      %3302 = vst [vmem:[#allocation1] ss:$2 sm:$0xff] %v2913
      %s3303 = scalar_lea.vmem [#allocation1], 16
      %3304 = vst [vmem:[%s3303] ss:$2 sm:$0xff] %v2914
      %s3305 = scalar_lea.vmem [#allocation1], 32
      %3306 = vst [vmem:[%s3305] ss:$2 sm:$0xff] %v2915
      %s3307 = scalar_lea.vmem [#allocation1], 48
      %3308 = vst [vmem:[%s3307] ss:$2 sm:$0xff] %v2916
      %v3309 = vld.sshfl [vmem:[#allocation1] sm:$0xff pattern:$0x75316420]
      %v3310 = vld.sshfl [vmem:[#allocation1 + $0x8] sm:$0xff pattern:$0x75316420]
      %v3311 = vld.sshfl [vmem:[#allocation1 + $0x10] sm:$0xff pattern:$0x75316420]
      %v3312 = vld.sshfl [vmem:[#allocation1 + $0x18] sm:$0xff pattern:$0x75316420]
      %v3313 = vld.sshfl [vmem:[#allocation1 + $0x20] sm:$0xff pattern:$0x75316420]
      %v3314 = vld.sshfl [vmem:[#allocation1 + $0x28] sm:$0xff pattern:$0x75316420]
      %v3315 = vld.sshfl [vmem:[#allocation1 + $0x30] sm:$0xff pattern:$0x75316420]
      %v3316 = vld.sshfl [vmem:[#allocation1 + $0x38] sm:$0xff pattern:$0x75316420]
      %v3317 = vrot.slane %v3309, 5
      %v3318 = vrot.slane %v3310, 5
      %v3319 = vrot.slane %v3311, 5
      %v3320 = vrot.slane %v3312, 5
      %v3321 = vrot.slane %v3313, 5
      %v3322 = vrot.slane %v3314, 5
      %v3323 = vrot.slane %v3315, 5
      %v3324 = vrot.slane %v3316, 5
      %3337 = vst [vmem:[#allocation1] ss:$2 sm:$0xff] %v2921
      %s3338 = scalar_lea.vmem [#allocation1], 16
      %3339 = vst [vmem:[%s3338] ss:$2 sm:$0xff] %v2922
      %s3340 = scalar_lea.vmem [#allocation1], 32
      %3341 = vst [vmem:[%s3340] ss:$2 sm:$0xff] %v2923
      %s3342 = scalar_lea.vmem [#allocation1], 48
      %3343 = vst [vmem:[%s3342] ss:$2 sm:$0xff] %v2924
      %v3344 = vld.sshfl [vmem:[#allocation1] sm:$0xff pattern:$0x75316420]
      %v3345 = vld.sshfl [vmem:[#allocation1 + $0x8] sm:$0xff pattern:$0x75316420]
      %v3346 = vld.sshfl [vmem:[#allocation1 + $0x10] sm:$0xff pattern:$0x75316420]
      %v3347 = vld.sshfl [vmem:[#allocation1 + $0x18] sm:$0xff pattern:$0x75316420]
      %v3348 = vld.sshfl [vmem:[#allocation1 + $0x20] sm:$0xff pattern:$0x75316420]
      %v3349 = vld.sshfl [vmem:[#allocation1 + $0x28] sm:$0xff pattern:$0x75316420]
      %v3350 = vld.sshfl [vmem:[#allocation1 + $0x30] sm:$0xff pattern:$0x75316420]
      %v3351 = vld.sshfl [vmem:[#allocation1 + $0x38] sm:$0xff pattern:$0x75316420]
      %v3352 = vrot.slane %v3344, 2
      %v3353 = vrot.slane %v3345, 2
      %v3354 = vrot.slane %v3346, 2
      %v3355 = vrot.slane %v3347, 2
      %v3356 = vrot.slane %v3348, 2
      %v3357 = vrot.slane %v3349, 2
      %v3358 = vrot.slane %v3350, 2
      %v3359 = vrot.slane %v3351, 2
      %3372 = vst [vmem:[#allocation1] ss:$2 sm:$0xff] %v2933
      %s3373 = scalar_lea.vmem [#allocation1], 16
      %3374 = vst [vmem:[%s3373] ss:$2 sm:$0xff] %v2934
      %s3375 = scalar_lea.vmem [#allocation1], 32
      %3376 = vst [vmem:[%s3375] ss:$2 sm:$0xff] %v2935
      %s3377 = scalar_lea.vmem [#allocation1], 48
      %3378 = vst [vmem:[%s3377] ss:$2 sm:$0xff] %v2936
      %v3379 = vld.sshfl [vmem:[#allocation1] sm:$0xff pattern:$0x75316420]
      %v3380 = vld.sshfl [vmem:[#allocation1 + $0x8] sm:$0xff pattern:$0x75316420]
      %v3381 = vld.sshfl [vmem:[#allocation1 + $0x10] sm:$0xff pattern:$0x75316420]
      %v3382 = vld.sshfl [vmem:[#allocation1 + $0x18] sm:$0xff pattern:$0x75316420]
      %v3383 = vld.sshfl [vmem:[#allocation1 + $0x20] sm:$0xff pattern:$0x75316420]
      %v3384 = vld.sshfl [vmem:[#allocation1 + $0x28] sm:$0xff pattern:$0x75316420]
      %v3385 = vld.sshfl [vmem:[#allocation1 + $0x30] sm:$0xff pattern:$0x75316420]
      %v3386 = vld.sshfl [vmem:[#allocation1 + $0x38] sm:$0xff pattern:$0x75316420]
      %v3387 = vrot.slane %v3379, 7
      %v3388 = vrot.slane %v3380, 7
      %v3389 = vrot.slane %v3381, 7
      %v3390 = vrot.slane %v3382, 7
      %v3391 = vrot.slane %v3383, 7
      %v3392 = vrot.slane %v3384, 7
      %v3393 = vrot.slane %v3385, 7
      %v3394 = vrot.slane %v3386, 7
      %s3407 = scalar_lea.vmem [#allocation1], 1
      %3408 = vst [vmem:[%s3407] ss:$2 sm:$0xff] %v2941
      %s3409 = scalar_lea.vmem [#allocation1], 17
      %3410 = vst [vmem:[%s3409] ss:$2 sm:$0xff] %v2942
      %s3411 = scalar_lea.vmem [#allocation1], 33
      %3412 = vst [vmem:[%s3411] ss:$2 sm:$0xff] %v2943
      %s3413 = scalar_lea.vmem [#allocation1], 49
      %3414 = vst [vmem:[%s3413] ss:$2 sm:$0xff] %v2944
      %v3415 = vld.sshfl [vmem:[#allocation1] sm:$0xff pattern:$0x75316420]
      %v3416 = vld.sshfl [vmem:[#allocation1 + $0x8] sm:$0xff pattern:$0x75316420]
      %v3417 = vld.sshfl [vmem:[#allocation1 + $0x10] sm:$0xff pattern:$0x75316420]
      %v3418 = vld.sshfl [vmem:[#allocation1 + $0x18] sm:$0xff pattern:$0x75316420]
      %v3419 = vld.sshfl [vmem:[#allocation1 + $0x20] sm:$0xff pattern:$0x75316420]
      %v3420 = vld.sshfl [vmem:[#allocation1 + $0x28] sm:$0xff pattern:$0x75316420]
      %v3421 = vld.sshfl [vmem:[#allocation1 + $0x30] sm:$0xff pattern:$0x75316420]
      %v3422 = vld.sshfl [vmem:[#allocation1 + $0x38] sm:$0xff pattern:$0x75316420]
      %3435 = vst [vmem:[#allocation1] ss:$2 sm:$0xff] %v2953
      %s3436 = scalar_lea.vmem [#allocation1], 16
      %3437 = vst [vmem:[%s3436] ss:$2 sm:$0xff] %v2954
      %s3438 = scalar_lea.vmem [#allocation1], 32
      %3439 = vst [vmem:[%s3438] ss:$2 sm:$0xff] %v2955
      %s3440 = scalar_lea.vmem [#allocation1], 48
      %3441 = vst [vmem:[%s3440] ss:$2 sm:$0xff] %v2956
      %v3442 = vld.sshfl [vmem:[#allocation1] sm:$0xff pattern:$0x75316420]
      %v3443 = vld.sshfl [vmem:[#allocation1 + $0x8] sm:$0xff pattern:$0x75316420]
      %v3444 = vld.sshfl [vmem:[#allocation1 + $0x10] sm:$0xff pattern:$0x75316420]
      %v3445 = vld.sshfl [vmem:[#allocation1 + $0x18] sm:$0xff pattern:$0x75316420]
      %v3446 = vld.sshfl [vmem:[#allocation1 + $0x20] sm:$0xff pattern:$0x75316420]
      %v3447 = vld.sshfl [vmem:[#allocation1 + $0x28] sm:$0xff pattern:$0x75316420]
      %v3448 = vld.sshfl [vmem:[#allocation1 + $0x30] sm:$0xff pattern:$0x75316420]
      %v3449 = vld.sshfl [vmem:[#allocation1 + $0x38] sm:$0xff pattern:$0x75316420]
      %v3450 = vrot.slane %v3442, 1
      %v3451 = vrot.slane %v3443, 1
      %v3452 = vrot.slane %v3444, 1
      %v3453 = vrot.slane %v3445, 1
      %v3454 = vrot.slane %v3446, 1
      %v3455 = vrot.slane %v3447, 1
      %v3456 = vrot.slane %v3448, 1
      %v3457 = vrot.slane %v3449, 1
      %3470 = vst [vmem:[#allocation1] ss:$2 sm:$0xff] %v2961
      %s3471 = scalar_lea.vmem [#allocation1], 16
      %3472 = vst [vmem:[%s3471] ss:$2 sm:$0xff] %v2962
      %s3473 = scalar_lea.vmem [#allocation1], 32
      %3474 = vst [vmem:[%s3473] ss:$2 sm:$0xff] %v2963
      %s3475 = scalar_lea.vmem [#allocation1], 48
      %3476 = vst [vmem:[%s3475] ss:$2 sm:$0xff] %v2964
      %v3477 = vld.sshfl [vmem:[#allocation1] sm:$0xff pattern:$0x75316420]
      %v3478 = vld.sshfl [vmem:[#allocation1 + $0x8] sm:$0xff pattern:$0x75316420]
      %v3479 = vld.sshfl [vmem:[#allocation1 + $0x10] sm:$0xff pattern:$0x75316420]
      %v3480 = vld.sshfl [vmem:[#allocation1 + $0x18] sm:$0xff pattern:$0x75316420]
      %v3481 = vld.sshfl [vmem:[#allocation1 + $0x20] sm:$0xff pattern:$0x75316420]
      %v3482 = vld.sshfl [vmem:[#allocation1 + $0x28] sm:$0xff pattern:$0x75316420]
      %v3483 = vld.sshfl [vmem:[#allocation1 + $0x30] sm:$0xff pattern:$0x75316420]
      %v3484 = vld.sshfl [vmem:[#allocation1 + $0x38] sm:$0xff pattern:$0x75316420]
      %v3485 = vrot.slane %v3477, 6
      %v3486 = vrot.slane %v3478, 6
      %v3487 = vrot.slane %v3479, 6
      %v3488 = vrot.slane %v3480, 6
      %v3489 = vrot.slane %v3481, 6
      %v3490 = vrot.slane %v3482, 6
      %v3491 = vrot.slane %v3483, 6
      %v3492 = vrot.slane %v3484, 6
      %3505 = vst [vmem:[#allocation1] ss:$2 sm:$0xff] %v2973
      %s3506 = scalar_lea.vmem [#allocation1], 16
      %3507 = vst [vmem:[%s3506] ss:$2 sm:$0xff] %v2974
      %s3508 = scalar_lea.vmem [#allocation1], 32
      %3509 = vst [vmem:[%s3508] ss:$2 sm:$0xff] %v2975
      %s3510 = scalar_lea.vmem [#allocation1], 48
      %3511 = vst [vmem:[%s3510] ss:$2 sm:$0xff] %v2976
      %v3512 = vld.sshfl [vmem:[#allocation1] sm:$0xff pattern:$0x75316420]
      %v3513 = vld.sshfl [vmem:[#allocation1 + $0x8] sm:$0xff pattern:$0x75316420]
      %v3514 = vld.sshfl [vmem:[#allocation1 + $0x10] sm:$0xff pattern:$0x75316420]
      %v3515 = vld.sshfl [vmem:[#allocation1 + $0x18] sm:$0xff pattern:$0x75316420]
      %v3516 = vld.sshfl [vmem:[#allocation1 + $0x20] sm:$0xff pattern:$0x75316420]
      %v3517 = vld.sshfl [vmem:[#allocation1 + $0x28] sm:$0xff pattern:$0x75316420]
      %v3518 = vld.sshfl [vmem:[#allocation1 + $0x30] sm:$0xff pattern:$0x75316420]
      %v3519 = vld.sshfl [vmem:[#allocation1 + $0x38] sm:$0xff pattern:$0x75316420]
      %v3520 = vrot.slane %v3512, 3
      %v3521 = vrot.slane %v3513, 3
      %v3522 = vrot.slane %v3514, 3
      %v3523 = vrot.slane %v3515, 3
      %v3524 = vrot.slane %v3516, 3
      %v3525 = vrot.slane %v3517, 3
      %v3526 = vrot.slane %v3518, 3
      %v3527 = vrot.slane %v3519, 3
      %3540 = vst [vmem:[#allocation1] ss:$2 sm:$0xff] %v2981
      %s3541 = scalar_lea.vmem [#allocation1], 16
      %3542 = vst [vmem:[%s3541] ss:$2 sm:$0xff] %v2982
      %s3543 = scalar_lea.vmem [#allocation1], 32
      %3544 = vst [vmem:[%s3543] ss:$2 sm:$0xff] %v2983
      %s3545 = scalar_lea.vmem [#allocation1], 48
      %3546 = vst [vmem:[%s3545] ss:$2 sm:$0xff] %v2984
      %v3547 = vld.sshfl [vmem:[#allocation1] sm:$0xff pattern:$0x75316420]
      %v3548 = vld.sshfl [vmem:[#allocation1 + $0x8] sm:$0xff pattern:$0x75316420]
      %v3549 = vld.sshfl [vmem:[#allocation1 + $0x10] sm:$0xff pattern:$0x75316420]
      %v3550 = vld.sshfl [vmem:[#allocation1 + $0x18] sm:$0xff pattern:$0x75316420]
      %v3551 = vld.sshfl [vmem:[#allocation1 + $0x20] sm:$0xff pattern:$0x75316420]
      %v3552 = vld.sshfl [vmem:[#allocation1 + $0x28] sm:$0xff pattern:$0x75316420]
      %v3553 = vld.sshfl [vmem:[#allocation1 + $0x30] sm:$0xff pattern:$0x75316420]
      %v3554 = vld.sshfl [vmem:[#allocation1 + $0x38] sm:$0xff pattern:$0x75316420]
      %v3555 = vsel %vm1897, 0.01, %v3317
      %v3556 = vsel %vm1897, 0.01, %v3318
      %v3557 = vsel %vm1897, 0.01, %v3319
      %v3558 = vsel %vm1897, 0.01, %v3320
      %v3559 = vsel %vm1897, 0.01, %v3321
      %v3560 = vsel %vm1897, 0.01, %v3322
      %v3561 = vsel %vm1897, 0.01, %v3323
      %v3562 = vsel %vm1897, 0.01, %v3324
      %v3563 = vsel %vm1906, %v3555, %v3352
      %v3564 = vsel %vm1906, %v3556, %v3353
      %v3565 = vsel %vm1906, %v3557, %v3354
      %v3566 = vsel %vm1906, %v3558, %v3355
      %v3567 = vsel %vm1906, %v3559, %v3356
      %v3568 = vsel %vm1906, %v3560, %v3357
      %v3569 = vsel %vm1906, %v3561, %v3358
      %v3570 = vsel %vm1906, %v3562, %v3359
      %v3571 = vsel %vm1915, %v3352, %v3387
      %v3572 = vsel %vm1915, %v3353, %v3388
      %v3573 = vsel %vm1915, %v3354, %v3389
      %v3574 = vsel %vm1915, %v3355, %v3390
      %v3575 = vsel %vm1915, %v3356, %v3391
      %v3576 = vsel %vm1915, %v3357, %v3392
      %v3577 = vsel %vm1915, %v3358, %v3393
      %v3578 = vsel %vm1915, %v3359, %v3394
      %v3579 = vsel %vm1924, %v3571, %v3415
      %v3580 = vsel %vm1924, %v3572, %v3416
      %v3581 = vsel %vm1924, %v3573, %v3417
      %v3582 = vsel %vm1924, %v3574, %v3418
      %v3583 = vsel %vm1924, %v3575, %v3419
      %v3584 = vsel %vm1924, %v3576, %v3420
      %v3585 = vsel %vm1924, %v3577, %v3421
      %v3586 = vsel %vm1924, %v3578, %v3422
      %v3587 = vsel %vm1933, %v3579, %v3450
      %v3588 = vsel %vm1933, %v3580, %v3451
      %v3589 = vsel %vm1933, %v3581, %v3452
      %v3590 = vsel %vm1933, %v3582, %v3453
      %v3591 = vsel %vm1933, %v3583, %v3454
      %v3592 = vsel %vm1933, %v3584, %v3455
      %v3593 = vsel %vm1933, %v3585, %v3456
      %v3594 = vsel %vm1933, %v3586, %v3457
      %v3595 = vsel %vm1942, %v3450, %v3485
      %v3596 = vsel %vm1942, %v3451, %v3486
      %v3597 = vsel %vm1942, %v3452, %v3487
      %v3598 = vsel %vm1942, %v3453, %v3488
      %v3599 = vsel %vm1942, %v3454, %v3489
      %v3600 = vsel %vm1942, %v3455, %v3490
      %v3601 = vsel %vm1942, %v3456, %v3491
      %v3602 = vsel %vm1942, %v3457, %v3492
      %v3603 = vsel %vm1951, %v3595, %v3520
      %v3604 = vsel %vm1951, %v3596, %v3521
      %v3605 = vsel %vm1951, %v3597, %v3522
      %v3606 = vsel %vm1951, %v3598, %v3523
      %v3607 = vsel %vm1951, %v3599, %v3524
      %v3608 = vsel %vm1951, %v3600, %v3525
      %v3609 = vsel %vm1951, %v3601, %v3526
      %v3610 = vsel %vm1951, %v3602, %v3527
      %v3612 = vsel %vm2000, %v304, 0
      %v3615 = vsel %vm2000, %v305, 0
      %v3618 = vsel %vm2000, %v306, 0
      %v3621 = vsel %vm2000, %v307, 0
      %v3624 = vsel %vm2000, %v308, 0
      %v3627 = vsel %vm2000, %v309, 0
      %v3630 = vsel %vm2000, %v310, 0
      %v3633 = vsel %vm2000, %v311, 0
      %v3636 = vsel %vm2000, %v312, 0
      %v3639 = vsel %vm2000, %v313, 0
      %v3642 = vsel %vm2000, %v314, 0
      %v3645 = vsel %vm2000, %v315, 0
      %v3647 = vsel %vm1897, %v3234, 0
      %v3649 = vsel %vm1897, %v3235, 0
      %v3651 = vsel %vm1897, %v3236, 0
      %v3653 = vsel %vm1897, %v3237, 0
      %v3655 = vsel %vm1897, %v3238, 0
      %v3657 = vsel %vm1897, %v3239, 0
      %v3659 = vsel %vm1897, %v3240, 0
      %v3661 = vsel %vm1897, %v3241, 0
      %3663 = vmatpush.msra.mxu0 0.0
      %3664 = vmatpush.msra.mxu0 0.0
      %3665 = vmatpush.msra.mxu0 0.0
      %3666 = vmatpush.msra.mxu0 0.0
      %3667 = vmatpush.msra.mxu0 0.0
      %3668 = vmatpush.msra.mxu0 0.0
      %3669 = vmatpush.msra.mxu0 0.0
      %3670 = vmatpush.msra.mxu0 0.0
      %3671 = vmatpush.msra.mxu0 0.0
      %3672 = vmatpush.msra.mxu0 0.0
      %3673 = vmatpush.msra.mxu0 0.0
      %3674 = vmatpush.msra.mxu0 0.0
      %3675 = vmatpush.msra.mxu0 %v3647
      %3676 = vmatpush.msra.mxu0 %v3290
      %3677 = vmatpush.msra.mxu0 %v3274
      %3678 = vmatpush.msra.mxu0 %v3250
      %3679 = vmatmul.f32.gmra.mxu0 %v3612
      %v3680 = vpop.f32.mrf.mxu0
      %v3681 = vadd.f32 0.0, %v3680
      %3682 = vmatmul.f32.gmra.mxu0 %v3615
      %v3683 = vpop.f32.mrf.mxu0
      %v3684 = vadd.f32 0.0, %v3683
      %3685 = vmatmul.f32.gmra.mxu0 %v3618
      %v3686 = vpop.f32.mrf.mxu0
      %v3687 = vadd.f32 0.0, %v3686
      %3688 = vmatmul.f32.gmra.mxu0 %v3621
      %v3689 = vpop.f32.mrf.mxu0
      %v3690 = vadd.f32 0.0, %v3689
      %3691 = vmatmul.f32.gmra.mxu0 %v3624
      %v3692 = vpop.f32.mrf.mxu0
      %v3693 = vadd.f32 0.0, %v3692
      %3694 = vmatmul.f32.gmra.mxu0 %v3627
      %v3695 = vpop.f32.mrf.mxu0
      %v3696 = vadd.f32 0.0, %v3695
      %3697 = vmatmul.f32.gmra.mxu0 %v3630
      %v3698 = vpop.f32.mrf.mxu0
      %v3699 = vadd.f32 0.0, %v3698
      %3700 = vmatmul.f32.gmra.mxu0 %v3633
      %v3701 = vpop.f32.mrf.mxu0
      %v3702 = vadd.f32 0.0, %v3701
      %3703 = vmatmul.f32.gmra.mxu0 %v3636
      %v3704 = vpop.f32.mrf.mxu0
      %v3705 = vadd.f32 0.0, %v3704
      %3706 = vmatmul.f32.gmra.mxu0 %v3639
      %v3707 = vpop.f32.mrf.mxu0
      %v3708 = vadd.f32 0.0, %v3707
      %3709 = vmatmul.f32.gmra.mxu0 %v3642
      %v3710 = vpop.f32.mrf.mxu0
      %v3711 = vadd.f32 0.0, %v3710
      %3712 = vmatmul.f32.gmra.mxu0 %v3645
      %v3713 = vpop.f32.mrf.mxu0
      %v3714 = vadd.f32 0.0, %v3713
      %3715 = vdwg.mxu0
      %3716 = vmatpush.msra.mxu0 0.0
      %3717 = vmatpush.msra.mxu0 0.0
      %3718 = vmatpush.msra.mxu0 0.0
      %3719 = vmatpush.msra.mxu0 0.0
      %3720 = vmatpush.msra.mxu0 0.0
      %3721 = vmatpush.msra.mxu0 0.0
      %3722 = vmatpush.msra.mxu0 0.0
      %3723 = vmatpush.msra.mxu0 0.0
      %3724 = vmatpush.msra.mxu0 0.0
      %3725 = vmatpush.msra.mxu0 0.0
      %3726 = vmatpush.msra.mxu0 0.0
      %3727 = vmatpush.msra.mxu0 0.0
      %3728 = vmatpush.msra.mxu0 %v3649
      %3729 = vmatpush.msra.mxu0 %v3291
      %3730 = vmatpush.msra.mxu0 %v3275
      %3731 = vmatpush.msra.mxu0 %v3251
      %3732 = vmatmul.f32.gmra.mxu0 %v3612
      %v3733 = vpop.f32.mrf.mxu0
      %v3734 = vadd.f32 0.0, %v3733
      %3735 = vmatmul.f32.gmra.mxu0 %v3615
      %v3736 = vpop.f32.mrf.mxu0
      %v3737 = vadd.f32 0.0, %v3736
      %3738 = vmatmul.f32.gmra.mxu0 %v3618
      %v3739 = vpop.f32.mrf.mxu0
      %v3740 = vadd.f32 0.0, %v3739
      %3741 = vmatmul.f32.gmra.mxu0 %v3621
      %v3742 = vpop.f32.mrf.mxu0
      %v3743 = vadd.f32 0.0, %v3742
      %3744 = vmatmul.f32.gmra.mxu0 %v3624
      %v3745 = vpop.f32.mrf.mxu0
      %v3746 = vadd.f32 0.0, %v3745
      %3747 = vmatmul.f32.gmra.mxu0 %v3627
      %v3748 = vpop.f32.mrf.mxu0
      %v3749 = vadd.f32 0.0, %v3748
      %3750 = vmatmul.f32.gmra.mxu0 %v3630
      %v3751 = vpop.f32.mrf.mxu0
      %v3752 = vadd.f32 0.0, %v3751
      %3753 = vmatmul.f32.gmra.mxu0 %v3633
      %v3754 = vpop.f32.mrf.mxu0
      %v3755 = vadd.f32 0.0, %v3754
      %3756 = vmatmul.f32.gmra.mxu0 %v3636
      %v3757 = vpop.f32.mrf.mxu0
      %v3758 = vadd.f32 0.0, %v3757
      %3759 = vmatmul.f32.gmra.mxu0 %v3639
      %v3760 = vpop.f32.mrf.mxu0
      %v3761 = vadd.f32 0.0, %v3760
      %3762 = vmatmul.f32.gmra.mxu0 %v3642
      %v3763 = vpop.f32.mrf.mxu0
      %v3764 = vadd.f32 0.0, %v3763
      %3765 = vmatmul.f32.gmra.mxu0 %v3645
      %v3766 = vpop.f32.mrf.mxu0
      %v3767 = vadd.f32 0.0, %v3766
      %3768 = vdwg.mxu0
      %3769 = vmatpush.msra.mxu0 0.0
      %3770 = vmatpush.msra.mxu0 0.0
      %3771 = vmatpush.msra.mxu0 0.0
      %3772 = vmatpush.msra.mxu0 0.0
      %3773 = vmatpush.msra.mxu0 0.0
      %3774 = vmatpush.msra.mxu0 0.0
      %3775 = vmatpush.msra.mxu0 0.0
      %3776 = vmatpush.msra.mxu0 0.0
      %3777 = vmatpush.msra.mxu0 0.0
      %3778 = vmatpush.msra.mxu0 0.0
      %3779 = vmatpush.msra.mxu0 0.0
      %3780 = vmatpush.msra.mxu0 0.0
      %3781 = vmatpush.msra.mxu0 %v3651
      %3782 = vmatpush.msra.mxu0 %v3292
      %3783 = vmatpush.msra.mxu0 %v3276
      %3784 = vmatpush.msra.mxu0 %v3252
      %3785 = vmatmul.f32.gmra.mxu0 %v3612
      %v3786 = vpop.f32.mrf.mxu0
      %v3787 = vadd.f32 0.0, %v3786
      %3788 = vmatmul.f32.gmra.mxu0 %v3615
      %v3789 = vpop.f32.mrf.mxu0
      %v3790 = vadd.f32 0.0, %v3789
      %3791 = vmatmul.f32.gmra.mxu0 %v3618
      %v3792 = vpop.f32.mrf.mxu0
      %v3793 = vadd.f32 0.0, %v3792
      %3794 = vmatmul.f32.gmra.mxu0 %v3621
      %v3795 = vpop.f32.mrf.mxu0
      %v3796 = vadd.f32 0.0, %v3795
      %3797 = vmatmul.f32.gmra.mxu0 %v3624
      %v3798 = vpop.f32.mrf.mxu0
      %v3799 = vadd.f32 0.0, %v3798
      %3800 = vmatmul.f32.gmra.mxu0 %v3627
      %v3801 = vpop.f32.mrf.mxu0
      %v3802 = vadd.f32 0.0, %v3801
      %3803 = vmatmul.f32.gmra.mxu0 %v3630
      %v3804 = vpop.f32.mrf.mxu0
      %v3805 = vadd.f32 0.0, %v3804
      %3806 = vmatmul.f32.gmra.mxu0 %v3633
      %v3807 = vpop.f32.mrf.mxu0
      %v3808 = vadd.f32 0.0, %v3807
      %3809 = vmatmul.f32.gmra.mxu0 %v3636
      %v3810 = vpop.f32.mrf.mxu0
      %v3811 = vadd.f32 0.0, %v3810
      %3812 = vmatmul.f32.gmra.mxu0 %v3639
      %v3813 = vpop.f32.mrf.mxu0
      %v3814 = vadd.f32 0.0, %v3813
      %3815 = vmatmul.f32.gmra.mxu0 %v3642
      %v3816 = vpop.f32.mrf.mxu0
      %v3817 = vadd.f32 0.0, %v3816
      %3818 = vmatmul.f32.gmra.mxu0 %v3645
      %v3819 = vpop.f32.mrf.mxu0
      %v3820 = vadd.f32 0.0, %v3819
      %3821 = vdwg.mxu0
      %3822 = vmatpush.msra.mxu0 0.0
      %3823 = vmatpush.msra.mxu0 0.0
      %3824 = vmatpush.msra.mxu0 0.0
      %3825 = vmatpush.msra.mxu0 0.0
      %3826 = vmatpush.msra.mxu0 0.0
      %3827 = vmatpush.msra.mxu0 0.0
      %3828 = vmatpush.msra.mxu0 0.0
      %3829 = vmatpush.msra.mxu0 0.0
      %3830 = vmatpush.msra.mxu0 0.0
      %3831 = vmatpush.msra.mxu0 0.0
      %3832 = vmatpush.msra.mxu0 0.0
      %3833 = vmatpush.msra.mxu0 0.0
      %3834 = vmatpush.msra.mxu0 %v3653
      %3835 = vmatpush.msra.mxu0 %v3293
      %3836 = vmatpush.msra.mxu0 %v3277
      %3837 = vmatpush.msra.mxu0 %v3253
      %3838 = vmatmul.f32.gmra.mxu0 %v3612
      %v3839 = vpop.f32.mrf.mxu0
      %v3840 = vadd.f32 0.0, %v3839
      %3841 = vmatmul.f32.gmra.mxu0 %v3615
      %v3842 = vpop.f32.mrf.mxu0
      %v3843 = vadd.f32 0.0, %v3842
      %3844 = vmatmul.f32.gmra.mxu0 %v3618
      %v3845 = vpop.f32.mrf.mxu0
      %v3846 = vadd.f32 0.0, %v3845
      %3847 = vmatmul.f32.gmra.mxu0 %v3621
      %v3848 = vpop.f32.mrf.mxu0
      %v3849 = vadd.f32 0.0, %v3848
      %3850 = vmatmul.f32.gmra.mxu0 %v3624
      %v3851 = vpop.f32.mrf.mxu0
      %v3852 = vadd.f32 0.0, %v3851
      %3853 = vmatmul.f32.gmra.mxu0 %v3627
      %v3854 = vpop.f32.mrf.mxu0
      %v3855 = vadd.f32 0.0, %v3854
      %3856 = vmatmul.f32.gmra.mxu0 %v3630
      %v3857 = vpop.f32.mrf.mxu0
      %v3858 = vadd.f32 0.0, %v3857
      %3859 = vmatmul.f32.gmra.mxu0 %v3633
      %v3860 = vpop.f32.mrf.mxu0
      %v3861 = vadd.f32 0.0, %v3860
      %3862 = vmatmul.f32.gmra.mxu0 %v3636
      %v3863 = vpop.f32.mrf.mxu0
      %v3864 = vadd.f32 0.0, %v3863
      %3865 = vmatmul.f32.gmra.mxu0 %v3639
      %v3866 = vpop.f32.mrf.mxu0
      %v3867 = vadd.f32 0.0, %v3866
      %3868 = vmatmul.f32.gmra.mxu0 %v3642
      %v3869 = vpop.f32.mrf.mxu0
      %v3870 = vadd.f32 0.0, %v3869
      %3871 = vmatmul.f32.gmra.mxu0 %v3645
      %v3872 = vpop.f32.mrf.mxu0
      %v3873 = vadd.f32 0.0, %v3872
      %3874 = vdwg.mxu0
      %3875 = vmatpush.msra.mxu0 0.0
      %3876 = vmatpush.msra.mxu0 0.0
      %3877 = vmatpush.msra.mxu0 0.0
      %3878 = vmatpush.msra.mxu0 0.0
      %3879 = vmatpush.msra.mxu0 0.0
      %3880 = vmatpush.msra.mxu0 0.0
      %3881 = vmatpush.msra.mxu0 0.0
      %3882 = vmatpush.msra.mxu0 0.0
      %3883 = vmatpush.msra.mxu0 0.0
      %3884 = vmatpush.msra.mxu0 0.0
      %3885 = vmatpush.msra.mxu0 0.0
      %3886 = vmatpush.msra.mxu0 0.0
      %3887 = vmatpush.msra.mxu0 %v3655
      %3888 = vmatpush.msra.mxu0 %v3294
      %3889 = vmatpush.msra.mxu0 %v3278
      %3890 = vmatpush.msra.mxu0 %v3254
      %3891 = vmatmul.f32.gmra.mxu0 %v3612
      %v3892 = vpop.f32.mrf.mxu0
      %v3893 = vadd.f32 0.0, %v3892
      %3894 = vmatmul.f32.gmra.mxu0 %v3615
      %v3895 = vpop.f32.mrf.mxu0
      %v3896 = vadd.f32 0.0, %v3895
      %3897 = vmatmul.f32.gmra.mxu0 %v3618
      %v3898 = vpop.f32.mrf.mxu0
      %v3899 = vadd.f32 0.0, %v3898
      %3900 = vmatmul.f32.gmra.mxu0 %v3621
      %v3901 = vpop.f32.mrf.mxu0
      %v3902 = vadd.f32 0.0, %v3901
      %3903 = vmatmul.f32.gmra.mxu0 %v3624
      %v3904 = vpop.f32.mrf.mxu0
      %v3905 = vadd.f32 0.0, %v3904
      %3906 = vmatmul.f32.gmra.mxu0 %v3627
      %v3907 = vpop.f32.mrf.mxu0
      %v3908 = vadd.f32 0.0, %v3907
      %3909 = vmatmul.f32.gmra.mxu0 %v3630
      %v3910 = vpop.f32.mrf.mxu0
      %v3911 = vadd.f32 0.0, %v3910
      %3912 = vmatmul.f32.gmra.mxu0 %v3633
      %v3913 = vpop.f32.mrf.mxu0
      %v3914 = vadd.f32 0.0, %v3913
      %3915 = vmatmul.f32.gmra.mxu0 %v3636
      %v3916 = vpop.f32.mrf.mxu0
      %v3917 = vadd.f32 0.0, %v3916
      %3918 = vmatmul.f32.gmra.mxu0 %v3639
      %v3919 = vpop.f32.mrf.mxu0
      %v3920 = vadd.f32 0.0, %v3919
      %3921 = vmatmul.f32.gmra.mxu0 %v3642
      %v3922 = vpop.f32.mrf.mxu0
      %v3923 = vadd.f32 0.0, %v3922
      %3924 = vmatmul.f32.gmra.mxu0 %v3645
      %v3925 = vpop.f32.mrf.mxu0
      %v3926 = vadd.f32 0.0, %v3925
      %3927 = vdwg.mxu0
      %3928 = vmatpush.msra.mxu0 0.0
      %3929 = vmatpush.msra.mxu0 0.0
      %3930 = vmatpush.msra.mxu0 0.0
      %3931 = vmatpush.msra.mxu0 0.0
      %3932 = vmatpush.msra.mxu0 0.0
      %3933 = vmatpush.msra.mxu0 0.0
      %3934 = vmatpush.msra.mxu0 0.0
      %3935 = vmatpush.msra.mxu0 0.0
      %3936 = vmatpush.msra.mxu0 0.0
      %3937 = vmatpush.msra.mxu0 0.0
      %3938 = vmatpush.msra.mxu0 0.0
      %3939 = vmatpush.msra.mxu0 0.0
      %3940 = vmatpush.msra.mxu0 %v3657
      %3941 = vmatpush.msra.mxu0 %v3295
      %3942 = vmatpush.msra.mxu0 %v3279
      %3943 = vmatpush.msra.mxu0 %v3255
      %3944 = vmatmul.f32.gmra.mxu0 %v3612
      %v3945 = vpop.f32.mrf.mxu0
      %v3946 = vadd.f32 0.0, %v3945
      %3947 = vmatmul.f32.gmra.mxu0 %v3615
      %v3948 = vpop.f32.mrf.mxu0
      %v3949 = vadd.f32 0.0, %v3948
      %3950 = vmatmul.f32.gmra.mxu0 %v3618
      %v3951 = vpop.f32.mrf.mxu0
      %v3952 = vadd.f32 0.0, %v3951
      %3953 = vmatmul.f32.gmra.mxu0 %v3621
      %v3954 = vpop.f32.mrf.mxu0
      %v3955 = vadd.f32 0.0, %v3954
      %3956 = vmatmul.f32.gmra.mxu0 %v3624
      %v3957 = vpop.f32.mrf.mxu0
      %v3958 = vadd.f32 0.0, %v3957
      %3959 = vmatmul.f32.gmra.mxu0 %v3627
      %v3960 = vpop.f32.mrf.mxu0
      %v3961 = vadd.f32 0.0, %v3960
      %3962 = vmatmul.f32.gmra.mxu0 %v3630
      %v3963 = vpop.f32.mrf.mxu0
      %v3964 = vadd.f32 0.0, %v3963
      %3965 = vmatmul.f32.gmra.mxu0 %v3633
      %v3966 = vpop.f32.mrf.mxu0
      %v3967 = vadd.f32 0.0, %v3966
      %3968 = vmatmul.f32.gmra.mxu0 %v3636
      %v3969 = vpop.f32.mrf.mxu0
      %v3970 = vadd.f32 0.0, %v3969
      %3971 = vmatmul.f32.gmra.mxu0 %v3639
      %v3972 = vpop.f32.mrf.mxu0
      %v3973 = vadd.f32 0.0, %v3972
      %3974 = vmatmul.f32.gmra.mxu0 %v3642
      %v3975 = vpop.f32.mrf.mxu0
      %v3976 = vadd.f32 0.0, %v3975
      %3977 = vmatmul.f32.gmra.mxu0 %v3645
      %v3978 = vpop.f32.mrf.mxu0
      %v3979 = vadd.f32 0.0, %v3978
      %3980 = vdwg.mxu0
      %3981 = vmatpush.msra.mxu0 0.0
      %3982 = vmatpush.msra.mxu0 0.0
      %3983 = vmatpush.msra.mxu0 0.0
      %3984 = vmatpush.msra.mxu0 0.0
      %3985 = vmatpush.msra.mxu0 0.0
      %3986 = vmatpush.msra.mxu0 0.0
      %3987 = vmatpush.msra.mxu0 0.0
      %3988 = vmatpush.msra.mxu0 0.0
      %3989 = vmatpush.msra.mxu0 0.0
      %3990 = vmatpush.msra.mxu0 0.0
      %3991 = vmatpush.msra.mxu0 0.0
      %3992 = vmatpush.msra.mxu0 0.0
      %3993 = vmatpush.msra.mxu0 %v3659
      %3994 = vmatpush.msra.mxu0 %v3296
      %3995 = vmatpush.msra.mxu0 %v3280
      %3996 = vmatpush.msra.mxu0 %v3256
      %3997 = vmatmul.f32.gmra.mxu0 %v3612
      %v3998 = vpop.f32.mrf.mxu0
      %v3999 = vadd.f32 0.0, %v3998
      %4000 = vmatmul.f32.gmra.mxu0 %v3615
      %v4001 = vpop.f32.mrf.mxu0
      %v4002 = vadd.f32 0.0, %v4001
      %4003 = vmatmul.f32.gmra.mxu0 %v3618
      %v4004 = vpop.f32.mrf.mxu0
      %v4005 = vadd.f32 0.0, %v4004
      %4006 = vmatmul.f32.gmra.mxu0 %v3621
      %v4007 = vpop.f32.mrf.mxu0
      %v4008 = vadd.f32 0.0, %v4007
      %4009 = vmatmul.f32.gmra.mxu0 %v3624
      %v4010 = vpop.f32.mrf.mxu0
      %v4011 = vadd.f32 0.0, %v4010
      %4012 = vmatmul.f32.gmra.mxu0 %v3627
      %v4013 = vpop.f32.mrf.mxu0
      %v4014 = vadd.f32 0.0, %v4013
      %4015 = vmatmul.f32.gmra.mxu0 %v3630
      %v4016 = vpop.f32.mrf.mxu0
      %v4017 = vadd.f32 0.0, %v4016
      %4018 = vmatmul.f32.gmra.mxu0 %v3633
      %v4019 = vpop.f32.mrf.mxu0
      %v4020 = vadd.f32 0.0, %v4019
      %4021 = vmatmul.f32.gmra.mxu0 %v3636
      %v4022 = vpop.f32.mrf.mxu0
      %v4023 = vadd.f32 0.0, %v4022
      %4024 = vmatmul.f32.gmra.mxu0 %v3639
      %v4025 = vpop.f32.mrf.mxu0
      %v4026 = vadd.f32 0.0, %v4025
      %4027 = vmatmul.f32.gmra.mxu0 %v3642
      %v4028 = vpop.f32.mrf.mxu0
      %v4029 = vadd.f32 0.0, %v4028
      %4030 = vmatmul.f32.gmra.mxu0 %v3645
      %v4031 = vpop.f32.mrf.mxu0
      %v4032 = vadd.f32 0.0, %v4031
      %4033 = vdwg.mxu0
      %4034 = vmatpush.msra.mxu0 0.0
      %4035 = vmatpush.msra.mxu0 0.0
      %4036 = vmatpush.msra.mxu0 0.0
      %4037 = vmatpush.msra.mxu0 0.0
      %4038 = vmatpush.msra.mxu0 0.0
      %4039 = vmatpush.msra.mxu0 0.0
      %4040 = vmatpush.msra.mxu0 0.0
      %4041 = vmatpush.msra.mxu0 0.0
      %4042 = vmatpush.msra.mxu0 0.0
      %4043 = vmatpush.msra.mxu0 0.0
      %4044 = vmatpush.msra.mxu0 0.0
      %4045 = vmatpush.msra.mxu0 0.0
      %4046 = vmatpush.msra.mxu0 %v3661
      %4047 = vmatpush.msra.mxu0 %v3297
      %4048 = vmatpush.msra.mxu0 %v3281
      %4049 = vmatpush.msra.mxu0 %v3257
      %4050 = vmatmul.f32.gmra.mxu0 %v3612
      %v4051 = vpop.f32.mrf.mxu0
      %v4052 = vadd.f32 0.0, %v4051
      %4053 = vmatmul.f32.gmra.mxu0 %v3615
      %v4054 = vpop.f32.mrf.mxu0
      %v4055 = vadd.f32 0.0, %v4054
      %4056 = vmatmul.f32.gmra.mxu0 %v3618
      %v4057 = vpop.f32.mrf.mxu0
      %v4058 = vadd.f32 0.0, %v4057
      %4059 = vmatmul.f32.gmra.mxu0 %v3621
      %v4060 = vpop.f32.mrf.mxu0
      %v4061 = vadd.f32 0.0, %v4060
      %4062 = vmatmul.f32.gmra.mxu0 %v3624
      %v4063 = vpop.f32.mrf.mxu0
      %v4064 = vadd.f32 0.0, %v4063
      %4065 = vmatmul.f32.gmra.mxu0 %v3627
      %v4066 = vpop.f32.mrf.mxu0
      %v4067 = vadd.f32 0.0, %v4066
      %4068 = vmatmul.f32.gmra.mxu0 %v3630
      %v4069 = vpop.f32.mrf.mxu0
      %v4070 = vadd.f32 0.0, %v4069
      %4071 = vmatmul.f32.gmra.mxu0 %v3633
      %v4072 = vpop.f32.mrf.mxu0
      %v4073 = vadd.f32 0.0, %v4072
      %4074 = vmatmul.f32.gmra.mxu0 %v3636
      %v4075 = vpop.f32.mrf.mxu0
      %v4076 = vadd.f32 0.0, %v4075
      %4077 = vmatmul.f32.gmra.mxu0 %v3639
      %v4078 = vpop.f32.mrf.mxu0
      %v4079 = vadd.f32 0.0, %v4078
      %4080 = vmatmul.f32.gmra.mxu0 %v3642
      %v4081 = vpop.f32.mrf.mxu0
      %v4082 = vadd.f32 0.0, %v4081
      %4083 = vmatmul.f32.gmra.mxu0 %v3645
      %v4084 = vpop.f32.mrf.mxu0
      %v4085 = vadd.f32 0.0, %v4084
      %4086 = vdwg.mxu0
      %v4087 = vsel %vm1897, %v3547, 0
      %v4089 = vsel %vm1897, %v3548, 0
      %v4091 = vsel %vm1897, %v3549, 0
      %v4093 = vsel %vm1897, %v3550, 0
      %v4095 = vsel %vm1897, %v3551, 0
      %v4097 = vsel %vm1897, %v3552, 0
      %v4099 = vsel %vm1897, %v3553, 0
      %v4101 = vsel %vm1897, %v3554, 0
      %4103 = vmatpush.msra.mxu0 0.0
      %4104 = vmatpush.msra.mxu0 0.0
      %4105 = vmatpush.msra.mxu0 0.0
      %4106 = vmatpush.msra.mxu0 0.0
      %4107 = vmatpush.msra.mxu0 0.0
      %4108 = vmatpush.msra.mxu0 0.0
      %4109 = vmatpush.msra.mxu0 0.0
      %4110 = vmatpush.msra.mxu0 0.0
      %4111 = vmatpush.msra.mxu0 0.0
      %4112 = vmatpush.msra.mxu0 0.0
      %4113 = vmatpush.msra.mxu0 0.0
      %4114 = vmatpush.msra.mxu0 0.0
      %4115 = vmatpush.msra.mxu0 %v4087
      %4116 = vmatpush.msra.mxu0 %v3603
      %4117 = vmatpush.msra.mxu0 %v3587
      %4118 = vmatpush.msra.mxu0 %v3563
      %4119 = vmatmul.f32.gmra.mxu0 %v3612
      %v4120 = vpop.f32.mrf.mxu0
      %v4121 = vadd.f32 0.0, %v4120
      %4122 = vmatmul.f32.gmra.mxu0 %v3615
      %v4123 = vpop.f32.mrf.mxu0
      %v4124 = vadd.f32 0.0, %v4123
      %4125 = vmatmul.f32.gmra.mxu0 %v3618
      %v4126 = vpop.f32.mrf.mxu0
      %v4127 = vadd.f32 0.0, %v4126
      %4128 = vmatmul.f32.gmra.mxu0 %v3621
      %v4129 = vpop.f32.mrf.mxu0
      %v4130 = vadd.f32 0.0, %v4129
      %4131 = vmatmul.f32.gmra.mxu0 %v3624
      %v4132 = vpop.f32.mrf.mxu0
      %v4133 = vadd.f32 0.0, %v4132
      %4134 = vmatmul.f32.gmra.mxu0 %v3627
      %v4135 = vpop.f32.mrf.mxu0
      %v4136 = vadd.f32 0.0, %v4135
      %4137 = vmatmul.f32.gmra.mxu0 %v3630
      %v4138 = vpop.f32.mrf.mxu0
      %v4139 = vadd.f32 0.0, %v4138
      %4140 = vmatmul.f32.gmra.mxu0 %v3633
      %v4141 = vpop.f32.mrf.mxu0
      %v4142 = vadd.f32 0.0, %v4141
      %4143 = vmatmul.f32.gmra.mxu0 %v3636
      %v4144 = vpop.f32.mrf.mxu0
      %v4145 = vadd.f32 0.0, %v4144
      %4146 = vmatmul.f32.gmra.mxu0 %v3639
      %v4147 = vpop.f32.mrf.mxu0
      %v4148 = vadd.f32 0.0, %v4147
      %4149 = vmatmul.f32.gmra.mxu0 %v3642
      %v4150 = vpop.f32.mrf.mxu0
      %v4151 = vadd.f32 0.0, %v4150
      %4152 = vmatmul.f32.gmra.mxu0 %v3645
      %v4153 = vpop.f32.mrf.mxu0
      %v4154 = vadd.f32 0.0, %v4153
      %4155 = vdwg.mxu0
      %4156 = vmatpush.msra.mxu0 0.0
      %4157 = vmatpush.msra.mxu0 0.0
      %4158 = vmatpush.msra.mxu0 0.0
      %4159 = vmatpush.msra.mxu0 0.0
      %4160 = vmatpush.msra.mxu0 0.0
      %4161 = vmatpush.msra.mxu0 0.0
      %4162 = vmatpush.msra.mxu0 0.0
      %4163 = vmatpush.msra.mxu0 0.0
      %4164 = vmatpush.msra.mxu0 0.0
      %4165 = vmatpush.msra.mxu0 0.0
      %4166 = vmatpush.msra.mxu0 0.0
      %4167 = vmatpush.msra.mxu0 0.0
      %4168 = vmatpush.msra.mxu0 %v4089
      %4169 = vmatpush.msra.mxu0 %v3604
      %4170 = vmatpush.msra.mxu0 %v3588
      %4171 = vmatpush.msra.mxu0 %v3564
      %4172 = vmatmul.f32.gmra.mxu0 %v3612
      %v4173 = vpop.f32.mrf.mxu0
      %v4174 = vadd.f32 0.0, %v4173
      %4175 = vmatmul.f32.gmra.mxu0 %v3615
      %v4176 = vpop.f32.mrf.mxu0
      %v4177 = vadd.f32 0.0, %v4176
      %4178 = vmatmul.f32.gmra.mxu0 %v3618
      %v4179 = vpop.f32.mrf.mxu0
      %v4180 = vadd.f32 0.0, %v4179
      %4181 = vmatmul.f32.gmra.mxu0 %v3621
      %v4182 = vpop.f32.mrf.mxu0
      %v4183 = vadd.f32 0.0, %v4182
      %4184 = vmatmul.f32.gmra.mxu0 %v3624
      %v4185 = vpop.f32.mrf.mxu0
      %v4186 = vadd.f32 0.0, %v4185
      %4187 = vmatmul.f32.gmra.mxu0 %v3627
      %v4188 = vpop.f32.mrf.mxu0
      %v4189 = vadd.f32 0.0, %v4188
      %4190 = vmatmul.f32.gmra.mxu0 %v3630
      %v4191 = vpop.f32.mrf.mxu0
      %v4192 = vadd.f32 0.0, %v4191
      %4193 = vmatmul.f32.gmra.mxu0 %v3633
      %v4194 = vpop.f32.mrf.mxu0
      %v4195 = vadd.f32 0.0, %v4194
      %4196 = vmatmul.f32.gmra.mxu0 %v3636
      %v4197 = vpop.f32.mrf.mxu0
      %v4198 = vadd.f32 0.0, %v4197
      %4199 = vmatmul.f32.gmra.mxu0 %v3639
      %v4200 = vpop.f32.mrf.mxu0
      %v4201 = vadd.f32 0.0, %v4200
      %4202 = vmatmul.f32.gmra.mxu0 %v3642
      %v4203 = vpop.f32.mrf.mxu0
      %v4204 = vadd.f32 0.0, %v4203
      %4205 = vmatmul.f32.gmra.mxu0 %v3645
      %v4206 = vpop.f32.mrf.mxu0
      %v4207 = vadd.f32 0.0, %v4206
      %4208 = vdwg.mxu0
      %4209 = vmatpush.msra.mxu0 0.0
      %4210 = vmatpush.msra.mxu0 0.0
      %4211 = vmatpush.msra.mxu0 0.0
      %4212 = vmatpush.msra.mxu0 0.0
      %4213 = vmatpush.msra.mxu0 0.0
      %4214 = vmatpush.msra.mxu0 0.0
      %4215 = vmatpush.msra.mxu0 0.0
      %4216 = vmatpush.msra.mxu0 0.0
      %4217 = vmatpush.msra.mxu0 0.0
      %4218 = vmatpush.msra.mxu0 0.0
      %4219 = vmatpush.msra.mxu0 0.0
      %4220 = vmatpush.msra.mxu0 0.0
      %4221 = vmatpush.msra.mxu0 %v4091
      %4222 = vmatpush.msra.mxu0 %v3605
      %4223 = vmatpush.msra.mxu0 %v3589
      %4224 = vmatpush.msra.mxu0 %v3565
      %4225 = vmatmul.f32.gmra.mxu0 %v3612
      %v4226 = vpop.f32.mrf.mxu0
      %v4227 = vadd.f32 0.0, %v4226
      %4228 = vmatmul.f32.gmra.mxu0 %v3615
      %v4229 = vpop.f32.mrf.mxu0
      %v4230 = vadd.f32 0.0, %v4229
      %4231 = vmatmul.f32.gmra.mxu0 %v3618
      %v4232 = vpop.f32.mrf.mxu0
      %v4233 = vadd.f32 0.0, %v4232
      %4234 = vmatmul.f32.gmra.mxu0 %v3621
      %v4235 = vpop.f32.mrf.mxu0
      %v4236 = vadd.f32 0.0, %v4235
      %4237 = vmatmul.f32.gmra.mxu0 %v3624
      %v4238 = vpop.f32.mrf.mxu0
      %v4239 = vadd.f32 0.0, %v4238
      %4240 = vmatmul.f32.gmra.mxu0 %v3627
      %v4241 = vpop.f32.mrf.mxu0
      %v4242 = vadd.f32 0.0, %v4241
      %4243 = vmatmul.f32.gmra.mxu0 %v3630
      %v4244 = vpop.f32.mrf.mxu0
      %v4245 = vadd.f32 0.0, %v4244
      %4246 = vmatmul.f32.gmra.mxu0 %v3633
      %v4247 = vpop.f32.mrf.mxu0
      %v4248 = vadd.f32 0.0, %v4247
      %4249 = vmatmul.f32.gmra.mxu0 %v3636
      %v4250 = vpop.f32.mrf.mxu0
      %v4251 = vadd.f32 0.0, %v4250
      %4252 = vmatmul.f32.gmra.mxu0 %v3639
      %v4253 = vpop.f32.mrf.mxu0
      %v4254 = vadd.f32 0.0, %v4253
      %4255 = vmatmul.f32.gmra.mxu0 %v3642
      %v4256 = vpop.f32.mrf.mxu0
      %v4257 = vadd.f32 0.0, %v4256
      %4258 = vmatmul.f32.gmra.mxu0 %v3645
      %v4259 = vpop.f32.mrf.mxu0
      %v4260 = vadd.f32 0.0, %v4259
      %4261 = vdwg.mxu0
      %4262 = vmatpush.msra.mxu0 0.0
      %4263 = vmatpush.msra.mxu0 0.0
      %4264 = vmatpush.msra.mxu0 0.0
      %4265 = vmatpush.msra.mxu0 0.0
      %4266 = vmatpush.msra.mxu0 0.0
      %4267 = vmatpush.msra.mxu0 0.0
      %4268 = vmatpush.msra.mxu0 0.0
      %4269 = vmatpush.msra.mxu0 0.0
      %4270 = vmatpush.msra.mxu0 0.0
      %4271 = vmatpush.msra.mxu0 0.0
      %4272 = vmatpush.msra.mxu0 0.0
      %4273 = vmatpush.msra.mxu0 0.0
      %4274 = vmatpush.msra.mxu0 %v4093
      %4275 = vmatpush.msra.mxu0 %v3606
      %4276 = vmatpush.msra.mxu0 %v3590
      %4277 = vmatpush.msra.mxu0 %v3566
      %4278 = vmatmul.f32.gmra.mxu0 %v3612
      %v4279 = vpop.f32.mrf.mxu0
      %v4280 = vadd.f32 0.0, %v4279
      %4281 = vmatmul.f32.gmra.mxu0 %v3615
      %v4282 = vpop.f32.mrf.mxu0
      %v4283 = vadd.f32 0.0, %v4282
      %4284 = vmatmul.f32.gmra.mxu0 %v3618
      %v4285 = vpop.f32.mrf.mxu0
      %v4286 = vadd.f32 0.0, %v4285
      %4287 = vmatmul.f32.gmra.mxu0 %v3621
      %v4288 = vpop.f32.mrf.mxu0
      %v4289 = vadd.f32 0.0, %v4288
      %4290 = vmatmul.f32.gmra.mxu0 %v3624
      %v4291 = vpop.f32.mrf.mxu0
      %v4292 = vadd.f32 0.0, %v4291
      %4293 = vmatmul.f32.gmra.mxu0 %v3627
      %v4294 = vpop.f32.mrf.mxu0
      %v4295 = vadd.f32 0.0, %v4294
      %4296 = vmatmul.f32.gmra.mxu0 %v3630
      %v4297 = vpop.f32.mrf.mxu0
      %v4298 = vadd.f32 0.0, %v4297
      %4299 = vmatmul.f32.gmra.mxu0 %v3633
      %v4300 = vpop.f32.mrf.mxu0
      %v4301 = vadd.f32 0.0, %v4300
      %4302 = vmatmul.f32.gmra.mxu0 %v3636
      %v4303 = vpop.f32.mrf.mxu0
      %v4304 = vadd.f32 0.0, %v4303
      %4305 = vmatmul.f32.gmra.mxu0 %v3639
      %v4306 = vpop.f32.mrf.mxu0
      %v4307 = vadd.f32 0.0, %v4306
      %4308 = vmatmul.f32.gmra.mxu0 %v3642
      %v4309 = vpop.f32.mrf.mxu0
      %v4310 = vadd.f32 0.0, %v4309
      %4311 = vmatmul.f32.gmra.mxu0 %v3645
      %v4312 = vpop.f32.mrf.mxu0
      %v4313 = vadd.f32 0.0, %v4312
      %4314 = vdwg.mxu0
      %4315 = vmatpush.msra.mxu0 0.0
      %4316 = vmatpush.msra.mxu0 0.0
      %4317 = vmatpush.msra.mxu0 0.0
      %4318 = vmatpush.msra.mxu0 0.0
      %4319 = vmatpush.msra.mxu0 0.0
      %4320 = vmatpush.msra.mxu0 0.0
      %4321 = vmatpush.msra.mxu0 0.0
      %4322 = vmatpush.msra.mxu0 0.0
      %4323 = vmatpush.msra.mxu0 0.0
      %4324 = vmatpush.msra.mxu0 0.0
      %4325 = vmatpush.msra.mxu0 0.0
      %4326 = vmatpush.msra.mxu0 0.0
      %4327 = vmatpush.msra.mxu0 %v4095
      %4328 = vmatpush.msra.mxu0 %v3607
      %4329 = vmatpush.msra.mxu0 %v3591
      %4330 = vmatpush.msra.mxu0 %v3567
      %4331 = vmatmul.f32.gmra.mxu0 %v3612
      %v4332 = vpop.f32.mrf.mxu0
      %v4333 = vadd.f32 0.0, %v4332
      %4334 = vmatmul.f32.gmra.mxu0 %v3615
      %v4335 = vpop.f32.mrf.mxu0
      %v4336 = vadd.f32 0.0, %v4335
      %4337 = vmatmul.f32.gmra.mxu0 %v3618
      %v4338 = vpop.f32.mrf.mxu0
      %v4339 = vadd.f32 0.0, %v4338
      %4340 = vmatmul.f32.gmra.mxu0 %v3621
      %v4341 = vpop.f32.mrf.mxu0
      %v4342 = vadd.f32 0.0, %v4341
      %4343 = vmatmul.f32.gmra.mxu0 %v3624
      %v4344 = vpop.f32.mrf.mxu0
      %v4345 = vadd.f32 0.0, %v4344
      %4346 = vmatmul.f32.gmra.mxu0 %v3627
      %v4347 = vpop.f32.mrf.mxu0
      %v4348 = vadd.f32 0.0, %v4347
      %4349 = vmatmul.f32.gmra.mxu0 %v3630
      %v4350 = vpop.f32.mrf.mxu0
      %v4351 = vadd.f32 0.0, %v4350
      %4352 = vmatmul.f32.gmra.mxu0 %v3633
      %v4353 = vpop.f32.mrf.mxu0
      %v4354 = vadd.f32 0.0, %v4353
      %4355 = vmatmul.f32.gmra.mxu0 %v3636
      %v4356 = vpop.f32.mrf.mxu0
      %v4357 = vadd.f32 0.0, %v4356
      %4358 = vmatmul.f32.gmra.mxu0 %v3639
      %v4359 = vpop.f32.mrf.mxu0
      %v4360 = vadd.f32 0.0, %v4359
      %4361 = vmatmul.f32.gmra.mxu0 %v3642
      %v4362 = vpop.f32.mrf.mxu0
      %v4363 = vadd.f32 0.0, %v4362
      %4364 = vmatmul.f32.gmra.mxu0 %v3645
      %v4365 = vpop.f32.mrf.mxu0
      %v4366 = vadd.f32 0.0, %v4365
      %4367 = vdwg.mxu0
      %4368 = vmatpush.msra.mxu0 0.0
      %4369 = vmatpush.msra.mxu0 0.0
      %4370 = vmatpush.msra.mxu0 0.0
      %4371 = vmatpush.msra.mxu0 0.0
      %4372 = vmatpush.msra.mxu0 0.0
      %4373 = vmatpush.msra.mxu0 0.0
      %4374 = vmatpush.msra.mxu0 0.0
      %4375 = vmatpush.msra.mxu0 0.0
      %4376 = vmatpush.msra.mxu0 0.0
      %4377 = vmatpush.msra.mxu0 0.0
      %4378 = vmatpush.msra.mxu0 0.0
      %4379 = vmatpush.msra.mxu0 0.0
      %4380 = vmatpush.msra.mxu0 %v4097
      %4381 = vmatpush.msra.mxu0 %v3608
      %4382 = vmatpush.msra.mxu0 %v3592
      %4383 = vmatpush.msra.mxu0 %v3568
      %4384 = vmatmul.f32.gmra.mxu0 %v3612
      %v4385 = vpop.f32.mrf.mxu0
      %v4386 = vadd.f32 0.0, %v4385
      %4387 = vmatmul.f32.gmra.mxu0 %v3615
      %v4388 = vpop.f32.mrf.mxu0
      %v4389 = vadd.f32 0.0, %v4388
      %4390 = vmatmul.f32.gmra.mxu0 %v3618
      %v4391 = vpop.f32.mrf.mxu0
      %v4392 = vadd.f32 0.0, %v4391
      %4393 = vmatmul.f32.gmra.mxu0 %v3621
      %v4394 = vpop.f32.mrf.mxu0
      %v4395 = vadd.f32 0.0, %v4394
      %4396 = vmatmul.f32.gmra.mxu0 %v3624
      %v4397 = vpop.f32.mrf.mxu0
      %v4398 = vadd.f32 0.0, %v4397
      %4399 = vmatmul.f32.gmra.mxu0 %v3627
      %v4400 = vpop.f32.mrf.mxu0
      %v4401 = vadd.f32 0.0, %v4400
      %4402 = vmatmul.f32.gmra.mxu0 %v3630
      %v4403 = vpop.f32.mrf.mxu0
      %v4404 = vadd.f32 0.0, %v4403
      %4405 = vmatmul.f32.gmra.mxu0 %v3633
      %v4406 = vpop.f32.mrf.mxu0
      %v4407 = vadd.f32 0.0, %v4406
      %4408 = vmatmul.f32.gmra.mxu0 %v3636
      %v4409 = vpop.f32.mrf.mxu0
      %v4410 = vadd.f32 0.0, %v4409
      %4411 = vmatmul.f32.gmra.mxu0 %v3639
      %v4412 = vpop.f32.mrf.mxu0
      %v4413 = vadd.f32 0.0, %v4412
      %4414 = vmatmul.f32.gmra.mxu0 %v3642
      %v4415 = vpop.f32.mrf.mxu0
      %v4416 = vadd.f32 0.0, %v4415
      %4417 = vmatmul.f32.gmra.mxu0 %v3645
      %v4418 = vpop.f32.mrf.mxu0
      %v4419 = vadd.f32 0.0, %v4418
      %4420 = vdwg.mxu0
      %4421 = vmatpush.msra.mxu0 0.0
      %4422 = vmatpush.msra.mxu0 0.0
      %4423 = vmatpush.msra.mxu0 0.0
      %4424 = vmatpush.msra.mxu0 0.0
      %4425 = vmatpush.msra.mxu0 0.0
      %4426 = vmatpush.msra.mxu0 0.0
      %4427 = vmatpush.msra.mxu0 0.0
      %4428 = vmatpush.msra.mxu0 0.0
      %4429 = vmatpush.msra.mxu0 0.0
      %4430 = vmatpush.msra.mxu0 0.0
      %4431 = vmatpush.msra.mxu0 0.0
      %4432 = vmatpush.msra.mxu0 0.0
      %4433 = vmatpush.msra.mxu0 %v4099
      %4434 = vmatpush.msra.mxu0 %v3609
      %4435 = vmatpush.msra.mxu0 %v3593
      %4436 = vmatpush.msra.mxu0 %v3569
      %4437 = vmatmul.f32.gmra.mxu0 %v3612
      %v4438 = vpop.f32.mrf.mxu0
      %v4439 = vadd.f32 0.0, %v4438
      %4440 = vmatmul.f32.gmra.mxu0 %v3615
      %v4441 = vpop.f32.mrf.mxu0
      %v4442 = vadd.f32 0.0, %v4441
      %4443 = vmatmul.f32.gmra.mxu0 %v3618
      %v4444 = vpop.f32.mrf.mxu0
      %v4445 = vadd.f32 0.0, %v4444
      %4446 = vmatmul.f32.gmra.mxu0 %v3621
      %v4447 = vpop.f32.mrf.mxu0
      %v4448 = vadd.f32 0.0, %v4447
      %4449 = vmatmul.f32.gmra.mxu0 %v3624
      %v4450 = vpop.f32.mrf.mxu0
      %v4451 = vadd.f32 0.0, %v4450
      %4452 = vmatmul.f32.gmra.mxu0 %v3627
      %v4453 = vpop.f32.mrf.mxu0
      %v4454 = vadd.f32 0.0, %v4453
      %4455 = vmatmul.f32.gmra.mxu0 %v3630
      %v4456 = vpop.f32.mrf.mxu0
      %v4457 = vadd.f32 0.0, %v4456
      %4458 = vmatmul.f32.gmra.mxu0 %v3633
      %v4459 = vpop.f32.mrf.mxu0
      %v4460 = vadd.f32 0.0, %v4459
      %4461 = vmatmul.f32.gmra.mxu0 %v3636
      %v4462 = vpop.f32.mrf.mxu0
      %v4463 = vadd.f32 0.0, %v4462
      %4464 = vmatmul.f32.gmra.mxu0 %v3639
      %v4465 = vpop.f32.mrf.mxu0
      %v4466 = vadd.f32 0.0, %v4465
      %4467 = vmatmul.f32.gmra.mxu0 %v3642
      %v4468 = vpop.f32.mrf.mxu0
      %v4469 = vadd.f32 0.0, %v4468
      %4470 = vmatmul.f32.gmra.mxu0 %v3645
      %v4471 = vpop.f32.mrf.mxu0
      %v4472 = vadd.f32 0.0, %v4471
      %4473 = vdwg.mxu0
      %4474 = vmatpush.msra.mxu0 0.0
      %4475 = vmatpush.msra.mxu0 0.0
      %4476 = vmatpush.msra.mxu0 0.0
      %4477 = vmatpush.msra.mxu0 0.0
      %4478 = vmatpush.msra.mxu0 0.0
      %4479 = vmatpush.msra.mxu0 0.0
      %4480 = vmatpush.msra.mxu0 0.0
      %4481 = vmatpush.msra.mxu0 0.0
      %4482 = vmatpush.msra.mxu0 0.0
      %4483 = vmatpush.msra.mxu0 0.0
      %4484 = vmatpush.msra.mxu0 0.0
      %4485 = vmatpush.msra.mxu0 0.0
      %4486 = vmatpush.msra.mxu0 %v4101
      %4487 = vmatpush.msra.mxu0 %v3610
      %4488 = vmatpush.msra.mxu0 %v3594
      %4489 = vmatpush.msra.mxu0 %v3570
      %4490 = vmatmul.f32.gmra.mxu0 %v3612
      %v4491 = vpop.f32.mrf.mxu0
      %v4492 = vadd.f32 0.0, %v4491
      %4493 = vmatmul.f32.gmra.mxu0 %v3615
      %v4494 = vpop.f32.mrf.mxu0
      %v4495 = vadd.f32 0.0, %v4494
      %4496 = vmatmul.f32.gmra.mxu0 %v3618
      %v4497 = vpop.f32.mrf.mxu0
      %v4498 = vadd.f32 0.0, %v4497
      %4499 = vmatmul.f32.gmra.mxu0 %v3621
      %v4500 = vpop.f32.mrf.mxu0
      %v4501 = vadd.f32 0.0, %v4500
      %4502 = vmatmul.f32.gmra.mxu0 %v3624
      %v4503 = vpop.f32.mrf.mxu0
      %v4504 = vadd.f32 0.0, %v4503
      %4505 = vmatmul.f32.gmra.mxu0 %v3627
      %v4506 = vpop.f32.mrf.mxu0
      %v4507 = vadd.f32 0.0, %v4506
      %4508 = vmatmul.f32.gmra.mxu0 %v3630
      %v4509 = vpop.f32.mrf.mxu0
      %v4510 = vadd.f32 0.0, %v4509
      %4511 = vmatmul.f32.gmra.mxu0 %v3633
      %v4512 = vpop.f32.mrf.mxu0
      %v4513 = vadd.f32 0.0, %v4512
      %4514 = vmatmul.f32.gmra.mxu0 %v3636
      %v4515 = vpop.f32.mrf.mxu0
      %v4516 = vadd.f32 0.0, %v4515
      %4517 = vmatmul.f32.gmra.mxu0 %v3639
      %v4518 = vpop.f32.mrf.mxu0
      %v4519 = vadd.f32 0.0, %v4518
      %4520 = vmatmul.f32.gmra.mxu0 %v3642
      %v4521 = vpop.f32.mrf.mxu0
      %v4522 = vadd.f32 0.0, %v4521
      %4523 = vmatmul.f32.gmra.mxu0 %v3645
      %v4524 = vpop.f32.mrf.mxu0
      %v4525 = vadd.f32 0.0, %v4524
      %4526 = vdwg.mxu0
      %v4527 = vadd.f32 %v2059, %v3681
      %v4528 = vadd.f32 %v2100, %v3734
      %v4529 = vadd.f32 %v2141, %v3787
      %v4530 = vadd.f32 %v2182, %v3840
      %v4531 = vadd.f32 %v2223, %v3893
      %v4532 = vadd.f32 %v2264, %v3946
      %v4533 = vadd.f32 %v2305, %v3999
      %v4534 = vadd.f32 %v2346, %v4052
      %v4535 = vadd.f32 %v2062, %v3684
      %v4536 = vadd.f32 %v2103, %v3737
      %v4537 = vadd.f32 %v2144, %v3790
      %v4538 = vadd.f32 %v2185, %v3843
      %v4539 = vadd.f32 %v2226, %v3896
      %v4540 = vadd.f32 %v2267, %v3949
      %v4541 = vadd.f32 %v2308, %v4002
      %v4542 = vadd.f32 %v2349, %v4055
      %v4543 = vadd.f32 %v2065, %v3687
      %v4544 = vadd.f32 %v2106, %v3740
      %v4545 = vadd.f32 %v2147, %v3793
      %v4546 = vadd.f32 %v2188, %v3846
      %v4547 = vadd.f32 %v2229, %v3899
      %v4548 = vadd.f32 %v2270, %v3952
      %v4549 = vadd.f32 %v2311, %v4005
      %v4550 = vadd.f32 %v2352, %v4058
      %v4551 = vadd.f32 %v2068, %v3690
      %v4552 = vadd.f32 %v2109, %v3743
      %v4553 = vadd.f32 %v2150, %v3796
      %v4554 = vadd.f32 %v2191, %v3849
      %v4555 = vadd.f32 %v2232, %v3902
      %v4556 = vadd.f32 %v2273, %v3955
      %v4557 = vadd.f32 %v2314, %v4008
      %v4558 = vadd.f32 %v2355, %v4061
      %v4559 = vadd.f32 %v2059, %v3693
      %v4560 = vadd.f32 %v2100, %v3746
      %v4561 = vadd.f32 %v2141, %v3799
      %v4562 = vadd.f32 %v2182, %v3852
      %v4563 = vadd.f32 %v2223, %v3905
      %v4564 = vadd.f32 %v2264, %v3958
      %v4565 = vadd.f32 %v2305, %v4011
      %v4566 = vadd.f32 %v2346, %v4064
      %v4567 = vadd.f32 %v2062, %v3696
      %v4568 = vadd.f32 %v2103, %v3749
      %v4569 = vadd.f32 %v2144, %v3802
      %v4570 = vadd.f32 %v2185, %v3855
      %v4571 = vadd.f32 %v2226, %v3908
      %v4572 = vadd.f32 %v2267, %v3961
      %v4573 = vadd.f32 %v2308, %v4014
      %v4574 = vadd.f32 %v2349, %v4067
      %v4575 = vadd.f32 %v2065, %v3699
      %v4576 = vadd.f32 %v2106, %v3752
      %v4577 = vadd.f32 %v2147, %v3805
      %v4578 = vadd.f32 %v2188, %v3858
      %v4579 = vadd.f32 %v2229, %v3911
      %v4580 = vadd.f32 %v2270, %v3964
      %v4581 = vadd.f32 %v2311, %v4017
      %v4582 = vadd.f32 %v2352, %v4070
      %v4583 = vadd.f32 %v2068, %v3702
      %v4584 = vadd.f32 %v2109, %v3755
      %v4585 = vadd.f32 %v2150, %v3808
      %v4586 = vadd.f32 %v2191, %v3861
      %v4587 = vadd.f32 %v2232, %v3914
      %v4588 = vadd.f32 %v2273, %v3967
      %v4589 = vadd.f32 %v2314, %v4020
      %v4590 = vadd.f32 %v2355, %v4073
      %v4591 = vadd.f32 %v2059, %v3705
      %v4592 = vadd.f32 %v2100, %v3758
      %v4593 = vadd.f32 %v2141, %v3811
      %v4594 = vadd.f32 %v2182, %v3864
      %v4595 = vadd.f32 %v2223, %v3917
      %v4596 = vadd.f32 %v2264, %v3970
      %v4597 = vadd.f32 %v2305, %v4023
      %v4598 = vadd.f32 %v2346, %v4076
      %v4599 = vadd.f32 %v2062, %v3708
      %v4600 = vadd.f32 %v2103, %v3761
      %v4601 = vadd.f32 %v2144, %v3814
      %v4602 = vadd.f32 %v2185, %v3867
      %v4603 = vadd.f32 %v2226, %v3920
      %v4604 = vadd.f32 %v2267, %v3973
      %v4605 = vadd.f32 %v2308, %v4026
      %v4606 = vadd.f32 %v2349, %v4079
      %v4607 = vadd.f32 %v2065, %v3711
      %v4608 = vadd.f32 %v2106, %v3764
      %v4609 = vadd.f32 %v2147, %v3817
      %v4610 = vadd.f32 %v2188, %v3870
      %v4611 = vadd.f32 %v2229, %v3923
      %v4612 = vadd.f32 %v2270, %v3976
      %v4613 = vadd.f32 %v2311, %v4029
      %v4614 = vadd.f32 %v2352, %v4082
      %v4615 = vadd.f32 %v2068, %v3714
      %v4616 = vadd.f32 %v2109, %v3767
      %v4617 = vadd.f32 %v2150, %v3820
      %v4618 = vadd.f32 %v2191, %v3873
      %v4619 = vadd.f32 %v2232, %v3926
      %v4620 = vadd.f32 %v2273, %v3979
      %v4621 = vadd.f32 %v2314, %v4032
      %v4622 = vadd.f32 %v2355, %v4085
      %v4623 = vadd.f32 %v4527, %v4121
      %v4624 = vadd.f32 %v4528, %v4174
      %v4625 = vadd.f32 %v4529, %v4227
      %v4626 = vadd.f32 %v4530, %v4280
      %v4627 = vadd.f32 %v4531, %v4333
      %v4628 = vadd.f32 %v4532, %v4386
      %v4629 = vadd.f32 %v4533, %v4439
      %v4630 = vadd.f32 %v4534, %v4492
      %v4631 = vadd.f32 %v4535, %v4124
      %v4632 = vadd.f32 %v4536, %v4177
      %v4633 = vadd.f32 %v4537, %v4230
      %v4634 = vadd.f32 %v4538, %v4283
      %v4635 = vadd.f32 %v4539, %v4336
      %v4636 = vadd.f32 %v4540, %v4389
      %v4637 = vadd.f32 %v4541, %v4442
      %v4638 = vadd.f32 %v4542, %v4495
      %v4639 = vadd.f32 %v4543, %v4127
      %v4640 = vadd.f32 %v4544, %v4180
      %v4641 = vadd.f32 %v4545, %v4233
      %v4642 = vadd.f32 %v4546, %v4286
      %v4643 = vadd.f32 %v4547, %v4339
      %v4644 = vadd.f32 %v4548, %v4392
      %v4645 = vadd.f32 %v4549, %v4445
      %v4646 = vadd.f32 %v4550, %v4498
      %v4647 = vadd.f32 %v4551, %v4130
      %v4648 = vadd.f32 %v4552, %v4183
      %v4649 = vadd.f32 %v4553, %v4236
      %v4650 = vadd.f32 %v4554, %v4289
      %v4651 = vadd.f32 %v4555, %v4342
      %v4652 = vadd.f32 %v4556, %v4395
      %v4653 = vadd.f32 %v4557, %v4448
      %v4654 = vadd.f32 %v4558, %v4501
      %v4655 = vadd.f32 %v4559, %v4133
      %v4656 = vadd.f32 %v4560, %v4186
      %v4657 = vadd.f32 %v4561, %v4239
      %v4658 = vadd.f32 %v4562, %v4292
      %v4659 = vadd.f32 %v4563, %v4345
      %v4660 = vadd.f32 %v4564, %v4398
      %v4661 = vadd.f32 %v4565, %v4451
      %v4662 = vadd.f32 %v4566, %v4504
      %v4663 = vadd.f32 %v4567, %v4136
      %v4664 = vadd.f32 %v4568, %v4189
      %v4665 = vadd.f32 %v4569, %v4242
      %v4666 = vadd.f32 %v4570, %v4295
      %v4667 = vadd.f32 %v4571, %v4348
      %v4668 = vadd.f32 %v4572, %v4401
      %v4669 = vadd.f32 %v4573, %v4454
      %v4670 = vadd.f32 %v4574, %v4507
      %v4671 = vadd.f32 %v4575, %v4139
      %v4672 = vadd.f32 %v4576, %v4192
      %v4673 = vadd.f32 %v4577, %v4245
      %v4674 = vadd.f32 %v4578, %v4298
      %v4675 = vadd.f32 %v4579, %v4351
      %v4676 = vadd.f32 %v4580, %v4404
      %v4677 = vadd.f32 %v4581, %v4457
      %v4678 = vadd.f32 %v4582, %v4510
      %v4679 = vadd.f32 %v4583, %v4142
      %v4680 = vadd.f32 %v4584, %v4195
      %v4681 = vadd.f32 %v4585, %v4248
      %v4682 = vadd.f32 %v4586, %v4301
      %v4683 = vadd.f32 %v4587, %v4354
      %v4684 = vadd.f32 %v4588, %v4407
      %v4685 = vadd.f32 %v4589, %v4460
      %v4686 = vadd.f32 %v4590, %v4513
      %v4687 = vadd.f32 %v4591, %v4145
      %v4688 = vadd.f32 %v4592, %v4198
      %v4689 = vadd.f32 %v4593, %v4251
      %v4690 = vadd.f32 %v4594, %v4304
      %v4691 = vadd.f32 %v4595, %v4357
      %v4692 = vadd.f32 %v4596, %v4410
      %v4693 = vadd.f32 %v4597, %v4463
      %v4694 = vadd.f32 %v4598, %v4516
      %v4695 = vadd.f32 %v4599, %v4148
      %v4696 = vadd.f32 %v4600, %v4201
      %v4697 = vadd.f32 %v4601, %v4254
      %v4698 = vadd.f32 %v4602, %v4307
      %v4699 = vadd.f32 %v4603, %v4360
      %v4700 = vadd.f32 %v4604, %v4413
      %v4701 = vadd.f32 %v4605, %v4466
      %v4702 = vadd.f32 %v4606, %v4519
      %v4703 = vadd.f32 %v4607, %v4151
      %v4704 = vadd.f32 %v4608, %v4204
      %v4705 = vadd.f32 %v4609, %v4257
      %v4706 = vadd.f32 %v4610, %v4310
      %v4707 = vadd.f32 %v4611, %v4363
      %v4708 = vadd.f32 %v4612, %v4416
      %v4709 = vadd.f32 %v4613, %v4469
      %v4710 = vadd.f32 %v4614, %v4522
      %v4711 = vadd.f32 %v4615, %v4154
      %v4712 = vadd.f32 %v4616, %v4207
      %v4713 = vadd.f32 %v4617, %v4260
      %v4714 = vadd.f32 %v4618, %v4313
      %v4715 = vadd.f32 %v4619, %v4366
      %v4716 = vadd.f32 %v4620, %v4419
      %v4717 = vadd.f32 %v4621, %v4472
      %v4718 = vadd.f32 %v4622, %v4525
      %v4719 = vmax.f32 %v4623, 0.0
      %v4720 = vmax.f32 %v4624, 0.0
      %v4721 = vmax.f32 %v4625, 0.0
      %v4722 = vmax.f32 %v4626, 0.0
      %v4723 = vmax.f32 %v4627, 0.0
      %v4724 = vmax.f32 %v4628, 0.0
      %v4725 = vmax.f32 %v4629, 0.0
      %v4726 = vmax.f32 %v4630, 0.0
      %v4727 = vmax.f32 %v4631, 0.0
      %v4728 = vmax.f32 %v4632, 0.0
      %v4729 = vmax.f32 %v4633, 0.0
      %v4730 = vmax.f32 %v4634, 0.0
      %v4731 = vmax.f32 %v4635, 0.0
      %v4732 = vmax.f32 %v4636, 0.0
      %v4733 = vmax.f32 %v4637, 0.0
      %v4734 = vmax.f32 %v4638, 0.0
      %v4735 = vmax.f32 %v4639, 0.0
      %v4736 = vmax.f32 %v4640, 0.0
      %v4737 = vmax.f32 %v4641, 0.0
      %v4738 = vmax.f32 %v4642, 0.0
      %v4739 = vmax.f32 %v4643, 0.0
      %v4740 = vmax.f32 %v4644, 0.0
      %v4741 = vmax.f32 %v4645, 0.0
      %v4742 = vmax.f32 %v4646, 0.0
      %v4743 = vmax.f32 %v4647, 0.0
      %v4744 = vmax.f32 %v4648, 0.0
      %v4745 = vmax.f32 %v4649, 0.0
      %v4746 = vmax.f32 %v4650, 0.0
      %v4747 = vmax.f32 %v4651, 0.0
      %v4748 = vmax.f32 %v4652, 0.0
      %v4749 = vmax.f32 %v4653, 0.0
      %v4750 = vmax.f32 %v4654, 0.0
      %v4751 = vmax.f32 %v4655, 0.0
      %v4752 = vmax.f32 %v4656, 0.0
      %v4753 = vmax.f32 %v4657, 0.0
      %v4754 = vmax.f32 %v4658, 0.0
      %v4755 = vmax.f32 %v4659, 0.0
      %v4756 = vmax.f32 %v4660, 0.0
      %v4757 = vmax.f32 %v4661, 0.0
      %v4758 = vmax.f32 %v4662, 0.0
      %v4759 = vmax.f32 %v4663, 0.0
      %v4760 = vmax.f32 %v4664, 0.0
      %v4761 = vmax.f32 %v4665, 0.0
      %v4762 = vmax.f32 %v4666, 0.0
      %v4763 = vmax.f32 %v4667, 0.0
      %v4764 = vmax.f32 %v4668, 0.0
      %v4765 = vmax.f32 %v4669, 0.0
      %v4766 = vmax.f32 %v4670, 0.0
      %v4767 = vmax.f32 %v4671, 0.0
      %v4768 = vmax.f32 %v4672, 0.0
      %v4769 = vmax.f32 %v4673, 0.0
      %v4770 = vmax.f32 %v4674, 0.0
      %v4771 = vmax.f32 %v4675, 0.0
      %v4772 = vmax.f32 %v4676, 0.0
      %v4773 = vmax.f32 %v4677, 0.0
      %v4774 = vmax.f32 %v4678, 0.0
      %v4775 = vmax.f32 %v4679, 0.0
      %v4776 = vmax.f32 %v4680, 0.0
      %v4777 = vmax.f32 %v4681, 0.0
      %v4778 = vmax.f32 %v4682, 0.0
      %v4779 = vmax.f32 %v4683, 0.0
      %v4780 = vmax.f32 %v4684, 0.0
      %v4781 = vmax.f32 %v4685, 0.0
      %v4782 = vmax.f32 %v4686, 0.0
      %v4783 = vmax.f32 %v4687, 0.0
      %v4784 = vmax.f32 %v4688, 0.0
      %v4785 = vmax.f32 %v4689, 0.0
      %v4786 = vmax.f32 %v4690, 0.0
      %v4787 = vmax.f32 %v4691, 0.0
      %v4788 = vmax.f32 %v4692, 0.0
      %v4789 = vmax.f32 %v4693, 0.0
      %v4790 = vmax.f32 %v4694, 0.0
      %v4791 = vmax.f32 %v4695, 0.0
      %v4792 = vmax.f32 %v4696, 0.0
      %v4793 = vmax.f32 %v4697, 0.0
      %v4794 = vmax.f32 %v4698, 0.0
      %v4795 = vmax.f32 %v4699, 0.0
      %v4796 = vmax.f32 %v4700, 0.0
      %v4797 = vmax.f32 %v4701, 0.0
      %v4798 = vmax.f32 %v4702, 0.0
      %v4799 = vmax.f32 %v4703, 0.0
      %v4800 = vmax.f32 %v4704, 0.0
      %v4801 = vmax.f32 %v4705, 0.0
      %v4802 = vmax.f32 %v4706, 0.0
      %v4803 = vmax.f32 %v4707, 0.0
      %v4804 = vmax.f32 %v4708, 0.0
      %v4805 = vmax.f32 %v4709, 0.0
      %v4806 = vmax.f32 %v4710, 0.0
      %v4807 = vmax.f32 %v4711, 0.0
      %v4808 = vmax.f32 %v4712, 0.0
      %v4809 = vmax.f32 %v4713, 0.0
      %v4810 = vmax.f32 %v4714, 0.0
      %v4811 = vmax.f32 %v4715, 0.0
      %v4812 = vmax.f32 %v4716, 0.0
      %v4813 = vmax.f32 %v4717, 0.0
      %v4814 = vmax.f32 %v4718, 0.0
      %v4815 = vsub.f32 %v4527, %v4121
      %v4816 = vsub.f32 %v4528, %v4174
      %v4817 = vsub.f32 %v4529, %v4227
      %v4818 = vsub.f32 %v4530, %v4280
      %v4819 = vsub.f32 %v4531, %v4333
      %v4820 = vsub.f32 %v4532, %v4386
      %v4821 = vsub.f32 %v4533, %v4439
      %v4822 = vsub.f32 %v4534, %v4492
      %v4823 = vsub.f32 %v4535, %v4124
      %v4824 = vsub.f32 %v4536, %v4177
      %v4825 = vsub.f32 %v4537, %v4230
      %v4826 = vsub.f32 %v4538, %v4283
      %v4827 = vsub.f32 %v4539, %v4336
      %v4828 = vsub.f32 %v4540, %v4389
      %v4829 = vsub.f32 %v4541, %v4442
      %v4830 = vsub.f32 %v4542, %v4495
      %v4831 = vsub.f32 %v4543, %v4127
      %v4832 = vsub.f32 %v4544, %v4180
      %v4833 = vsub.f32 %v4545, %v4233
      %v4834 = vsub.f32 %v4546, %v4286
      %v4835 = vsub.f32 %v4547, %v4339
      %v4836 = vsub.f32 %v4548, %v4392
      %v4837 = vsub.f32 %v4549, %v4445
      %v4838 = vsub.f32 %v4550, %v4498
      %v4839 = vsub.f32 %v4551, %v4130
      %v4840 = vsub.f32 %v4552, %v4183
      %v4841 = vsub.f32 %v4553, %v4236
      %v4842 = vsub.f32 %v4554, %v4289
      %v4843 = vsub.f32 %v4555, %v4342
      %v4844 = vsub.f32 %v4556, %v4395
      %v4845 = vsub.f32 %v4557, %v4448
      %v4846 = vsub.f32 %v4558, %v4501
      %v4847 = vsub.f32 %v4559, %v4133
      %v4848 = vsub.f32 %v4560, %v4186
      %v4849 = vsub.f32 %v4561, %v4239
      %v4850 = vsub.f32 %v4562, %v4292
      %v4851 = vsub.f32 %v4563, %v4345
      %v4852 = vsub.f32 %v4564, %v4398
      %v4853 = vsub.f32 %v4565, %v4451
      %v4854 = vsub.f32 %v4566, %v4504
      %v4855 = vsub.f32 %v4567, %v4136
      %v4856 = vsub.f32 %v4568, %v4189
      %v4857 = vsub.f32 %v4569, %v4242
      %v4858 = vsub.f32 %v4570, %v4295
      %v4859 = vsub.f32 %v4571, %v4348
      %v4860 = vsub.f32 %v4572, %v4401
      %v4861 = vsub.f32 %v4573, %v4454
      %v4862 = vsub.f32 %v4574, %v4507
      %v4863 = vsub.f32 %v4575, %v4139
      %v4864 = vsub.f32 %v4576, %v4192
      %v4865 = vsub.f32 %v4577, %v4245
      %v4866 = vsub.f32 %v4578, %v4298
      %v4867 = vsub.f32 %v4579, %v4351
      %v4868 = vsub.f32 %v4580, %v4404
      %v4869 = vsub.f32 %v4581, %v4457
      %v4870 = vsub.f32 %v4582, %v4510
      %v4871 = vsub.f32 %v4583, %v4142
      %v4872 = vsub.f32 %v4584, %v4195
      %v4873 = vsub.f32 %v4585, %v4248
      %v4874 = vsub.f32 %v4586, %v4301
      %v4875 = vsub.f32 %v4587, %v4354
      %v4876 = vsub.f32 %v4588, %v4407
      %v4877 = vsub.f32 %v4589, %v4460
      %v4878 = vsub.f32 %v4590, %v4513
      %v4879 = vsub.f32 %v4591, %v4145
      %v4880 = vsub.f32 %v4592, %v4198
      %v4881 = vsub.f32 %v4593, %v4251
      %v4882 = vsub.f32 %v4594, %v4304
      %v4883 = vsub.f32 %v4595, %v4357
      %v4884 = vsub.f32 %v4596, %v4410
      %v4885 = vsub.f32 %v4597, %v4463
      %v4886 = vsub.f32 %v4598, %v4516
      %v4887 = vsub.f32 %v4599, %v4148
      %v4888 = vsub.f32 %v4600, %v4201
      %v4889 = vsub.f32 %v4601, %v4254
      %v4890 = vsub.f32 %v4602, %v4307
      %v4891 = vsub.f32 %v4603, %v4360
      %v4892 = vsub.f32 %v4604, %v4413
      %v4893 = vsub.f32 %v4605, %v4466
      %v4894 = vsub.f32 %v4606, %v4519
      %v4895 = vsub.f32 %v4607, %v4151
      %v4896 = vsub.f32 %v4608, %v4204
      %v4897 = vsub.f32 %v4609, %v4257
      %v4898 = vsub.f32 %v4610, %v4310
      %v4899 = vsub.f32 %v4611, %v4363
      %v4900 = vsub.f32 %v4612, %v4416
      %v4901 = vsub.f32 %v4613, %v4469
      %v4902 = vsub.f32 %v4614, %v4522
      %v4903 = vsub.f32 %v4615, %v4154
      %v4904 = vsub.f32 %v4616, %v4207
      %v4905 = vsub.f32 %v4617, %v4260
      %v4906 = vsub.f32 %v4618, %v4313
      %v4907 = vsub.f32 %v4619, %v4366
      %v4908 = vsub.f32 %v4620, %v4419
      %v4909 = vsub.f32 %v4621, %v4472
      %v4910 = vsub.f32 %v4622, %v4525
      %v4911 = vmax.f32 %v4815, 0.0
      %v4912 = vmax.f32 %v4816, 0.0
      %v4913 = vmax.f32 %v4817, 0.0
      %v4914 = vmax.f32 %v4818, 0.0
      %v4915 = vmax.f32 %v4819, 0.0
      %v4916 = vmax.f32 %v4820, 0.0
      %v4917 = vmax.f32 %v4821, 0.0
      %v4918 = vmax.f32 %v4822, 0.0
      %v4919 = vmax.f32 %v4823, 0.0
      %v4920 = vmax.f32 %v4824, 0.0
      %v4921 = vmax.f32 %v4825, 0.0
      %v4922 = vmax.f32 %v4826, 0.0
      %v4923 = vmax.f32 %v4827, 0.0
      %v4924 = vmax.f32 %v4828, 0.0
      %v4925 = vmax.f32 %v4829, 0.0
      %v4926 = vmax.f32 %v4830, 0.0
      %v4927 = vmax.f32 %v4831, 0.0
      %v4928 = vmax.f32 %v4832, 0.0
      %v4929 = vmax.f32 %v4833, 0.0
      %v4930 = vmax.f32 %v4834, 0.0
      %v4931 = vmax.f32 %v4835, 0.0
      %v4932 = vmax.f32 %v4836, 0.0
      %v4933 = vmax.f32 %v4837, 0.0
      %v4934 = vmax.f32 %v4838, 0.0
      %v4935 = vmax.f32 %v4839, 0.0
      %v4936 = vmax.f32 %v4840, 0.0
      %v4937 = vmax.f32 %v4841, 0.0
      %v4938 = vmax.f32 %v4842, 0.0
      %v4939 = vmax.f32 %v4843, 0.0
      %v4940 = vmax.f32 %v4844, 0.0
      %v4941 = vmax.f32 %v4845, 0.0
      %v4942 = vmax.f32 %v4846, 0.0
      %v4943 = vmax.f32 %v4847, 0.0
      %v4944 = vmax.f32 %v4848, 0.0
      %v4945 = vmax.f32 %v4849, 0.0
      %v4946 = vmax.f32 %v4850, 0.0
      %v4947 = vmax.f32 %v4851, 0.0
      %v4948 = vmax.f32 %v4852, 0.0
      %v4949 = vmax.f32 %v4853, 0.0
      %v4950 = vmax.f32 %v4854, 0.0
      %v4951 = vmax.f32 %v4855, 0.0
      %v4952 = vmax.f32 %v4856, 0.0
      %v4953 = vmax.f32 %v4857, 0.0
      %v4954 = vmax.f32 %v4858, 0.0
      %v4955 = vmax.f32 %v4859, 0.0
      %v4956 = vmax.f32 %v4860, 0.0
      %v4957 = vmax.f32 %v4861, 0.0
      %v4958 = vmax.f32 %v4862, 0.0
      %v4959 = vmax.f32 %v4863, 0.0
      %v4960 = vmax.f32 %v4864, 0.0
      %v4961 = vmax.f32 %v4865, 0.0
      %v4962 = vmax.f32 %v4866, 0.0
      %v4963 = vmax.f32 %v4867, 0.0
      %v4964 = vmax.f32 %v4868, 0.0
      %v4965 = vmax.f32 %v4869, 0.0
      %v4966 = vmax.f32 %v4870, 0.0
      %v4967 = vmax.f32 %v4871, 0.0
      %v4968 = vmax.f32 %v4872, 0.0
      %v4969 = vmax.f32 %v4873, 0.0
      %v4970 = vmax.f32 %v4874, 0.0
      %v4971 = vmax.f32 %v4875, 0.0
      %v4972 = vmax.f32 %v4876, 0.0
      %v4973 = vmax.f32 %v4877, 0.0
      %v4974 = vmax.f32 %v4878, 0.0
      %v4975 = vmax.f32 %v4879, 0.0
      %v4976 = vmax.f32 %v4880, 0.0
      %v4977 = vmax.f32 %v4881, 0.0
      %v4978 = vmax.f32 %v4882, 0.0
      %v4979 = vmax.f32 %v4883, 0.0
      %v4980 = vmax.f32 %v4884, 0.0
      %v4981 = vmax.f32 %v4885, 0.0
      %v4982 = vmax.f32 %v4886, 0.0
      %v4983 = vmax.f32 %v4887, 0.0
      %v4984 = vmax.f32 %v4888, 0.0
      %v4985 = vmax.f32 %v4889, 0.0
      %v4986 = vmax.f32 %v4890, 0.0
      %v4987 = vmax.f32 %v4891, 0.0
      %v4988 = vmax.f32 %v4892, 0.0
      %v4989 = vmax.f32 %v4893, 0.0
      %v4990 = vmax.f32 %v4894, 0.0
      %v4991 = vmax.f32 %v4895, 0.0
      %v4992 = vmax.f32 %v4896, 0.0
      %v4993 = vmax.f32 %v4897, 0.0
      %v4994 = vmax.f32 %v4898, 0.0
      %v4995 = vmax.f32 %v4899, 0.0
      %v4996 = vmax.f32 %v4900, 0.0
      %v4997 = vmax.f32 %v4901, 0.0
      %v4998 = vmax.f32 %v4902, 0.0
      %v4999 = vmax.f32 %v4903, 0.0
      %v5000 = vmax.f32 %v4904, 0.0
      %v5001 = vmax.f32 %v4905, 0.0
      %v5002 = vmax.f32 %v4906, 0.0
      %v5003 = vmax.f32 %v4907, 0.0
      %v5004 = vmax.f32 %v4908, 0.0
      %v5005 = vmax.f32 %v4909, 0.0
      %v5006 = vmax.f32 %v4910, 0.0
      %s5007 = vtos %v303
      %v5008 = vstv %s5007
      %vm5010 = vcmask 785408
      %v5012 = vsel %vm5010, %v316, 0
      %5014 = vmatpush.msra.mxu0 0.0
      %5015 = vmatpush.msra.mxu0 0.0
      %5016 = vmatpush.msra.mxu0 0.0
      %5017 = vmatpush.msra.mxu0 0.0
      %5018 = vmatpush.msra.mxu0 %v4807
      %5019 = vmatpush.msra.mxu0 %v4799
      %5020 = vmatpush.msra.mxu0 %v4791
      %5021 = vmatpush.msra.mxu0 %v4783
      %5022 = vmatpush.msra.mxu0 %v4775
      %5023 = vmatpush.msra.mxu0 %v4767
      %5024 = vmatpush.msra.mxu0 %v4759
      %5025 = vmatpush.msra.mxu0 %v4751
      %5026 = vmatpush.msra.mxu0 %v4743
      %5027 = vmatpush.msra.mxu0 %v4735
      %5028 = vmatpush.msra.mxu0 %v4727
      %5029 = vmatpush.msra.mxu0 %v4719
      %5030 = vmatmul.f32.gmra.mxu0 %v5012
      %v5031 = vpop.f32.mrf.mxu0
      %v5032 = vadd.f32 %v5008, %v5031
      %5033 = vdwg.mxu0
      %5034 = vmatpush.msra.mxu0 0.0
      %5035 = vmatpush.msra.mxu0 0.0
      %5036 = vmatpush.msra.mxu0 0.0
      %5037 = vmatpush.msra.mxu0 0.0
      %5038 = vmatpush.msra.mxu0 %v4808
      %5039 = vmatpush.msra.mxu0 %v4800
      %5040 = vmatpush.msra.mxu0 %v4792
      %5041 = vmatpush.msra.mxu0 %v4784
      %5042 = vmatpush.msra.mxu0 %v4776
      %5043 = vmatpush.msra.mxu0 %v4768
      %5044 = vmatpush.msra.mxu0 %v4760
      %5045 = vmatpush.msra.mxu0 %v4752
      %5046 = vmatpush.msra.mxu0 %v4744
      %5047 = vmatpush.msra.mxu0 %v4736
      %5048 = vmatpush.msra.mxu0 %v4728
      %5049 = vmatpush.msra.mxu0 %v4720
      %5050 = vmatmul.f32.gmra.mxu0 %v5012
      %v5051 = vpop.f32.mrf.mxu0
      %v5052 = vadd.f32 %v5008, %v5051
      %5053 = vdwg.mxu0
      %5054 = vmatpush.msra.mxu0 0.0
      %5055 = vmatpush.msra.mxu0 0.0
      %5056 = vmatpush.msra.mxu0 0.0
      %5057 = vmatpush.msra.mxu0 0.0
      %5058 = vmatpush.msra.mxu0 %v4809
      %5059 = vmatpush.msra.mxu0 %v4801
      %5060 = vmatpush.msra.mxu0 %v4793
      %5061 = vmatpush.msra.mxu0 %v4785
      %5062 = vmatpush.msra.mxu0 %v4777
      %5063 = vmatpush.msra.mxu0 %v4769
      %5064 = vmatpush.msra.mxu0 %v4761
      %5065 = vmatpush.msra.mxu0 %v4753
      %5066 = vmatpush.msra.mxu0 %v4745
      %5067 = vmatpush.msra.mxu0 %v4737
      %5068 = vmatpush.msra.mxu0 %v4729
      %5069 = vmatpush.msra.mxu0 %v4721
      %5070 = vmatmul.f32.gmra.mxu0 %v5012
      %v5071 = vpop.f32.mrf.mxu0
      %v5072 = vadd.f32 %v5008, %v5071
      %5073 = vdwg.mxu0
      %5074 = vmatpush.msra.mxu0 0.0
      %5075 = vmatpush.msra.mxu0 0.0
      %5076 = vmatpush.msra.mxu0 0.0
      %5077 = vmatpush.msra.mxu0 0.0
      %5078 = vmatpush.msra.mxu0 %v4810
      %5079 = vmatpush.msra.mxu0 %v4802
      %5080 = vmatpush.msra.mxu0 %v4794
      %5081 = vmatpush.msra.mxu0 %v4786
      %5082 = vmatpush.msra.mxu0 %v4778
      %5083 = vmatpush.msra.mxu0 %v4770
      %5084 = vmatpush.msra.mxu0 %v4762
      %5085 = vmatpush.msra.mxu0 %v4754
      %5086 = vmatpush.msra.mxu0 %v4746
      %5087 = vmatpush.msra.mxu0 %v4738
      %5088 = vmatpush.msra.mxu0 %v4730
      %5089 = vmatpush.msra.mxu0 %v4722
      %5090 = vmatmul.f32.gmra.mxu0 %v5012
      %v5091 = vpop.f32.mrf.mxu0
      %v5092 = vadd.f32 %v5008, %v5091
      %5093 = vdwg.mxu0
      %5094 = vmatpush.msra.mxu0 0.0
      %5095 = vmatpush.msra.mxu0 0.0
      %5096 = vmatpush.msra.mxu0 0.0
      %5097 = vmatpush.msra.mxu0 0.0
      %5098 = vmatpush.msra.mxu0 %v4811
      %5099 = vmatpush.msra.mxu0 %v4803
      %5100 = vmatpush.msra.mxu0 %v4795
      %5101 = vmatpush.msra.mxu0 %v4787
      %5102 = vmatpush.msra.mxu0 %v4779
      %5103 = vmatpush.msra.mxu0 %v4771
      %5104 = vmatpush.msra.mxu0 %v4763
      %5105 = vmatpush.msra.mxu0 %v4755
      %5106 = vmatpush.msra.mxu0 %v4747
      %5107 = vmatpush.msra.mxu0 %v4739
      %5108 = vmatpush.msra.mxu0 %v4731
      %5109 = vmatpush.msra.mxu0 %v4723
      %5110 = vmatmul.f32.gmra.mxu0 %v5012
      %v5111 = vpop.f32.mrf.mxu0
      %v5112 = vadd.f32 %v5008, %v5111
      %5113 = vdwg.mxu0
      %5114 = vmatpush.msra.mxu0 0.0
      %5115 = vmatpush.msra.mxu0 0.0
      %5116 = vmatpush.msra.mxu0 0.0
      %5117 = vmatpush.msra.mxu0 0.0
      %5118 = vmatpush.msra.mxu0 %v4812
      %5119 = vmatpush.msra.mxu0 %v4804
      %5120 = vmatpush.msra.mxu0 %v4796
      %5121 = vmatpush.msra.mxu0 %v4788
      %5122 = vmatpush.msra.mxu0 %v4780
      %5123 = vmatpush.msra.mxu0 %v4772
      %5124 = vmatpush.msra.mxu0 %v4764
      %5125 = vmatpush.msra.mxu0 %v4756
      %5126 = vmatpush.msra.mxu0 %v4748
      %5127 = vmatpush.msra.mxu0 %v4740
      %5128 = vmatpush.msra.mxu0 %v4732
      %5129 = vmatpush.msra.mxu0 %v4724
      %5130 = vmatmul.f32.gmra.mxu0 %v5012
      %v5131 = vpop.f32.mrf.mxu0
      %v5132 = vadd.f32 %v5008, %v5131
      %5133 = vdwg.mxu0
      %5134 = vmatpush.msra.mxu0 0.0
      %5135 = vmatpush.msra.mxu0 0.0
      %5136 = vmatpush.msra.mxu0 0.0
      %5137 = vmatpush.msra.mxu0 0.0
      %5138 = vmatpush.msra.mxu0 %v4813
      %5139 = vmatpush.msra.mxu0 %v4805
      %5140 = vmatpush.msra.mxu0 %v4797
      %5141 = vmatpush.msra.mxu0 %v4789
      %5142 = vmatpush.msra.mxu0 %v4781
      %5143 = vmatpush.msra.mxu0 %v4773
      %5144 = vmatpush.msra.mxu0 %v4765
      %5145 = vmatpush.msra.mxu0 %v4757
      %5146 = vmatpush.msra.mxu0 %v4749
      %5147 = vmatpush.msra.mxu0 %v4741
      %5148 = vmatpush.msra.mxu0 %v4733
      %5149 = vmatpush.msra.mxu0 %v4725
      %5150 = vmatmul.f32.gmra.mxu0 %v5012
      %v5151 = vpop.f32.mrf.mxu0
      %v5152 = vadd.f32 %v5008, %v5151
      %5153 = vdwg.mxu0
      %5154 = vmatpush.msra.mxu0 0.0
      %5155 = vmatpush.msra.mxu0 0.0
      %5156 = vmatpush.msra.mxu0 0.0
      %5157 = vmatpush.msra.mxu0 0.0
      %5158 = vmatpush.msra.mxu0 %v4814
      %5159 = vmatpush.msra.mxu0 %v4806
      %5160 = vmatpush.msra.mxu0 %v4798
      %5161 = vmatpush.msra.mxu0 %v4790
      %5162 = vmatpush.msra.mxu0 %v4782
      %5163 = vmatpush.msra.mxu0 %v4774
      %5164 = vmatpush.msra.mxu0 %v4766
      %5165 = vmatpush.msra.mxu0 %v4758
      %5166 = vmatpush.msra.mxu0 %v4750
      %5167 = vmatpush.msra.mxu0 %v4742
      %5168 = vmatpush.msra.mxu0 %v4734
      %5169 = vmatpush.msra.mxu0 %v4726
      %5170 = vmatmul.f32.gmra.mxu0 %v5012
      %v5171 = vpop.f32.mrf.mxu0
      %v5172 = vadd.f32 %v5008, %v5171
      %5173 = vdwg.mxu0
      %5174 = vmatpush.msra.mxu0 0.0
      %5175 = vmatpush.msra.mxu0 0.0
      %5176 = vmatpush.msra.mxu0 0.0
      %5177 = vmatpush.msra.mxu0 0.0
      %5178 = vmatpush.msra.mxu0 %v4999
      %5179 = vmatpush.msra.mxu0 %v4991
      %5180 = vmatpush.msra.mxu0 %v4983
      %5181 = vmatpush.msra.mxu0 %v4975
      %5182 = vmatpush.msra.mxu0 %v4967
      %5183 = vmatpush.msra.mxu0 %v4959
      %5184 = vmatpush.msra.mxu0 %v4951
      %5185 = vmatpush.msra.mxu0 %v4943
      %5186 = vmatpush.msra.mxu0 %v4935
      %5187 = vmatpush.msra.mxu0 %v4927
      %5188 = vmatpush.msra.mxu0 %v4919
      %5189 = vmatpush.msra.mxu0 %v4911
      %5190 = vmatmul.f32.gmra.mxu0 %v5012
      %v5191 = vpop.f32.mrf.mxu0
      %v5192 = vadd.f32 %v5008, %v5191
      %5193 = vdwg.mxu0
      %5194 = vmatpush.msra.mxu0 0.0
      %5195 = vmatpush.msra.mxu0 0.0
      %5196 = vmatpush.msra.mxu0 0.0
      %5197 = vmatpush.msra.mxu0 0.0
      %5198 = vmatpush.msra.mxu0 %v5000
      %5199 = vmatpush.msra.mxu0 %v4992
      %5200 = vmatpush.msra.mxu0 %v4984
      %5201 = vmatpush.msra.mxu0 %v4976
      %5202 = vmatpush.msra.mxu0 %v4968
      %5203 = vmatpush.msra.mxu0 %v4960
      %5204 = vmatpush.msra.mxu0 %v4952
      %5205 = vmatpush.msra.mxu0 %v4944
      %5206 = vmatpush.msra.mxu0 %v4936
      %5207 = vmatpush.msra.mxu0 %v4928
      %5208 = vmatpush.msra.mxu0 %v4920
      %5209 = vmatpush.msra.mxu0 %v4912
      %5210 = vmatmul.f32.gmra.mxu0 %v5012
      %v5211 = vpop.f32.mrf.mxu0
      %v5212 = vadd.f32 %v5008, %v5211
      %5213 = vdwg.mxu0
      %5214 = vmatpush.msra.mxu0 0.0
      %5215 = vmatpush.msra.mxu0 0.0
      %5216 = vmatpush.msra.mxu0 0.0
      %5217 = vmatpush.msra.mxu0 0.0
      %5218 = vmatpush.msra.mxu0 %v5001
      %5219 = vmatpush.msra.mxu0 %v4993
      %5220 = vmatpush.msra.mxu0 %v4985
      %5221 = vmatpush.msra.mxu0 %v4977
      %5222 = vmatpush.msra.mxu0 %v4969
      %5223 = vmatpush.msra.mxu0 %v4961
      %5224 = vmatpush.msra.mxu0 %v4953
      %5225 = vmatpush.msra.mxu0 %v4945
      %5226 = vmatpush.msra.mxu0 %v4937
      %5227 = vmatpush.msra.mxu0 %v4929
      %5228 = vmatpush.msra.mxu0 %v4921
      %5229 = vmatpush.msra.mxu0 %v4913
      %5230 = vmatmul.f32.gmra.mxu0 %v5012
      %v5231 = vpop.f32.mrf.mxu0
      %v5232 = vadd.f32 %v5008, %v5231
      %5233 = vdwg.mxu0
      %5234 = vmatpush.msra.mxu0 0.0
      %5235 = vmatpush.msra.mxu0 0.0
      %5236 = vmatpush.msra.mxu0 0.0
      %5237 = vmatpush.msra.mxu0 0.0
      %5238 = vmatpush.msra.mxu0 %v5002
      %5239 = vmatpush.msra.mxu0 %v4994
      %5240 = vmatpush.msra.mxu0 %v4986
      %5241 = vmatpush.msra.mxu0 %v4978
      %5242 = vmatpush.msra.mxu0 %v4970
      %5243 = vmatpush.msra.mxu0 %v4962
      %5244 = vmatpush.msra.mxu0 %v4954
      %5245 = vmatpush.msra.mxu0 %v4946
      %5246 = vmatpush.msra.mxu0 %v4938
      %5247 = vmatpush.msra.mxu0 %v4930
      %5248 = vmatpush.msra.mxu0 %v4922
      %5249 = vmatpush.msra.mxu0 %v4914
      %5250 = vmatmul.f32.gmra.mxu0 %v5012
      %v5251 = vpop.f32.mrf.mxu0
      %v5252 = vadd.f32 %v5008, %v5251
      %5253 = vdwg.mxu0
      %5254 = vmatpush.msra.mxu0 0.0
      %5255 = vmatpush.msra.mxu0 0.0
      %5256 = vmatpush.msra.mxu0 0.0
      %5257 = vmatpush.msra.mxu0 0.0
      %5258 = vmatpush.msra.mxu0 %v5003
      %5259 = vmatpush.msra.mxu0 %v4995
      %5260 = vmatpush.msra.mxu0 %v4987
      %5261 = vmatpush.msra.mxu0 %v4979
      %5262 = vmatpush.msra.mxu0 %v4971
      %5263 = vmatpush.msra.mxu0 %v4963
      %5264 = vmatpush.msra.mxu0 %v4955
      %5265 = vmatpush.msra.mxu0 %v4947
      %5266 = vmatpush.msra.mxu0 %v4939
      %5267 = vmatpush.msra.mxu0 %v4931
      %5268 = vmatpush.msra.mxu0 %v4923
      %5269 = vmatpush.msra.mxu0 %v4915
      %5270 = vmatmul.f32.gmra.mxu0 %v5012
      %v5271 = vpop.f32.mrf.mxu0
      %v5272 = vadd.f32 %v5008, %v5271
      %5273 = vdwg.mxu0
      %5274 = vmatpush.msra.mxu0 0.0
      %5275 = vmatpush.msra.mxu0 0.0
      %5276 = vmatpush.msra.mxu0 0.0
      %5277 = vmatpush.msra.mxu0 0.0
      %5278 = vmatpush.msra.mxu0 %v5004
      %5279 = vmatpush.msra.mxu0 %v4996
      %5280 = vmatpush.msra.mxu0 %v4988
      %5281 = vmatpush.msra.mxu0 %v4980
      %5282 = vmatpush.msra.mxu0 %v4972
      %5283 = vmatpush.msra.mxu0 %v4964
      %5284 = vmatpush.msra.mxu0 %v4956
      %5285 = vmatpush.msra.mxu0 %v4948
      %5286 = vmatpush.msra.mxu0 %v4940
      %5287 = vmatpush.msra.mxu0 %v4932
      %5288 = vmatpush.msra.mxu0 %v4924
      %5289 = vmatpush.msra.mxu0 %v4916
      %5290 = vmatmul.f32.gmra.mxu0 %v5012
      %v5291 = vpop.f32.mrf.mxu0
      %v5292 = vadd.f32 %v5008, %v5291
      %5293 = vdwg.mxu0
      %5294 = vmatpush.msra.mxu0 0.0
      %5295 = vmatpush.msra.mxu0 0.0
      %5296 = vmatpush.msra.mxu0 0.0
      %5297 = vmatpush.msra.mxu0 0.0
      %5298 = vmatpush.msra.mxu0 %v5005
      %5299 = vmatpush.msra.mxu0 %v4997
      %5300 = vmatpush.msra.mxu0 %v4989
      %5301 = vmatpush.msra.mxu0 %v4981
      %5302 = vmatpush.msra.mxu0 %v4973
      %5303 = vmatpush.msra.mxu0 %v4965
      %5304 = vmatpush.msra.mxu0 %v4957
      %5305 = vmatpush.msra.mxu0 %v4949
      %5306 = vmatpush.msra.mxu0 %v4941
      %5307 = vmatpush.msra.mxu0 %v4933
      %5308 = vmatpush.msra.mxu0 %v4925
      %5309 = vmatpush.msra.mxu0 %v4917
      %5310 = vmatmul.f32.gmra.mxu0 %v5012
      %v5311 = vpop.f32.mrf.mxu0
      %v5312 = vadd.f32 %v5008, %v5311
      %5313 = vdwg.mxu0
      %5314 = vmatpush.msra.mxu0 0.0
      %5315 = vmatpush.msra.mxu0 0.0
      %5316 = vmatpush.msra.mxu0 0.0
      %5317 = vmatpush.msra.mxu0 0.0
      %5318 = vmatpush.msra.mxu0 %v5006
      %5319 = vmatpush.msra.mxu0 %v4998
      %5320 = vmatpush.msra.mxu0 %v4990
      %5321 = vmatpush.msra.mxu0 %v4982
      %5322 = vmatpush.msra.mxu0 %v4974
      %5323 = vmatpush.msra.mxu0 %v4966
      %5324 = vmatpush.msra.mxu0 %v4958
      %5325 = vmatpush.msra.mxu0 %v4950
      %5326 = vmatpush.msra.mxu0 %v4942
      %5327 = vmatpush.msra.mxu0 %v4934
      %5328 = vmatpush.msra.mxu0 %v4926
      %5329 = vmatpush.msra.mxu0 %v4918
      %5330 = vmatmul.f32.gmra.mxu0 %v5012
      %v5331 = vpop.f32.mrf.mxu0
      %v5332 = vadd.f32 %v5008, %v5331
      %5333 = vdwg.mxu0
      %v5334 = vmul.f32 %v282, 0.02
      %v5335 = vmul.f32 %v283, 0.02
      %v5336 = vmul.f32 %v284, 0.02
      %v5337 = vmul.f32 %v285, 0.02
      %5342 = vst [vmem:[#allocation1] ss:$2 sm:$0xff] %v5334
      %s5343 = scalar_lea.vmem [#allocation1], 16
      %5344 = vst [vmem:[%s5343] ss:$2 sm:$0xff] %v5335
      %s5345 = scalar_lea.vmem [#allocation1], 32
      %5346 = vst [vmem:[%s5345] ss:$2 sm:$0xff] %v5336
      %s5347 = scalar_lea.vmem [#allocation1], 48
      %5348 = vst [vmem:[%s5347] ss:$2 sm:$0xff] %v5337
      %v5349 = vld.sshfl [vmem:[#allocation1] sm:$0xff pattern:$0x75316420]
      %v5350 = vld.sshfl [vmem:[#allocation1 + $0x8] sm:$0xff pattern:$0x75316420]
      %v5351 = vld.sshfl [vmem:[#allocation1 + $0x10] sm:$0xff pattern:$0x75316420]
      %v5352 = vld.sshfl [vmem:[#allocation1 + $0x18] sm:$0xff pattern:$0x75316420]
      %v5353 = vld.sshfl [vmem:[#allocation1 + $0x20] sm:$0xff pattern:$0x75316420]
      %v5354 = vld.sshfl [vmem:[#allocation1 + $0x28] sm:$0xff pattern:$0x75316420]
      %v5355 = vld.sshfl [vmem:[#allocation1 + $0x30] sm:$0xff pattern:$0x75316420]
      %v5356 = vld.sshfl [vmem:[#allocation1 + $0x38] sm:$0xff pattern:$0x75316420]
      %v5365 = vadd.f32 %v2639, %v5349
      %v5366 = vadd.f32 %v2646, %v5350
      %v5367 = vadd.f32 %v2653, %v5351
      %v5368 = vadd.f32 %v2660, %v5352
      %v5369 = vadd.f32 %v2667, %v5353
      %v5370 = vadd.f32 %v2674, %v5354
      %v5371 = vadd.f32 %v2681, %v5355
      %v5372 = vadd.f32 %v2688, %v5356
      %v5373 = vadd.f32 %v5365, 0.0001
      %v5374 = vadd.f32 %v5366, 0.0001
      %v5375 = vadd.f32 %v5367, 0.0001
      %v5376 = vadd.f32 %v5368, 0.0001
      %v5377 = vadd.f32 %v5369, 0.0001
      %v5378 = vadd.f32 %v5370, 0.0001
      %v5379 = vadd.f32 %v5371, 0.0001
      %v5380 = vadd.f32 %v5372, 0.0001
      %5381 = vst [vmem:[#allocation1] ss:$2 sm:$0xff] %v5334
      %s5382 = scalar_lea.vmem [#allocation1], 16
      %5383 = vst [vmem:[%s5382] ss:$2 sm:$0xff] %v5335
      %s5384 = scalar_lea.vmem [#allocation1], 32
      %5385 = vst [vmem:[%s5384] ss:$2 sm:$0xff] %v5336
      %s5386 = scalar_lea.vmem [#allocation1], 48
      %5387 = vst [vmem:[%s5386] ss:$2 sm:$0xff] %v5337
      %v5388 = vld.sshfl [vmem:[#allocation1] sm:$0xff pattern:$0x75316420]
      %v5389 = vld.sshfl [vmem:[#allocation1 + $0x8] sm:$0xff pattern:$0x75316420]
      %v5390 = vld.sshfl [vmem:[#allocation1 + $0x10] sm:$0xff pattern:$0x75316420]
      %v5391 = vld.sshfl [vmem:[#allocation1 + $0x18] sm:$0xff pattern:$0x75316420]
      %v5392 = vld.sshfl [vmem:[#allocation1 + $0x20] sm:$0xff pattern:$0x75316420]
      %v5393 = vld.sshfl [vmem:[#allocation1 + $0x28] sm:$0xff pattern:$0x75316420]
      %v5394 = vld.sshfl [vmem:[#allocation1 + $0x30] sm:$0xff pattern:$0x75316420]
      %v5395 = vld.sshfl [vmem:[#allocation1 + $0x38] sm:$0xff pattern:$0x75316420]
      %v5404 = vsub.f32 %v2639, %v5388
      %v5405 = vsub.f32 %v2646, %v5389
      %v5406 = vsub.f32 %v2653, %v5390
      %v5407 = vsub.f32 %v2660, %v5391
      %v5408 = vsub.f32 %v2667, %v5392
      %v5409 = vsub.f32 %v2674, %v5393
      %v5410 = vsub.f32 %v2681, %v5394
      %v5411 = vsub.f32 %v2688, %v5395
      %v5412 = vadd.f32 %v5404, 0.0001
      %v5413 = vadd.f32 %v5405, 0.0001
      %v5414 = vadd.f32 %v5406, 0.0001
      %v5415 = vadd.f32 %v5407, 0.0001
      %v5416 = vadd.f32 %v5408, 0.0001
      %v5417 = vadd.f32 %v5409, 0.0001
      %v5418 = vadd.f32 %v5410, 0.0001
      %v5419 = vadd.f32 %v5411, 0.0001
      %v5420 = vsub.f32 0.0, %v5373
      %v5421 = vsub.f32 0.0, %v5374
      %v5422 = vsub.f32 0.0, %v5375
      %v5423 = vsub.f32 0.0, %v5376
      %v5424 = vsub.f32 0.0, %v5377
      %v5425 = vsub.f32 0.0, %v5378
      %v5426 = vsub.f32 0.0, %v5379
      %v5427 = vsub.f32 0.0, %v5380
      %v5428 = vmul.f32 %v5420, 2.0
      %v5429 = vmul.f32 %v5421, 2.0
      %v5430 = vmul.f32 %v5422, 2.0
      %v5431 = vmul.f32 %v5423, 2.0
      %v5432 = vmul.f32 %v5424, 2.0
      %v5433 = vmul.f32 %v5425, 2.0
      %v5434 = vmul.f32 %v5426, 2.0
      %v5435 = vmul.f32 %v5427, 2.0
      %v5436 = vmul.f32 %v5428, 1.442695
      %v5437 = vpow.pop %v5436
      %v5438 = vmul.f32 %v5429, 1.442695
      %v5439 = vpow.pop %v5438
      %v5440 = vmul.f32 %v5430, 1.442695
      %v5441 = vpow.pop %v5440
      %v5442 = vmul.f32 %v5431, 1.442695
      %v5443 = vpow.pop %v5442
      %v5444 = vmul.f32 %v5432, 1.442695
      %v5445 = vpow.pop %v5444
      %v5446 = vmul.f32 %v5433, 1.442695
      %v5447 = vpow.pop %v5446
      %v5448 = vmul.f32 %v5434, 1.442695
      %v5449 = vpow.pop %v5448
      %v5450 = vmul.f32 %v5435, 1.442695
      %v5451 = vpow.pop %v5450
      %v5452 = vmul.f32 %v5437, 10.0
      %v5453 = vmul.f32 %v5439, 10.0
      %v5454 = vmul.f32 %v5441, 10.0
      %v5455 = vmul.f32 %v5443, 10.0
      %v5456 = vmul.f32 %v5445, 10.0
      %v5457 = vmul.f32 %v5447, 10.0
      %v5458 = vmul.f32 %v5449, 10.0
      %v5459 = vmul.f32 %v5451, 10.0
      %v5460 = vadd.f32 %v5032, %v5452
      %v5461 = vadd.f32 %v5052, %v5453
      %v5462 = vadd.f32 %v5072, %v5454
      %v5463 = vadd.f32 %v5092, %v5455
      %v5464 = vadd.f32 %v5112, %v5456
      %v5465 = vadd.f32 %v5132, %v5457
      %v5466 = vadd.f32 %v5152, %v5458
      %v5467 = vadd.f32 %v5172, %v5459
      %v5468 = vmul.f32 %v5460, 1.442695
      %v5469 = vpow.pop %v5468
      %v5470 = vmul.f32 %v5461, 1.442695
      %v5471 = vpow.pop %v5470
      %v5472 = vmul.f32 %v5462, 1.442695
      %v5473 = vpow.pop %v5472
      %v5474 = vmul.f32 %v5463, 1.442695
      %v5475 = vpow.pop %v5474
      %v5476 = vmul.f32 %v5464, 1.442695
      %v5477 = vpow.pop %v5476
      %v5478 = vmul.f32 %v5465, 1.442695
      %v5479 = vpow.pop %v5478
      %v5480 = vmul.f32 %v5466, 1.442695
      %v5481 = vpow.pop %v5480
      %v5482 = vmul.f32 %v5467, 1.442695
      %v5483 = vpow.pop %v5482
      %v5484 = vsub.f32 0.0, %v5412
      %v5485 = vsub.f32 0.0, %v5413
      %v5486 = vsub.f32 0.0, %v5414
      %v5487 = vsub.f32 0.0, %v5415
      %v5488 = vsub.f32 0.0, %v5416
      %v5489 = vsub.f32 0.0, %v5417
      %v5490 = vsub.f32 0.0, %v5418
      %v5491 = vsub.f32 0.0, %v5419
      %v5492 = vmul.f32 %v5484, 2.0
      %v5493 = vmul.f32 %v5485, 2.0
      %v5494 = vmul.f32 %v5486, 2.0
      %v5495 = vmul.f32 %v5487, 2.0
      %v5496 = vmul.f32 %v5488, 2.0
      %v5497 = vmul.f32 %v5489, 2.0
      %v5498 = vmul.f32 %v5490, 2.0
      %v5499 = vmul.f32 %v5491, 2.0
      %v5500 = vmul.f32 %v5492, 1.442695
      %v5501 = vpow.pop %v5500
      %v5502 = vmul.f32 %v5493, 1.442695
      %v5503 = vpow.pop %v5502
      %v5504 = vmul.f32 %v5494, 1.442695
      %v5505 = vpow.pop %v5504
      %v5506 = vmul.f32 %v5495, 1.442695
      %v5507 = vpow.pop %v5506
      %v5508 = vmul.f32 %v5496, 1.442695
      %v5509 = vpow.pop %v5508
      %v5510 = vmul.f32 %v5497, 1.442695
      %v5511 = vpow.pop %v5510
      %v5512 = vmul.f32 %v5498, 1.442695
      %v5513 = vpow.pop %v5512
      %v5514 = vmul.f32 %v5499, 1.442695
      %v5515 = vpow.pop %v5514
      %v5516 = vmul.f32 %v5501, 10.0
      %v5517 = vmul.f32 %v5503, 10.0
      %v5518 = vmul.f32 %v5505, 10.0
      %v5519 = vmul.f32 %v5507, 10.0
      %v5520 = vmul.f32 %v5509, 10.0
      %v5521 = vmul.f32 %v5511, 10.0
      %v5522 = vmul.f32 %v5513, 10.0
      %v5523 = vmul.f32 %v5515, 10.0
      %v5524 = vadd.f32 %v5192, %v5516
      %v5525 = vadd.f32 %v5212, %v5517
      %v5526 = vadd.f32 %v5232, %v5518
      %v5527 = vadd.f32 %v5252, %v5519
      %v5528 = vadd.f32 %v5272, %v5520
      %v5529 = vadd.f32 %v5292, %v5521
      %v5530 = vadd.f32 %v5312, %v5522
      %v5531 = vadd.f32 %v5332, %v5523
      %v5532 = vmul.f32 %v5524, 1.442695
      %v5533 = vpow.pop %v5532
      %v5534 = vmul.f32 %v5525, 1.442695
      %v5535 = vpow.pop %v5534
      %v5536 = vmul.f32 %v5526, 1.442695
      %v5537 = vpow.pop %v5536
      %v5538 = vmul.f32 %v5527, 1.442695
      %v5539 = vpow.pop %v5538
      %v5540 = vmul.f32 %v5528, 1.442695
      %v5541 = vpow.pop %v5540
      %v5542 = vmul.f32 %v5529, 1.442695
      %v5543 = vpow.pop %v5542
      %v5544 = vmul.f32 %v5530, 1.442695
      %v5545 = vpow.pop %v5544
      %v5546 = vmul.f32 %v5531, 1.442695
      %v5547 = vpow.pop %v5546
      %v5548 = vsub.f32 %v5469, %v5533
      %v5549 = vsub.f32 %v5471, %v5535
      %v5550 = vsub.f32 %v5473, %v5537
      %v5551 = vsub.f32 %v5475, %v5539
      %v5552 = vsub.f32 %v5477, %v5541
      %v5553 = vsub.f32 %v5479, %v5543
      %v5554 = vsub.f32 %v5481, %v5545
      %v5555 = vsub.f32 %v5483, %v5547
      %v5556 = vmul.f32 %v5548, -50.0
      %v5557 = vmul.f32 %v5549, -50.0
      %v5558 = vmul.f32 %v5550, -50.0
      %v5559 = vmul.f32 %v5551, -50.0
      %v5560 = vmul.f32 %v5552, -50.0
      %v5561 = vmul.f32 %v5553, -50.0
      %v5562 = vmul.f32 %v5554, -50.0
      %v5563 = vmul.f32 %v5555, -50.0
      %v5564 = vmul.f32 %v5556, %v5556
      %v5565 = vmul.f32 %v5557, %v5557
      %v5566 = vmul.f32 %v5558, %v5558
      %v5567 = vmul.f32 %v5559, %v5559
      %v5568 = vmul.f32 %v5560, %v5560
      %v5569 = vmul.f32 %v5561, %v5561
      %v5570 = vmul.f32 %v5562, %v5562
      %v5571 = vmul.f32 %v5563, %v5563
      %v5572 = vsel %vm1897, %v5564, 0.0
      %v5573 = vrot.slane %v5572, 4
      %v5574 = vadd.f32 %v5572, %v5573
      %v5575 = vrot.slane %v5574, 2
      %v5576 = vadd.f32 %v5574, %v5575
      %v5577 = vrot.slane %v5576, 1
      %v5578 = vadd.f32 %v5576, %v5577
      %v5579 = vsel %vm1897, %v5565, 0.0
      %v5580 = vrot.slane %v5579, 4
      %v5581 = vadd.f32 %v5579, %v5580
      %v5582 = vrot.slane %v5581, 2
      %v5583 = vadd.f32 %v5581, %v5582
      %v5584 = vrot.slane %v5583, 1
      %v5585 = vadd.f32 %v5583, %v5584
      %v5586 = vsel %vm1897, %v5566, 0.0
      %v5587 = vrot.slane %v5586, 4
      %v5588 = vadd.f32 %v5586, %v5587
      %v5589 = vrot.slane %v5588, 2
      %v5590 = vadd.f32 %v5588, %v5589
      %v5591 = vrot.slane %v5590, 1
      %v5592 = vadd.f32 %v5590, %v5591
      %v5593 = vsel %vm1897, %v5567, 0.0
      %v5594 = vrot.slane %v5593, 4
      %v5595 = vadd.f32 %v5593, %v5594
      %v5596 = vrot.slane %v5595, 2
      %v5597 = vadd.f32 %v5595, %v5596
      %v5598 = vrot.slane %v5597, 1
      %v5599 = vadd.f32 %v5597, %v5598
      %v5600 = vsel %vm1897, %v5568, 0.0
      %v5601 = vrot.slane %v5600, 4
      %v5602 = vadd.f32 %v5600, %v5601
      %v5603 = vrot.slane %v5602, 2
      %v5604 = vadd.f32 %v5602, %v5603
      %v5605 = vrot.slane %v5604, 1
      %v5606 = vadd.f32 %v5604, %v5605
      %v5607 = vsel %vm1897, %v5569, 0.0
      %v5608 = vrot.slane %v5607, 4
      %v5609 = vadd.f32 %v5607, %v5608
      %v5610 = vrot.slane %v5609, 2
      %v5611 = vadd.f32 %v5609, %v5610
      %v5612 = vrot.slane %v5611, 1
      %v5613 = vadd.f32 %v5611, %v5612
      %v5614 = vsel %vm1897, %v5570, 0.0
      %v5615 = vrot.slane %v5614, 4
      %v5616 = vadd.f32 %v5614, %v5615
      %v5617 = vrot.slane %v5616, 2
      %v5618 = vadd.f32 %v5616, %v5617
      %v5619 = vrot.slane %v5618, 1
      %v5620 = vadd.f32 %v5618, %v5619
      %v5621 = vsel %vm1897, %v5571, 0.0
      %v5622 = vrot.slane %v5621, 4
      %v5623 = vadd.f32 %v5621, %v5622
      %v5624 = vrot.slane %v5623, 2
      %v5625 = vadd.f32 %v5623, %v5624
      %v5626 = vrot.slane %v5625, 1
      %v5627 = vadd.f32 %v5625, %v5626
      %v5628 = vmax.f32 %v5578, 1e-24
      %v5629 = vmax.f32 %v5585, 1e-24
      %v5630 = vmax.f32 %v5592, 1e-24
      %v5631 = vmax.f32 %v5599, 1e-24
      %v5632 = vmax.f32 %v5606, 1e-24
      %v5633 = vmax.f32 %v5613, 1e-24
      %v5634 = vmax.f32 %v5620, 1e-24
      %v5635 = vmax.f32 %v5627, 1e-24
      %v5636 = vrsqrt.pop %v5628
      %v5637 = vmul.f32 %v5636, %v5628
      %v5638 = vmul.f32 %v5637, %v5636
      %v5639 = vmul.f32 0.5, %v5638
      %v5640 = vsub.f32 1.5, %v5639
      %v5641 = vmul.f32 %v5636, %v5640
      %vm5642 = vweird.f32 %v5628
      %vm5643 = vweird.f32 %v5636
      %vm5644 = vmor %vm5642, %vm5643
      %v5645 = vsel %vm5644, %v5636, %v5641
      %v5646 = vrsqrt.pop %v5629
      %v5647 = vmul.f32 %v5646, %v5629
      %v5648 = vmul.f32 %v5647, %v5646
      %v5649 = vmul.f32 0.5, %v5648
      %v5650 = vsub.f32 1.5, %v5649
      %v5651 = vmul.f32 %v5646, %v5650
      %vm5652 = vweird.f32 %v5629
      %vm5653 = vweird.f32 %v5646
      %vm5654 = vmor %vm5652, %vm5653
      %v5655 = vsel %vm5654, %v5646, %v5651
      %v5656 = vrsqrt.pop %v5630
      %v5657 = vmul.f32 %v5656, %v5630
      %v5658 = vmul.f32 %v5657, %v5656
      %v5659 = vmul.f32 0.5, %v5658
      %v5660 = vsub.f32 1.5, %v5659
      %v5661 = vmul.f32 %v5656, %v5660
      %vm5662 = vweird.f32 %v5630
      %vm5663 = vweird.f32 %v5656
      %vm5664 = vmor %vm5662, %vm5663
      %v5665 = vsel %vm5664, %v5656, %v5661
      %v5666 = vrsqrt.pop %v5631
      %v5667 = vmul.f32 %v5666, %v5631
      %v5668 = vmul.f32 %v5667, %v5666
      %v5669 = vmul.f32 0.5, %v5668
      %v5670 = vsub.f32 1.5, %v5669
      %v5671 = vmul.f32 %v5666, %v5670
      %vm5672 = vweird.f32 %v5631
      %vm5673 = vweird.f32 %v5666
      %vm5674 = vmor %vm5672, %vm5673
      %v5675 = vsel %vm5674, %v5666, %v5671
      %v5676 = vrsqrt.pop %v5632
      %v5677 = vmul.f32 %v5676, %v5632
      %v5678 = vmul.f32 %v5677, %v5676
      %v5679 = vmul.f32 0.5, %v5678
      %v5680 = vsub.f32 1.5, %v5679
      %v5681 = vmul.f32 %v5676, %v5680
      %vm5682 = vweird.f32 %v5632
      %vm5683 = vweird.f32 %v5676
      %vm5684 = vmor %vm5682, %vm5683
      %v5685 = vsel %vm5684, %v5676, %v5681
      %v5686 = vrsqrt.pop %v5633
      %v5687 = vmul.f32 %v5686, %v5633
      %v5688 = vmul.f32 %v5687, %v5686
      %v5689 = vmul.f32 0.5, %v5688
      %v5690 = vsub.f32 1.5, %v5689
      %v5691 = vmul.f32 %v5686, %v5690
      %vm5692 = vweird.f32 %v5633
      %vm5693 = vweird.f32 %v5686
      %vm5694 = vmor %vm5692, %vm5693
      %v5695 = vsel %vm5694, %v5686, %v5691
      %v5696 = vrsqrt.pop %v5634
      %v5697 = vmul.f32 %v5696, %v5634
      %v5698 = vmul.f32 %v5697, %v5696
      %v5699 = vmul.f32 0.5, %v5698
      %v5700 = vsub.f32 1.5, %v5699
      %v5701 = vmul.f32 %v5696, %v5700
      %vm5702 = vweird.f32 %v5634
      %vm5703 = vweird.f32 %v5696
      %vm5704 = vmor %vm5702, %vm5703
      %v5705 = vsel %vm5704, %v5696, %v5701
      %v5706 = vrsqrt.pop %v5635
      %v5707 = vmul.f32 %v5706, %v5635
      %v5708 = vmul.f32 %v5707, %v5706
      %v5709 = vmul.f32 0.5, %v5708
      %v5710 = vsub.f32 1.5, %v5709
      %v5711 = vmul.f32 %v5706, %v5710
      %vm5712 = vweird.f32 %v5635
      %vm5713 = vweird.f32 %v5706
      %vm5714 = vmor %vm5712, %vm5713
      %v5715 = vsel %vm5714, %v5706, %v5711
      %v5716 = vmul.f32 %v5556, %v5645
      %v5717 = vmul.f32 %v5557, %v5655
      %v5718 = vmul.f32 %v5558, %v5665
      %v5719 = vmul.f32 %v5559, %v5675
      %v5720 = vmul.f32 %v5560, %v5685
      %v5721 = vmul.f32 %v5561, %v5695
      %v5722 = vmul.f32 %v5562, %v5705
      %v5723 = vmul.f32 %v5563, %v5715
      %vm5724 = vcmp.ne.f32.partialorder %v5716, %v5716
      %vm5725 = vcmp.ne.f32.partialorder %v5717, %v5717
      %vm5726 = vcmp.ne.f32.partialorder %v5718, %v5718
      %vm5727 = vcmp.ne.f32.partialorder %v5719, %v5719
      %vm5728 = vcmp.ne.f32.partialorder %v5720, %v5720
      %vm5729 = vcmp.ne.f32.partialorder %v5721, %v5721
      %vm5730 = vcmp.ne.f32.partialorder %v5722, %v5722
      %vm5731 = vcmp.ne.f32.partialorder %v5723, %v5723
      %v5732 = vsel %vm5724, 0.0, %v5716
      %v5733 = vsel %vm5725, 0.0, %v5717
      %v5734 = vsel %vm5726, 0.0, %v5718
      %v5735 = vsel %vm5727, 0.0, %v5719
      %v5736 = vsel %vm5728, 0.0, %v5720
      %v5737 = vsel %vm5729, 0.0, %v5721
      %v5738 = vsel %vm5730, 0.0, %v5722
      %v5739 = vsel %vm5731, 0.0, %v5723
      %vm5740 = vcmp.eq.f32.partialorder %v5732, inf
      %vm5741 = vcmp.eq.f32.partialorder %v5733, inf
      %vm5742 = vcmp.eq.f32.partialorder %v5734, inf
      %vm5743 = vcmp.eq.f32.partialorder %v5735, inf
      %vm5744 = vcmp.eq.f32.partialorder %v5736, inf
      %vm5745 = vcmp.eq.f32.partialorder %v5737, inf
      %vm5746 = vcmp.eq.f32.partialorder %v5738, inf
      %vm5747 = vcmp.eq.f32.partialorder %v5739, inf
      %v5748 = vsel %vm5740, 3.4028235e+38, %v5732
      %v5749 = vsel %vm5741, 3.4028235e+38, %v5733
      %v5750 = vsel %vm5742, 3.4028235e+38, %v5734
      %v5751 = vsel %vm5743, 3.4028235e+38, %v5735
      %v5752 = vsel %vm5744, 3.4028235e+38, %v5736
      %v5753 = vsel %vm5745, 3.4028235e+38, %v5737
      %v5754 = vsel %vm5746, 3.4028235e+38, %v5738
      %v5755 = vsel %vm5747, 3.4028235e+38, %v5739
      %vm5756 = vcmp.eq.f32.partialorder %v5748, -inf
      %vm5757 = vcmp.eq.f32.partialorder %v5749, -inf
      %vm5758 = vcmp.eq.f32.partialorder %v5750, -inf
      %vm5759 = vcmp.eq.f32.partialorder %v5751, -inf
      %vm5760 = vcmp.eq.f32.partialorder %v5752, -inf
      %vm5761 = vcmp.eq.f32.partialorder %v5753, -inf
      %vm5762 = vcmp.eq.f32.partialorder %v5754, -inf
      %vm5763 = vcmp.eq.f32.partialorder %v5755, -inf
      %v5764 = vsel %vm5756, -3.4028235e+38, %v5748
      %v5765 = vsel %vm5757, -3.4028235e+38, %v5749
      %v5766 = vsel %vm5758, -3.4028235e+38, %v5750
      %v5767 = vsel %vm5759, -3.4028235e+38, %v5751
      %v5768 = vsel %vm5760, -3.4028235e+38, %v5752
      %v5769 = vsel %vm5761, -3.4028235e+38, %v5753
      %v5770 = vsel %vm5762, -3.4028235e+38, %v5754
      %v5771 = vsel %vm5763, -3.4028235e+38, %v5755
      %v5780 = vrot.slane %v5764, 4
      %v5781 = vrot.slane %v5765, 4
      %v5782 = vrot.slane %v5766, 4
      %v5783 = vrot.slane %v5767, 4
      %v5784 = vrot.slane %v5768, 4
      %v5785 = vrot.slane %v5769, 4
      %v5786 = vrot.slane %v5770, 4
      %v5787 = vrot.slane %v5771, 4
      %v5796 = vsel %vm1915, %v2738, %v2799
      %v5797 = vsel %vm1915, %v2740, %v2814
      %v5798 = vsel %vm1915, %v2742, %v2829
      %v5799 = vsel %vm1915, %v2744, %v2844
      %v5800 = vsel %vm1915, %v2746, %v2859
      %v5801 = vsel %vm1915, %v2748, %v2874
      %v5802 = vsel %vm1915, %v2750, %v2889
      %v5803 = vsel %vm1915, %v2752, %v2904
      %v5804 = vsel %vm1924, %v5796, %v5780
      %v5805 = vsel %vm1924, %v5797, %v5781
      %v5806 = vsel %vm1924, %v5798, %v5782
      %v5807 = vsel %vm1924, %v5799, %v5783
      %v5808 = vsel %vm1924, %v5800, %v5784
      %v5809 = vsel %vm1924, %v5801, %v5785
      %v5810 = vsel %vm1924, %v5802, %v5786
      %v5811 = vsel %vm1924, %v5803, %v5787
      %v5812 = vsel %vm1933, %v5804, 0.0
      %v5813 = vsel %vm1933, %v5805, 0.0
      %v5814 = vsel %vm1933, %v5806, 0.0
      %v5815 = vsel %vm1933, %v5807, 0.0
      %v5816 = vsel %vm1933, %v5808, 0.0
      %v5817 = vsel %vm1933, %v5809, 0.0
      %v5818 = vsel %vm1933, %v5810, 0.0
      %v5819 = vsel %vm1933, %v5811, 0.0
      %5820 = vst [vmem:[%s280] sm:$0xff] %v5812
      %5821 = vst [vmem:[%s280 + $0x8] sm:$0xff] %v5813
      %5822 = vst [vmem:[%s280 + $0x10] sm:$0xff] %v5814
      %5823 = vst [vmem:[%s280 + $0x18] sm:$0xff] %v5815
      %5824 = vst [vmem:[%s280 + $0x20] sm:$0xff] %v5816
      %5825 = vst [vmem:[%s280 + $0x28] sm:$0xff] %v5817
      %5826 = vst [vmem:[%s280 + $0x30] sm:$0xff] %v5818
      %5827 = vst [vmem:[%s280 + $0x38] sm:$0xff] %v5819
      %s5828 = smul.u32 8, %s18
      %p5829 = scmp.lt.s32.totalorder %s5828, 15
      %s5830 = scalar_select %p5829, %s5828, 15
      %s5831 = smul.addr %s5830, 8
      %s5832 = scalar_lea.vmem %s7, %s5831
      // Predicated region
      $region49: #{nerf_forward.1} parent=47 // pred_check
        %p5833 = pneg %p188
      $region50: #{nerf_forward.1} parent=47 // pred_check_branch
        %5835 = sbr.rel (%p5833) target = $region52
      $region51: #{nerf_forward.1} parent=47 // pred_region
        %s5836 = smul.u32 8, %s18
      $region52: #{nerf_forward.1} parent=47 // pred_fallthru
        _
    $region48: #{nerf_forward.1} parent=5 // pred_fallthru
      _
    %p5837 = scmp.le.s32.totalorder 2, %s13
    // Predicated region
    $region53: #{nerf_forward.1} parent=5 // pred_check
      %p5838 = pneg %p5837
    $region54: #{nerf_forward.1} parent=5 // pred_check_branch
      %5840 = sbr.rel (%p5838) target = $region56
    $region55: #{nerf_forward.1} parent=5 // pred_region
      %s5841 = ssub.s32 %s13, 2
      // Predicated region
      $region57: #{nerf_forward.1} parent=55 // pred_check
        %p5842 = pneg %p194
      $region58: #{nerf_forward.1} parent=55 // pred_check_branch
        %5844 = sbr.rel (%p5842) target = $region60
      $region59: #{nerf_forward.1} parent=55 // pred_region
        %s5845 = smul.u32 8, %s19
        %p5846 = scmp.lt.s32.totalorder %s5845, 15
        %s5847 = scalar_select %p5846, %s5845, 15
        %s5848 = smul.addr %s5847, 8
        %s5849 = scalar_lea.vmem %s7, %s5848
      $region60: #{nerf_forward.1} parent=55 // pred_fallthru
        _
    $region56: #{nerf_forward.1} parent=5 // pred_fallthru
      _
  $region6: #{nerf_forward.1} parent=0 // loop_footer
    %s17 = sadd.s32 1, %s13
  $region7: #{nerf_forward.1} parent=0 // loop_footer_branch
    %12 = sbr.rel target = $region3
  $region8: #{nerf_forward.1} parent=0 // loop_exit
    _

</llo_original>
